<compile_context>
chip_gen: v6e
topology: v6e:2x2x1
jax: 0.10.0
libtpu: 0.0.40
codegen_flags: <defaults>
</compile_context>

<pallas_src>
import functools

import jax
import jax.numpy as jnp
from jax.experimental import pallas as pl
from jax.experimental.pallas import tpu as pltpu


def _pad_up(n, m):
    return ((n + m - 1) // m) * m


def _pick_tm(M):
    """M tile: fill the MXU, but keep >=2 parallel grid tiles when M allows
    (v7x has 2 TensorCores; a grid of 1 leaves one idle)."""
    if M >= 512:
        return 256
    if M >= 256:
        return 128
    if M >= 16:
        return max(8, _pad_up((M + 1) // 2, 8))
    return _pad_up(max(M, 1), 8)


def _vmem_limit(block_bytes):
    # 2x for double buffering + generous slack; cap well below physical VMEM.
    return int(min(max(2 * block_bytes + (2 << 20), 8 << 20), 48 << 20))


# ---------------------------------------------------------------------------
# Pallas kernel 1: fused head  --  relu(relu(x @ W1 + b1) @ W2 + b2)
#   layer 1: nn.Conv2d(in_dim, 256, 1) on a 1x1 map        (pure matmul)
#   layer 2: nn.ConvTranspose2d(256, 64, 4) on a 1x1 map   (pure matmul;
#            output columns laid out (oy, ox, c_out), c_out fastest -> NHWC)
# ---------------------------------------------------------------------------
def _head_kernel(x_ref, w1_ref, b1_ref, w2_ref, b2_ref, o_ref):
    h = jnp.dot(x_ref[...], w1_ref[...], preferred_element_type=jnp.float32)
    h = jnp.maximum(h + b1_ref[...], 0.0)
    h = jnp.dot(h.astype(jnp.bfloat16), w2_ref[...],
                preferred_element_type=jnp.float32)
    h = jnp.maximum(h + b2_ref[...], 0.0)
    o_ref[...] = h.astype(o_ref.dtype)


def head_forward(x_pad, w1p, b1p, w2p, b2p):
    """x_pad: (B, K1) bf16, K1 already a 128-multiple. Returns (B, 1024) bf16."""
    B, K1 = x_pad.shape
    N1 = w1p.shape[1]          # 256
    N2 = w2p.shape[1]          # 1024
    tm = _pick_tm(B)
    Mp = _pad_up(B, tm)
    xb = jnp.pad(x_pad, ((0, Mp - B), (0, 0)))

    block_bytes = 2 * (tm * K1 + K1 * N1 + N1 * N2 + tm * N2) + 4 * (N1 + N2)
    out = pl.pallas_call(
        _head_kernel,
        out_shape=jax.ShapeDtypeStruct((Mp, N2), jnp.bfloat16),
        grid=(Mp // tm,),
        in_specs=[
            pl.BlockSpec((tm, K1), lambda i: (i, 0)),
            pl.BlockSpec((K1, N1), lambda i: (0, 0)),
            pl.BlockSpec((1, N1), lambda i: (0, 0)),
            pl.BlockSpec((N1, N2), lambda i: (0, 0)),
            pl.BlockSpec((1, N2), lambda i: (0, 0)),
        ],
        out_specs=pl.BlockSpec((tm, N2), lambda i: (i, 0)),
        compiler_params=pltpu.CompilerParams(
            dimension_semantics=("parallel",),
            vmem_limit_bytes=_vmem_limit(block_bytes)),
        cost_estimate=pl.CostEstimate(
            flops=2 * Mp * (K1 * N1 + N1 * N2),
            transcendentals=0,
            bytes_accessed=2 * (Mp * K1 + K1 * N1 + N1 * N2 + Mp * N2)
            + 4 * (N1 + N2)),
    )(xb, w1p, b1p, w2p, b2p)
    return out[:B]


# ---------------------------------------------------------------------------
# Pallas kernel 2: one M-tile of  out = act(patches @ w + b)
# ---------------------------------------------------------------------------
def _matmul_bias_act_kernel(x_ref, w_ref, b_ref, o_ref, *, act):
    acc = jnp.dot(x_ref[...], w_ref[...], preferred_element_type=jnp.float32)
    acc = acc + b_ref[...]                       # (1, N) broadcasts over M tile
    if act == "relu":
        acc = jnp.maximum(acc, 0.0)
    elif act == "sigmoid":
        # exp + approximate reciprocal both run on the EUP slot; min() keeps
        # the bf16-rounded output inside [0, 1].
        acc = jnp.minimum(pl.reciprocal(1.0 + jnp.exp(-acc), approx=True), 1.0)
    o_ref[...] = acc.astype(o_ref.dtype)


def matmul_bias_act(patches, w_p, b_p, act, out_dtype):
    """patches: (M, K) bf16 (K a 128-multiple), w_p: (K, N) bf16 pre-packed,
    b_p: (1, N) f32 pre-packed.  Returns (M, N) out_dtype."""
    M, K = patches.shape
    N = w_p.shape[1]
    tm = _pick_tm(M)
    Mp = _pad_up(M, tm)
    x_p = jnp.pad(patches, ((0, Mp - M), (0, 0)))

    block_bytes = 2 * (tm * K + K * N + tm * N) + 4 * N
    out = pl.pallas_call(
        functools.partial(_matmul_bias_act_kernel, act=act),
        out_shape=jax.ShapeDtypeStruct((Mp, N), out_dtype),
        grid=(Mp // tm,),
        in_specs=[
            pl.BlockSpec((tm, K), lambda i: (i, 0)),
            pl.BlockSpec((K, N), lambda i: (0, 0)),
            pl.BlockSpec((1, N), lambda i: (0, 0)),
        ],
        out_specs=pl.BlockSpec((tm, N), lambda i: (i, 0)),
        compiler_params=pltpu.CompilerParams(
            dimension_semantics=("parallel",),
            vmem_limit_bytes=_vmem_limit(block_bytes)),
        cost_estimate=pl.CostEstimate(
            flops=2 * Mp * K * N,
            transcendentals=Mp * N if act == "sigmoid" else 0,
            bytes_accessed=2 * (Mp * K + K * N + Mp * N) + 4 * N),
    )(x_p, w_p, b_p)
    return out[:M]


# ---------------------------------------------------------------------------
# XLA glue: sub-pixel (phase) decomposition of ConvTranspose2d(k=4, s=2, p=1)
#
#   out[2*wy-1+py, 2*wx-1+px, co] =
#       sum_{dy,dx,ci} h_pad[wy+dy, wx+dx, ci] * W[ci, co, py-2*dy+2, px-2*dx+2]
#   (h_pad = input zero-padded by 1; invalid border phases trimmed afterwards)
# ---------------------------------------------------------------------------
def subpixel_patches(h):
    """h: (B, H, W, C) bf16 NHWC -> (B*(H+1)*(W+1), 4*C), cols ordered (dy,dx,c)."""
    B, H, W, C = h.shape
    hp = jnp.pad(h, ((0, 0), (1, 1), (1, 1), (0, 0)))
    taps = [hp[:, dy:dy + H + 1, dx:dx + W + 1, :]
            for dy in (0, 1) for dx in (0, 1)]
    return jnp.concatenate(taps, axis=-1).reshape(B * (H + 1) * (W + 1), 4 * C)


def depth_to_space(y, B, H, W, c_out):
    """y: (B*(H+1)*(W+1), 4*c_out) with cols (py, px, c) -> (B, 2H, 2W, c_out)."""
    y = y.reshape(B, H + 1, W + 1, 2, 2, c_out)
    y = jnp.transpose(y, (0, 1, 3, 2, 4, 5))
    y = y.reshape(B, 2 * (H + 1), 2 * (W + 1), c_out)
    return y[:, 1:2 * H + 1, 1:2 * W + 1, :]


# ---------------------------------------------------------------------------
# Parameters (PyTorch layout) + one-time packing into kernel-ready operands
# ---------------------------------------------------------------------------
def make_deconv_cfg(n_chan):
    # layers 3..6: (c_in, c_out, act); all are ConvTranspose2d(k=4, s=2, p=1)
    return [(64, 64, "relu"), (64, 32, "relu"),
            (32, 32, "relu"), (32, n_chan, "sigmoid")]


def init_params(key, in_dim, n_chan):
    params = []
    key, kw, kb = jax.random.split(key, 3)
    params.append((jax.random.normal(kw, (256, in_dim, 1, 1), jnp.float32)
                   / jnp.sqrt(float(in_dim)),
                   jax.random.normal(kb, (256,), jnp.float32) * 0.01))
    key, kw, kb = jax.random.split(key, 3)
    params.append((jax.random.normal(kw, (256, 64, 4, 4), jnp.float32)
                   / jnp.sqrt(256.0 * 16.0),
                   jax.random.normal(kb, (64,), jnp.float32) * 0.01))
    for c_in, c_out, _ in make_deconv_cfg(n_chan):
        key, kw, kb = jax.random.split(key, 3)
        params.append((jax.random.normal(kw, (c_in, c_out, 4, 4), jnp.float32)
                       / jnp.sqrt(float(c_in * 16)),
                       jax.random.normal(kb, (c_out,), jnp.float32) * 0.01))
    return params


def _pack_subpixel_weight(w):
    """(ci, co, 4, 4) -> (4*ci, 4*co): Wp[(dy,dx,ci),(py,px,co)] = w[ci,co,py-2dy+2,px-2dx+2]."""
    ci, co = w.shape[0], w.shape[1]
    idx = jnp.array([[2, 3], [0, 1]], dtype=jnp.int32)     # idx[d, p] = p - 2d + 2
    wt = jnp.transpose(w, (2, 3, 0, 1))                    # (ky, kx, ci, co)
    wsel = wt[idx][:, :, idx]                              # (dy, py, dx, px, ci, co)
    return jnp.transpose(wsel, (0, 2, 4, 1, 3, 5)).reshape(4 * ci, 4 * co)


def pack_params(params, in_dim, n_chan):
    """One-time repack: all transposes/phase-selects/pads/casts happen here,
    never inside the per-step forward."""
    (w1, b1), (w2, b2) = params[0], params[1]
    K1 = _pad_up(in_dim, 128)
    w1p = jnp.pad(w1.reshape(256, in_dim).T,
                  ((0, K1 - in_dim), (0, 0))).astype(jnp.bfloat16)
    b1p = b1.astype(jnp.float32).reshape(1, 256)
    # ConvTranspose2d(256, 64, 4) on a 1x1 map: cols (oy, ox, co), co fastest.
    w2p = jnp.transpose(w2, (0, 2, 3, 1)).reshape(256, 1024).astype(jnp.bfloat16)
    b2p = jnp.tile(b2.astype(jnp.float32), 16).reshape(1, 1024)

    deconv = []
    for (w, b), (c_in, c_out, _) in zip(params[2:], make_deconv_cfg(n_chan)):
        n = 4 * c_out
        n_pad = _pad_up(n, 128)
        wp = jnp.pad(_pack_subpixel_weight(w),
                     ((0, 0), (0, n_pad - n))).astype(jnp.bfloat16)
        bp = jnp.pad(jnp.tile(b.astype(jnp.float32), 4),
                     (0, n_pad - n)).reshape(1, n_pad)
        deconv.append((wp, bp))
    return {"head": (w1p, b1p, w2p, b2p), "deconv": deconv}


# ---------------------------------------------------------------------------
# Forward pass
# ---------------------------------------------------------------------------
def image_decoder_forward(x, packed, n_chan):
    """x: (B, in_dim).  Reshape() to (B, in_dim, 1, 1) is implicit.
    Returns (B, n_chan, 64, 64) float32 (NCHW, like PyTorch)."""
    B, in_dim = x.shape
    w1p, b1p, w2p, b2p = packed["head"]
    K1 = w1p.shape[0]
    x_pad = jnp.pad(x.astype(jnp.bfloat16), ((0, 0), (0, K1 - in_dim)))
    h = head_forward(x_pad, w1p, b1p, w2p, b2p).reshape(B, 4, 4, 64)  # bf16 NHWC

    H = W = 4
    for (wp, bp), (_, c_out, act) in zip(packed["deconv"], make_deconv_cfg(n_chan)):
        patches = subpixel_patches(h)                       # (M, 4*c_in) bf16
        y = matmul_bias_act(patches, wp, bp, act, jnp.bfloat16)
        h = depth_to_space(y[:, :4 * c_out], B, H, W, c_out)  # (B, 2H, 2W, c_out)
        H, W = 2 * H, 2 * W

    return jnp.transpose(h, (0, 3, 1, 2)).astype(jnp.float32)  # NHWC -> NCHW


# ---------------------------------------------------------------------------
# Pure-JAX f32 reference (direct PyTorch ConvTranspose2d definition)
# ---------------------------------------------------------------------------
def _convT_ref(x, w, b, stride, pad):
    B, Ci, H, W = x.shape
    _, Co, k, _ = w.shape
    Ho = (H - 1) * stride - 2 * pad + k
    Wo = (W - 1) * stride - 2 * pad + k
    canvas = jnp.zeros((B, Co, (H - 1) * stride + k, (W - 1) * stride + k),
                       jnp.float32)
    for ky in range(k):
        for kx in range(k):
            contrib = jnp.einsum("bihw,io->bohw", x, w[:, :, ky, kx])
            canvas = canvas.at[:, :,
                               ky:ky + (H - 1) * stride + 1:stride,
                               kx:kx + (W - 1) * stride + 1:stride].add(contrib)
    return canvas[:, :, pad:pad + Ho, pad:pad + Wo] + b[None, :, None, None]


def reference_forward(x, params, n_chan):
    (w1, b1), (w2, b2) = params[0], params[1]
    h = x[:, :, None, None]
    h = jnp.einsum("bihw,oi->bohw", h, w1[:, :, 0, 0]) + b1[None, :, None, None]
    h = jnp.maximum(h, 0.0)
    h = jnp.maximum(_convT_ref(h, w2, b2, 1, 0), 0.0)
    for (w, b), (_, _, act) in zip(params[2:], make_deconv_cfg(n_chan)):
        h = _convT_ref(h, w, b, 2, 1)
        h = jnp.maximum(h, 0.0) if act == "relu" else jax.nn.sigmoid(h)
    return h


if __name__ == "__main__":
    in_dim, n_chan, batch = 32, 3, 2

    key = jax.random.PRNGKey(0)
    key_x, key_p = jax.random.split(key)
    x = jax.random.normal(key_x, (batch, in_dim), jnp.float32)
    params = init_params(key_p, in_dim, n_chan)
    packed = pack_params(params, in_dim, n_chan)            # one-time packing

    fwd = jax.jit(functools.partial(image_decoder_forward, n_chan=n_chan))
    out = jax.block_until_ready(fwd(x, packed))

    assert out.shape == (batch, n_chan, 64, 64), out.shape
    assert bool(jnp.all(jnp.isfinite(out)))
    assert bool(jnp.all((out >= 0.0) & (out <= 1.0)))        # sigmoid range

    ref = jax.block_until_ready(
        jax.jit(functools.partial(reference_forward, n_chan=n_chan))(x, params))
    max_err = float(jnp.max(jnp.abs(out - ref)))
    assert max_err < 5e-2, f"max abs error vs f32 reference: {max_err}"

    print("KERNEL_OK")
</pallas_src>

<mosaic_0001>
module attributes {stable_mosaic.version = 11 : i64} {
  func.func @_head_kernel(%arg0: i32, %arg1: memref<8x128xbf16, #tpu.memory_space<vmem>>, %arg2: memref<128x256xbf16, #tpu.memory_space<vmem>>, %arg3: memref<1x256xf32, #tpu.memory_space<vmem>>, %arg4: memref<256x1024xbf16, #tpu.memory_space<vmem>>, %arg5: memref<1x1024xf32, #tpu.memory_space<vmem>>, %arg6: memref<8x1024xbf16, #tpu.memory_space<vmem>>) attributes {dimension_semantics = [#tpu.dimension_semantics<parallel>], iteration_bounds = array<i64: 1>, scalar_prefetch = 0 : i64, scratch_operands = 0 : i64, tpu.core_type = #tpu.core_type<tc>, window_params = [{transform_indices = @transform_0, window_bounds = array<i64: 8, 128>}, {pipeline_mode = #tpu.pipeline_mode<synchronous>, transform_indices = @transform_1, window_bounds = array<i64: 128, 256>}, {pipeline_mode = #tpu.pipeline_mode<synchronous>, transform_indices = @transform_2, window_bounds = array<i64: 1, 256>}, {pipeline_mode = #tpu.pipeline_mode<synchronous>, transform_indices = @transform_3, window_bounds = array<i64: 256, 1024>}, {pipeline_mode = #tpu.pipeline_mode<synchronous>, transform_indices = @transform_4, window_bounds = array<i64: 1, 1024>}, {transform_indices = @transform_5, window_bounds = array<i64: 8, 1024>}]} {
    %c0 = arith.constant 0 : index
    %c0_0 = arith.constant 0 : index
    %0 = vector.load %arg1[%c0, %c0_0] : memref<8x128xbf16, #tpu.memory_space<vmem>>, vector<8x128xbf16>
    %c0_1 = arith.constant 0 : index
    %c0_2 = arith.constant 0 : index
    %1 = vector.load %arg2[%c0_1, %c0_2] : memref<128x256xbf16, #tpu.memory_space<vmem>>, vector<128x256xbf16>
    %cst = arith.constant dense<0.000000e+00> : vector<8x256xf32>
    %2 = tpu.matmul %0, %1, %cst {dimension_numbers = #tpu.dot_dimension_numbers<[1], [0], [0], [1], [0, 0, 1, 1], [], []>} : vector<8x128xbf16>, vector<128x256xbf16>, vector<8x256xf32> -> vector<8x256xf32>
    %c0_3 = arith.constant 0 : index
    %c0_4 = arith.constant 0 : index
    %3 = vector.load %arg3[%c0_3, %c0_4] : memref<1x256xf32, #tpu.memory_space<vmem>>, vector<1x256xf32>
    %4 = vector.broadcast %3 : vector<1x256xf32> to vector<8x256xf32>
    %5 = arith.addf %2, %4 : vector<8x256xf32>
    %cst_5 = arith.constant 0.000000e+00 : f32
    %6 = vector.broadcast %cst_5 : f32 to vector<8x256xf32>
    %7 = arith.maximumf %5, %6 : vector<8x256xf32>
    %8 = arith.truncf %7 : vector<8x256xf32> to vector<8x256xbf16>
    %c0_6 = arith.constant 0 : index
    %c0_7 = arith.constant 0 : index
    %9 = vector.load %arg4[%c0_6, %c0_7] : memref<256x1024xbf16, #tpu.memory_space<vmem>>, vector<256x1024xbf16>
    %cst_8 = arith.constant dense<0.000000e+00> : vector<8x1024xf32>
    %10 = tpu.matmul %8, %9, %cst_8 {dimension_numbers = #tpu.dot_dimension_numbers<[1], [0], [0], [1], [0, 0, 1, 1], [], []>} : vector<8x256xbf16>, vector<256x1024xbf16>, vector<8x1024xf32> -> vector<8x1024xf32>
    %c0_9 = arith.constant 0 : index
    %c0_10 = arith.constant 0 : index
    %11 = vector.load %arg5[%c0_9, %c0_10] : memref<1x1024xf32, #tpu.memory_space<vmem>>, vector<1x1024xf32>
    %12 = vector.broadcast %11 : vector<1x1024xf32> to vector<8x1024xf32>
    %13 = arith.addf %10, %12 : vector<8x1024xf32>
    %cst_11 = arith.constant 0.000000e+00 : f32
    %14 = vector.broadcast %cst_11 : f32 to vector<8x1024xf32>
    %15 = arith.maximumf %13, %14 : vector<8x1024xf32>
    %16 = arith.truncf %15 : vector<8x1024xf32> to vector<8x1024xbf16>
    %c0_12 = arith.constant 0 : index
    %c0_13 = arith.constant 0 : index
    %17 = vector.load %arg6[%c0_12, %c0_13] : memref<8x1024xbf16, #tpu.memory_space<vmem>>, vector<8x1024xbf16>
    tpu.vector_store %arg6[%c0_12, %c0_13], %16 {strides = array<i32>} : memref<8x1024xbf16, #tpu.memory_space<vmem>>, vector<8x1024xbf16>,
    return
  }
  func.func @transform_0(%arg0: i32) -> (i32, i32) {
    %c0_i32 = arith.constant 0 : i32
    %c0_i32_0 = arith.constant 0 : i32
    return %arg0, %c0_i32 : i32, i32
  }
  func.func @transform_1(%arg0: i32) -> (i32, i32) {
    %c0_i32 = arith.constant 0 : i32
    %c0_i32_0 = arith.constant 0 : i32
    %c0_i32_1 = arith.constant 0 : i32
    return %c0_i32, %c0_i32_0 : i32, i32
  }
  func.func @transform_2(%arg0: i32) -> (i32, i32) {
    %c0_i32 = arith.constant 0 : i32
    %c0_i32_0 = arith.constant 0 : i32
    %c0_i32_1 = arith.constant 0 : i32
    return %c0_i32, %c0_i32_0 : i32, i32
  }
  func.func @transform_3(%arg0: i32) -> (i32, i32) {
    %c0_i32 = arith.constant 0 : i32
    %c0_i32_0 = arith.constant 0 : i32
    %c0_i32_1 = arith.constant 0 : i32
    return %c0_i32, %c0_i32_0 : i32, i32
  }
  func.func @transform_4(%arg0: i32) -> (i32, i32) {
    %c0_i32 = arith.constant 0 : i32
    %c0_i32_0 = arith.constant 0 : i32
    %c0_i32_1 = arith.constant 0 : i32
    return %c0_i32, %c0_i32_0 : i32, i32
  }
  func.func @transform_5(%arg0: i32) -> (i32, i32) {
    %c0_i32 = arith.constant 0 : i32
    %c0_i32_0 = arith.constant 0 : i32
    return %arg0, %c0_i32 : i32, i32
  }
}

module attributes {stable_mosaic.version = 11 : i64} {
  func.func @_matmul_bias_act_kernel(%arg0: i32, %arg1: memref<32x256xbf16, #tpu.memory_space<vmem>>, %arg2: memref<256x256xbf16, #tpu.memory_space<vmem>>, %arg3: memref<1x256xf32, #tpu.memory_space<vmem>>, %arg4: memref<32x256xbf16, #tpu.memory_space<vmem>>) attributes {dimension_semantics = [#tpu.dimension_semantics<parallel>], iteration_bounds = array<i64: 2>, scalar_prefetch = 0 : i64, scratch_operands = 0 : i64, tpu.core_type = #tpu.core_type<tc>, window_params = [{transform_indices = @transform_0, window_bounds = array<i64: 32, 256>}, {pipeline_mode = #tpu.pipeline_mode<synchronous>, transform_indices = @transform_1, window_bounds = array<i64: 256, 256>}, {pipeline_mode = #tpu.pipeline_mode<synchronous>, transform_indices = @transform_2, window_bounds = array<i64: 1, 256>}, {transform_indices = @transform_3, window_bounds = array<i64: 32, 256>}]} {
    %c0 = arith.constant 0 : index
    %c0_0 = arith.constant 0 : index
    %0 = vector.load %arg1[%c0, %c0_0] : memref<32x256xbf16, #tpu.memory_space<vmem>>, vector<32x256xbf16>
    %c0_1 = arith.constant 0 : index
    %c0_2 = arith.constant 0 : index
    %1 = vector.load %arg2[%c0_1, %c0_2] : memref<256x256xbf16, #tpu.memory_space<vmem>>, vector<256x256xbf16>
    %cst = arith.constant dense<0.000000e+00> : vector<32x256xf32>
    %2 = tpu.matmul %0, %1, %cst {dimension_numbers = #tpu.dot_dimension_numbers<[1], [0], [0], [1], [0, 0, 1, 1], [], []>} : vector<32x256xbf16>, vector<256x256xbf16>, vector<32x256xf32> -> vector<32x256xf32>
    %c0_3 = arith.constant 0 : index
    %c0_4 = arith.constant 0 : index
    %3 = vector.load %arg3[%c0_3, %c0_4] : memref<1x256xf32, #tpu.memory_space<vmem>>, vector<1x256xf32>
    %4 = vector.broadcast %3 : vector<1x256xf32> to vector<32x256xf32>
    %5 = arith.addf %2, %4 : vector<32x256xf32>
    %cst_5 = arith.constant 0.000000e+00 : f32
    %6 = vector.broadcast %cst_5 : f32 to vector<32x256xf32>
    %7 = arith.maximumf %5, %6 : vector<32x256xf32>
    %8 = arith.truncf %7 : vector<32x256xf32> to vector<32x256xbf16>
    %c0_6 = arith.constant 0 : index
    %c0_7 = arith.constant 0 : index
    %9 = vector.load %arg4[%c0_6, %c0_7] : memref<32x256xbf16, #tpu.memory_space<vmem>>, vector<32x256xbf16>
    tpu.vector_store %arg4[%c0_6, %c0_7], %8 {strides = array<i32>} : memref<32x256xbf16, #tpu.memory_space<vmem>>, vector<32x256xbf16>,
    return
  }
  func.func @transform_0(%arg0: i32) -> (i32, i32) {
    %c0_i32 = arith.constant 0 : i32
    %c0_i32_0 = arith.constant 0 : i32
    return %arg0, %c0_i32 : i32, i32
  }
  func.func @transform_1(%arg0: i32) -> (i32, i32) {
    %c0_i32 = arith.constant 0 : i32
    %c0_i32_0 = arith.constant 0 : i32
    %c0_i32_1 = arith.constant 0 : i32
    return %c0_i32, %c0_i32_0 : i32, i32
  }
  func.func @transform_2(%arg0: i32) -> (i32, i32) {
    %c0_i32 = arith.constant 0 : i32
    %c0_i32_0 = arith.constant 0 : i32
    %c0_i32_1 = arith.constant 0 : i32
    return %c0_i32, %c0_i32_0 : i32, i32
  }
  func.func @transform_3(%arg0: i32) -> (i32, i32) {
    %c0_i32 = arith.constant 0 : i32
    %c0_i32_0 = arith.constant 0 : i32
    return %arg0, %c0_i32 : i32, i32
  }
}

module attributes {stable_mosaic.version = 11 : i64} {
  func.func @_matmul_bias_act_kernel(%arg0: i32, %arg1: memref<88x256xbf16, #tpu.memory_space<vmem>>, %arg2: memref<256x128xbf16, #tpu.memory_space<vmem>>, %arg3: memref<1x128xf32, #tpu.memory_space<vmem>>, %arg4: memref<88x128xbf16, #tpu.memory_space<vmem>>) attributes {dimension_semantics = [#tpu.dimension_semantics<parallel>], iteration_bounds = array<i64: 2>, scalar_prefetch = 0 : i64, scratch_operands = 0 : i64, tpu.core_type = #tpu.core_type<tc>, window_params = [{transform_indices = @transform_0, window_bounds = array<i64: 88, 256>}, {pipeline_mode = #tpu.pipeline_mode<synchronous>, transform_indices = @transform_1, window_bounds = array<i64: 256, 128>}, {pipeline_mode = #tpu.pipeline_mode<synchronous>, transform_indices = @transform_2, window_bounds = array<i64: 1, 128>}, {transform_indices = @transform_3, window_bounds = array<i64: 88, 128>}]} {
    %c0 = arith.constant 0 : index
    %c0_0 = arith.constant 0 : index
    %0 = vector.load %arg1[%c0, %c0_0] : memref<88x256xbf16, #tpu.memory_space<vmem>>, vector<88x256xbf16>
    %c0_1 = arith.constant 0 : index
    %c0_2 = arith.constant 0 : index
    %1 = vector.load %arg2[%c0_1, %c0_2] : memref<256x128xbf16, #tpu.memory_space<vmem>>, vector<256x128xbf16>
    %cst = arith.constant dense<0.000000e+00> : vector<88x128xf32>
    %2 = tpu.matmul %0, %1, %cst {dimension_numbers = #tpu.dot_dimension_numbers<[1], [0], [0], [1], [0, 0, 1, 1], [], []>} : vector<88x256xbf16>, vector<256x128xbf16>, vector<88x128xf32> -> vector<88x128xf32>
    %c0_3 = arith.constant 0 : index
    %c0_4 = arith.constant 0 : index
    %3 = vector.load %arg3[%c0_3, %c0_4] : memref<1x128xf32, #tpu.memory_space<vmem>>, vector<1x128xf32>
    %4 = vector.broadcast %3 : vector<1x128xf32> to vector<88x128xf32>
    %5 = arith.addf %2, %4 : vector<88x128xf32>
    %cst_5 = arith.constant 0.000000e+00 : f32
    %6 = vector.broadcast %cst_5 : f32 to vector<88x128xf32>
    %7 = arith.maximumf %5, %6 : vector<88x128xf32>
    %8 = arith.truncf %7 : vector<88x128xf32> to vector<88x128xbf16>
    %c0_6 = arith.constant 0 : index
    %c0_7 = arith.constant 0 : index
    %9 = vector.load %arg4[%c0_6, %c0_7] : memref<88x128xbf16, #tpu.memory_space<vmem>>, vector<88x128xbf16>
    tpu.vector_store %arg4[%c0_6, %c0_7], %8 {strides = array<i32>} : memref<88x128xbf16, #tpu.memory_space<vmem>>, vector<88x128xbf16>,
    return
  }
  func.func @transform_0(%arg0: i32) -> (i32, i32) {
    %c0_i32 = arith.constant 0 : i32
    %c0_i32_0 = arith.constant 0 : i32
    return %arg0, %c0_i32 : i32, i32
  }
  func.func @transform_1(%arg0: i32) -> (i32, i32) {
    %c0_i32 = arith.constant 0 : i32
    %c0_i32_0 = arith.constant 0 : i32
    %c0_i32_1 = arith.constant 0 : i32
    return %c0_i32, %c0_i32_0 : i32, i32
  }
  func.func @transform_2(%arg0: i32) -> (i32, i32) {
    %c0_i32 = arith.constant 0 : i32
    %c0_i32_0 = arith.constant 0 : i32
    %c0_i32_1 = arith.constant 0 : i32
    return %c0_i32, %c0_i32_0 : i32, i32
  }
  func.func @transform_3(%arg0: i32) -> (i32, i32) {
    %c0_i32 = arith.constant 0 : i32
    %c0_i32_0 = arith.constant 0 : i32
    return %arg0, %c0_i32 : i32, i32
  }
}

module attributes {stable_mosaic.version = 11 : i64} {
  func.func @_matmul_bias_act_kernel(%arg0: i32, %arg1: memref<256x128xbf16, #tpu.memory_space<vmem>>, %arg2: memref<128x128xbf16, #tpu.memory_space<vmem>>, %arg3: memref<1x128xf32, #tpu.memory_space<vmem>>, %arg4: memref<256x128xbf16, #tpu.memory_space<vmem>>) attributes {dimension_semantics = [#tpu.dimension_semantics<parallel>], iteration_bounds = array<i64: 3>, scalar_prefetch = 0 : i64, scratch_operands = 0 : i64, tpu.core_type = #tpu.core_type<tc>, window_params = [{transform_indices = @transform_0, window_bounds = array<i64: 256, 128>}, {pipeline_mode = #tpu.pipeline_mode<synchronous>, transform_indices = @transform_1, window_bounds = array<i64: 128, 128>}, {pipeline_mode = #tpu.pipeline_mode<synchronous>, transform_indices = @transform_2, window_bounds = array<i64: 1, 128>}, {transform_indices = @transform_3, window_bounds = array<i64: 256, 128>}]} {
    %c0 = arith.constant 0 : index
    %c0_0 = arith.constant 0 : index
    %0 = vector.load %arg1[%c0, %c0_0] : memref<256x128xbf16, #tpu.memory_space<vmem>>, vector<256x128xbf16>
    %c0_1 = arith.constant 0 : index
    %c0_2 = arith.constant 0 : index
    %1 = vector.load %arg2[%c0_1, %c0_2] : memref<128x128xbf16, #tpu.memory_space<vmem>>, vector<128x128xbf16>
    %cst = arith.constant dense<0.000000e+00> : vector<256x128xf32>
    %2 = tpu.matmul %0, %1, %cst {dimension_numbers = #tpu.dot_dimension_numbers<[1], [0], [0], [1], [0, 0, 1, 1], [], []>} : vector<256x128xbf16>, vector<128x128xbf16>, vector<256x128xf32> -> vector<256x128xf32>
    %c0_3 = arith.constant 0 : index
    %c0_4 = arith.constant 0 : index
    %3 = vector.load %arg3[%c0_3, %c0_4] : memref<1x128xf32, #tpu.memory_space<vmem>>, vector<1x128xf32>
    %4 = vector.broadcast %3 : vector<1x128xf32> to vector<256x128xf32>
    %5 = arith.addf %2, %4 : vector<256x128xf32>
    %cst_5 = arith.constant 0.000000e+00 : f32
    %6 = vector.broadcast %cst_5 : f32 to vector<256x128xf32>
    %7 = arith.maximumf %5, %6 : vector<256x128xf32>
    %8 = arith.truncf %7 : vector<256x128xf32> to vector<256x128xbf16>
    %c0_6 = arith.constant 0 : index
    %c0_7 = arith.constant 0 : index
    %9 = vector.load %arg4[%c0_6, %c0_7] : memref<256x128xbf16, #tpu.memory_space<vmem>>, vector<256x128xbf16>
    tpu.vector_store %arg4[%c0_6, %c0_7], %8 {strides = array<i32>} : memref<256x128xbf16, #tpu.memory_space<vmem>>, vector<256x128xbf16>,
    return
  }
  func.func @transform_0(%arg0: i32) -> (i32, i32) {
    %c0_i32 = arith.constant 0 : i32
    %c0_i32_0 = arith.constant 0 : i32
    return %arg0, %c0_i32 : i32, i32
  }
  func.func @transform_1(%arg0: i32) -> (i32, i32) {
    %c0_i32 = arith.constant 0 : i32
    %c0_i32_0 = arith.constant 0 : i32
    %c0_i32_1 = arith.constant 0 : i32
    return %c0_i32, %c0_i32_0 : i32, i32
  }
  func.func @transform_2(%arg0: i32) -> (i32, i32) {
    %c0_i32 = arith.constant 0 : i32
    %c0_i32_0 = arith.constant 0 : i32
    %c0_i32_1 = arith.constant 0 : i32
    return %c0_i32, %c0_i32_0 : i32, i32
  }
  func.func @transform_3(%arg0: i32) -> (i32, i32) {
    %c0_i32 = arith.constant 0 : i32
    %c0_i32_0 = arith.constant 0 : i32
    return %arg0, %c0_i32 : i32, i32
  }
}

module attributes {stable_mosaic.version = 11 : i64} {
  func.func @_matmul_bias_act_kernel(%arg0: i32, %arg1: memref<256x128xbf16, #tpu.memory_space<vmem>>, %arg2: memref<128x128xbf16, #tpu.memory_space<vmem>>, %arg3: memref<1x128xf32, #tpu.memory_space<vmem>>, %arg4: memref<256x128xbf16, #tpu.memory_space<vmem>>) attributes {dimension_semantics = [#tpu.dimension_semantics<parallel>], iteration_bounds = array<i64: 9>, scalar_prefetch = 0 : i64, scratch_operands = 0 : i64, tpu.core_type = #tpu.core_type<tc>, window_params = [{transform_indices = @transform_0, window_bounds = array<i64: 256, 128>}, {pipeline_mode = #tpu.pipeline_mode<synchronous>, transform_indices = @transform_1, window_bounds = array<i64: 128, 128>}, {pipeline_mode = #tpu.pipeline_mode<synchronous>, transform_indices = @transform_2, window_bounds = array<i64: 1, 128>}, {transform_indices = @transform_3, window_bounds = array<i64: 256, 128>}]} {
    %c0 = arith.constant 0 : index
    %c0_0 = arith.constant 0 : index
    %0 = vector.load %arg1[%c0, %c0_0] : memref<256x128xbf16, #tpu.memory_space<vmem>>, vector<256x128xbf16>
    %c0_1 = arith.constant 0 : index
    %c0_2 = arith.constant 0 : index
    %1 = vector.load %arg2[%c0_1, %c0_2] : memref<128x128xbf16, #tpu.memory_space<vmem>>, vector<128x128xbf16>
    %cst = arith.constant dense<0.000000e+00> : vector<256x128xf32>
    %2 = tpu.matmul %0, %1, %cst {dimension_numbers = #tpu.dot_dimension_numbers<[1], [0], [0], [1], [0, 0, 1, 1], [], []>} : vector<256x128xbf16>, vector<128x128xbf16>, vector<256x128xf32> -> vector<256x128xf32>
    %c0_3 = arith.constant 0 : index
    %c0_4 = arith.constant 0 : index
    %3 = vector.load %arg3[%c0_3, %c0_4] : memref<1x128xf32, #tpu.memory_space<vmem>>, vector<1x128xf32>
    %4 = vector.broadcast %3 : vector<1x128xf32> to vector<256x128xf32>
    %5 = arith.addf %2, %4 : vector<256x128xf32>
    %cst_5 = arith.constant 0.000000e+00 : f32
    %6 = vector.broadcast %cst_5 : f32 to vector<256x128xf32>
    %7 = arith.subf %6, %5 : vector<256x128xf32>
    %8 = math.exp %7 : vector<256x128xf32>
    %cst_6 = arith.constant 1.000000e+00 : f32
    %9 = vector.broadcast %cst_6 : f32 to vector<256x128xf32>
    %10 = arith.addf %9, %8 : vector<256x128xf32>
    %11 = tpu.reciprocal %10 {approx = true} : vector<256x128xf32> -> vector<256x128xf32>
    %cst_7 = arith.constant 1.000000e+00 : f32
    %12 = vector.broadcast %cst_7 : f32 to vector<256x128xf32>
    %13 = arith.minimumf %11, %12 : vector<256x128xf32>
    %14 = arith.truncf %13 : vector<256x128xf32> to vector<256x128xbf16>
    %c0_8 = arith.constant 0 : index
    %c0_9 = arith.constant 0 : index
    %15 = vector.load %arg4[%c0_8, %c0_9] : memref<256x128xbf16, #tpu.memory_space<vmem>>, vector<256x128xbf16>
    tpu.vector_store %arg4[%c0_8, %c0_9], %14 {strides = array<i32>} : memref<256x128xbf16, #tpu.memory_space<vmem>>, vector<256x128xbf16>,
    return
  }
  func.func @transform_0(%arg0: i32) -> (i32, i32) {
    %c0_i32 = arith.constant 0 : i32
    %c0_i32_0 = arith.constant 0 : i32
    return %arg0, %c0_i32 : i32, i32
  }
  func.func @transform_1(%arg0: i32) -> (i32, i32) {
    %c0_i32 = arith.constant 0 : i32
    %c0_i32_0 = arith.constant 0 : i32
    %c0_i32_1 = arith.constant 0 : i32
    return %c0_i32, %c0_i32_0 : i32, i32
  }
  func.func @transform_2(%arg0: i32) -> (i32, i32) {
    %c0_i32 = arith.constant 0 : i32
    %c0_i32_0 = arith.constant 0 : i32
    %c0_i32_1 = arith.constant 0 : i32
    return %c0_i32, %c0_i32_0 : i32, i32
  }
  func.func @transform_3(%arg0: i32) -> (i32, i32) {
    %c0_i32 = arith.constant 0 : i32
    %c0_i32_0 = arith.constant 0 : i32
    return %arg0, %c0_i32 : i32, i32
  }
}

</mosaic_0001>

<llo_original>
// kernel: image_decoder_forward.5
$region0: #{image_decoder_forward.5}
  #allocation0 [shape = 'u32[]', space=smem, size = 0x4, offset = 0x4, fixed_abs, tag = 'smem constant byte address 0x4 - core index']
  #allocation1 [shape = 'u32[144,128]{1,0:T(1,128)}', space=vmem, size = 0x12000, scoped, tag = 'internal scratch']
  %s0 = inlined_call_operand.vmem [shape: bf16[8,128], index: 0, kind: input, shape index: {}]
  %s1 = inlined_call_operand.hbm [shape: bf16[128,256], index: 1, kind: input, shape index: {}]
  %s2 = inlined_call_operand.hbm [shape: f32[1,256], index: 2, kind: input, shape index: {}]
  %s3 = inlined_call_operand.hbm [shape: bf16[256,1024], index: 3, kind: input, shape index: {}]
  %s4 = inlined_call_operand.hbm [shape: f32[1,1024], index: 4, kind: input, shape index: {}]
  %s5 = inlined_call_operand.vmem [shape: bf16[8,1024], index: 5, kind: output, shape index: {}]
  %s6 = sld [smem:[#allocation0]]
  $region46: #{image_decoder_forward.5} parent=0
    _
  %s8 = ssub.s32 1, %s6
  %s9 = scalar_select 0, %s8, %s6
  $region1: #{image_decoder_forward.5} parent=0
    #allocation2 [shape = 'u8[65536]{0}', space=vmem, size = 0x10000, scoped, tag = 'input window, operand 1, single buffered']
    #allocation3 [shape = 's32[1]{0}', space=sflag, size = 0x4, scoped, tag = 'scoped memory for image_decoder_forward.5']
    #allocation4 [shape = 'u8[1024]{0}', space=vmem, size = 0x400, scoped, tag = 'input window, operand 2, single buffered']
    #allocation5 [shape = 's32[1]{0}', space=sflag, size = 0x4, scoped, tag = 'scoped memory for image_decoder_forward.5']
    #allocation6 [shape = 'u8[524288]{0}', space=vmem, size = 0x80000, scoped, tag = 'input window, operand 3, single buffered']
    #allocation7 [shape = 'u8[4096]{0}', space=vmem, size = 0x1000, scoped, tag = 'input window, operand 4, single buffered']
    #allocation8 [shape = 's32[1]{0}', space=sflag, size = 0x4, scoped, tag = 'scoped memory for image_decoder_forward.5']
    %10 = vsyncpa [#allocation3], 0
    %11 = vsyncpa [#allocation5], 0
    %12 = vsyncpa [#allocation8], 0
    // Predicated region
    $region2: #{image_decoder_forward.5} parent=1 // pred_check
      _
    $region3: #{image_decoder_forward.5} parent=1 // pred_check_branch
      %14 = sbr.rel (0) target = $region5
    $region4: #{image_decoder_forward.5} parent=1 // pred_region
      _
    $region5: #{image_decoder_forward.5} parent=1 // pred_fallthru
      _
    // Predicated region
    $region6: #{image_decoder_forward.5} parent=1 // pred_check
      _
    $region7: #{image_decoder_forward.5} parent=1 // pred_check_branch
      %16 = sbr.rel (0) target = $region9
    $region8: #{image_decoder_forward.5} parent=1 // pred_region
      %s18 = ssub.s32 2048, 2048
      %19 = vsyncadd [#allocation3], %s18
      %s20 = sshll.u32 [#allocation2], 4
      %s21 = int_to_ptr.vmem [resolvable:$true] %s20
      %26 = dma.hbm_to_vmem [thread:$0]  %s1, 2048, %s21, [#allocation3], 128, 128, 8
    $region9: #{image_decoder_forward.5} parent=1 // pred_fallthru
      _
    // Predicated region
    $region10: #{image_decoder_forward.5} parent=1 // pred_check
      _
    $region11: #{image_decoder_forward.5} parent=1 // pred_check_branch
      %28 = sbr.rel (0) target = $region13
    $region12: #{image_decoder_forward.5} parent=1 // pred_region
      %s30 = ssub.s32 32, 32
      %31 = vsyncadd [#allocation5], %s30
      %s33 = sshll.u32 [#allocation4], 4
      %s34 = int_to_ptr.vmem [resolvable:$true] %s33
      %36 = dma.hbm_to_vmem [thread:$0]  %s2, 32, %s34, [#allocation5]
    $region13: #{image_decoder_forward.5} parent=1 // pred_fallthru
      _
    // Predicated region
    $region14: #{image_decoder_forward.5} parent=1 // pred_check
      _
    $region15: #{image_decoder_forward.5} parent=1 // pred_check_branch
      %38 = sbr.rel (0) target = $region17
    $region16: #{image_decoder_forward.5} parent=1 // pred_region
      %s40 = ssub.s32 16384, 16384
      %41 = vsyncadd [#allocation5], %s40
      %s42 = sshll.u32 [#allocation6], 4
      %s43 = int_to_ptr.vmem [resolvable:$true] %s42
      %48 = dma.hbm_to_vmem [thread:$0]  %s3, 16384, %s43, [#allocation5], 512, 512, 32
    $region17: #{image_decoder_forward.5} parent=1 // pred_fallthru
      _
    // Predicated region
    $region18: #{image_decoder_forward.5} parent=1 // pred_check
      _
    $region19: #{image_decoder_forward.5} parent=1 // pred_check_branch
      %50 = sbr.rel (0) target = $region21
    $region20: #{image_decoder_forward.5} parent=1 // pred_region
      %s52 = ssub.s32 128, 128
      %53 = vsyncadd [#allocation8], %s52
      %s55 = sshll.u32 [#allocation7], 4
      %s56 = int_to_ptr.vmem [resolvable:$true] %s55
      %58 = dma.hbm_to_vmem [thread:$0]  %s4, 128, %s56, [#allocation8]
    $region21: #{image_decoder_forward.5} parent=1 // pred_fallthru
      _
    // Predicated region
    $region22: #{image_decoder_forward.5} parent=1 // pred_check
      _
    $region23: #{image_decoder_forward.5} parent=1 // pred_check_branch
      %60 = sbr.rel (0) target = $region25
    $region24: #{image_decoder_forward.5} parent=1 // pred_region
      %61 = dma.done [#allocation3], 2048
    $region25: #{image_decoder_forward.5} parent=1 // pred_fallthru
      _
    // Predicated region
    $region26: #{image_decoder_forward.5} parent=1 // pred_check
      _
    $region27: #{image_decoder_forward.5} parent=1 // pred_check_branch
      %63 = sbr.rel (0) target = $region29
    $region28: #{image_decoder_forward.5} parent=1 // pred_region
      %64 = dma.done [#allocation5], 32
    $region29: #{image_decoder_forward.5} parent=1 // pred_fallthru
      _
    // Predicated region
    $region30: #{image_decoder_forward.5} parent=1 // pred_check
      _
    $region31: #{image_decoder_forward.5} parent=1 // pred_check_branch
      %66 = sbr.rel (0) target = $region33
    $region32: #{image_decoder_forward.5} parent=1 // pred_region
      %67 = dma.done [#allocation5], 16384
    $region33: #{image_decoder_forward.5} parent=1 // pred_fallthru
      _
    // Predicated region
    $region34: #{image_decoder_forward.5} parent=1 // pred_check
      _
    $region35: #{image_decoder_forward.5} parent=1 // pred_check_branch
      %69 = sbr.rel (0) target = $region37
    $region36: #{image_decoder_forward.5} parent=1 // pred_region
      %70 = dma.done [#allocation8], 128
    $region37: #{image_decoder_forward.5} parent=1 // pred_fallthru
      _
    %v72 = vld [vmem:[%s0] sm:$0xf]
    %v73 = vld [vmem:[#allocation2] sm:$0xff]
    %v74 = vld [vmem:[#allocation2 + $0x8] sm:$0xff]
    %v75 = vld [vmem:[#allocation2 + $0x10] sm:$0xff]
    %v76 = vld [vmem:[#allocation2 + $0x18] sm:$0xff]
    %v77 = vld [vmem:[#allocation2 + $0x20] sm:$0xff]
    %v78 = vld [vmem:[#allocation2 + $0x28] sm:$0xff]
    %v79 = vld [vmem:[#allocation2 + $0x30] sm:$0xff]
    %v80 = vld [vmem:[#allocation2 + $0x38] sm:$0xff]
    %v81 = vld [vmem:[#allocation2 + $0x40] sm:$0xff]
    %v82 = vld [vmem:[#allocation2 + $0x48] sm:$0xff]
    %v83 = vld [vmem:[#allocation2 + $0x50] sm:$0xff]
    %v84 = vld [vmem:[#allocation2 + $0x58] sm:$0xff]
    %v85 = vld [vmem:[#allocation2 + $0x60] sm:$0xff]
    %v86 = vld [vmem:[#allocation2 + $0x68] sm:$0xff]
    %v87 = vld [vmem:[#allocation2 + $0x70] sm:$0xff]
    %v88 = vld [vmem:[#allocation2 + $0x78] sm:$0xff]
    %v89 = vld [vmem:[#allocation4] sm:$0x3]
    %v91 = vlaneseq
    %v92 = vshrl.u32 %v91, 7
    %v93 = vsub.s32 0, %v92
    %v94 = vrot.slane %v89, %v93
    %v95 = vlaneseq
    %v96 = vshrl.u32 %v95, 7
    %v97 = vsub.s32 1, %v96
    %v98 = vrot.slane %v89, %v97
    %v117 = vunpack.c.l.b16 %v73
    %v118 = vunpack.c.h.b16 %v73
    %v119 = vunpack.c.l.b16 %v74
    %v120 = vunpack.c.h.b16 %v74
    %v121 = vunpack.c.l.b16 %v75
    %v122 = vunpack.c.h.b16 %v75
    %v123 = vunpack.c.l.b16 %v76
    %v124 = vunpack.c.h.b16 %v76
    %v125 = vunpack.c.l.b16 %v77
    %v126 = vunpack.c.h.b16 %v77
    %v127 = vunpack.c.l.b16 %v78
    %v128 = vunpack.c.h.b16 %v78
    %v129 = vunpack.c.l.b16 %v79
    %v130 = vunpack.c.h.b16 %v79
    %v131 = vunpack.c.l.b16 %v80
    %v132 = vunpack.c.h.b16 %v80
    %v133 = vunpack.c.l.b16 %v81
    %v134 = vunpack.c.h.b16 %v81
    %v135 = vunpack.c.l.b16 %v82
    %v136 = vunpack.c.h.b16 %v82
    %v137 = vunpack.c.l.b16 %v83
    %v138 = vunpack.c.h.b16 %v83
    %v139 = vunpack.c.l.b16 %v84
    %v140 = vunpack.c.h.b16 %v84
    %v141 = vunpack.c.l.b16 %v85
    %v142 = vunpack.c.h.b16 %v85
    %v143 = vunpack.c.l.b16 %v86
    %v144 = vunpack.c.h.b16 %v86
    %v145 = vunpack.c.l.b16 %v87
    %v146 = vunpack.c.h.b16 %v87
    %v147 = vunpack.c.l.b16 %v88
    %v148 = vunpack.c.h.b16 %v88
    %v149 = vpack.c.b16 %v119, %v117
    %v150 = vpack.c.b16 %v120, %v118
    %v151 = vpack.c.b16 %v123, %v121
    %v152 = vpack.c.b16 %v124, %v122
    %v153 = vpack.c.b16 %v127, %v125
    %v154 = vpack.c.b16 %v128, %v126
    %v155 = vpack.c.b16 %v131, %v129
    %v156 = vpack.c.b16 %v132, %v130
    %v157 = vpack.c.b16 %v135, %v133
    %v158 = vpack.c.b16 %v136, %v134
    %v159 = vpack.c.b16 %v139, %v137
    %v160 = vpack.c.b16 %v140, %v138
    %v161 = vpack.c.b16 %v143, %v141
    %v162 = vpack.c.b16 %v144, %v142
    %v163 = vpack.c.b16 %v147, %v145
    %v164 = vpack.c.b16 %v148, %v146
    %181 = vmatprep.subr.bf16.mxu0 %v164
    %182 = vmatpush1.bf16.msra.mxu0 %v163
    %183 = vmatprep.subr.bf16.mxu0 %v162
    %184 = vmatpush1.bf16.msra.mxu0 %v161
    %185 = vmatprep.subr.bf16.mxu0 %v160
    %186 = vmatpush1.bf16.msra.mxu0 %v159
    %187 = vmatprep.subr.bf16.mxu0 %v158
    %188 = vmatpush1.bf16.msra.mxu0 %v157
    %189 = vmatprep.subr.bf16.mxu0 %v156
    %190 = vmatpush1.bf16.msra.mxu0 %v155
    %191 = vmatprep.subr.bf16.mxu0 %v154
    %192 = vmatpush1.bf16.msra.mxu0 %v153
    %193 = vmatprep.subr.bf16.mxu0 %v152
    %194 = vmatpush1.bf16.msra.mxu0 %v151
    %195 = vmatprep.subr.bf16.mxu0 %v150
    %196 = vmatpush1.bf16.msra.mxu0 %v149
    %197 = vmatprep.subr.bf16.mxu0 0
    %198 = vmatpush2.bf16.msra.mxu0 0
    %199 = vmatprep.subr.bf16.mxu0 0
    %200 = vmatpush2.bf16.msra.mxu0 0
    %201 = vmatprep.subr.bf16.mxu0 0
    %202 = vmatpush2.bf16.msra.mxu0 0
    %203 = vmatprep.subr.bf16.mxu0 0
    %204 = vmatpush2.bf16.msra.mxu0 0
    %205 = vmatprep.subr.bf16.mxu0 0
    %206 = vmatpush2.bf16.msra.mxu0 0
    %207 = vmatprep.subr.bf16.mxu0 0
    %208 = vmatpush2.bf16.msra.mxu0 0
    %209 = vmatprep.subr.bf16.mxu0 0
    %210 = vmatpush2.bf16.msra.mxu0 0
    %211 = vmatprep.subr.bf16.mxu0 0
    %212 = vmatpush2.bf16.msra.mxu0 0
    %213 = vmatprep.mubr.bf16.mxu0 0
    %214 = vmatmul.mubr.bf16.gmra.mxu0 %v72
    %v215 = vpop.f32.mrf.mxu0
    %v216 = vadd.f32 %v94, %v215
    %v217 = vpop.f32.mrf.mxu0
    %v218 = vadd.f32 %v98, %v217
    %v219 = vpop.f32.mrf.mxu0
    %v220 = vpop.f32.mrf.mxu0
    %221 = vdwg.mxu0
    %v222 = vmax.f32 %v216, 0.0
    %v223 = vmax.f32 %v218, 0.0
    %v224 = vpack.c.bf16 %v222, %v222
    %v225 = vpack.c.bf16 %v223, %v223
    %v226 = vld [vmem:[#allocation6] sm:$0xff]
    %v227 = vld [vmem:[#allocation6 + $0x8] sm:$0xff]
    %v228 = vld [vmem:[#allocation6 + $0x10] sm:$0xff]
    %v229 = vld [vmem:[#allocation6 + $0x18] sm:$0xff]
    %v230 = vld [vmem:[#allocation6 + $0x20] sm:$0xff]
    %v231 = vld [vmem:[#allocation6 + $0x28] sm:$0xff]
    %v232 = vld [vmem:[#allocation6 + $0x30] sm:$0xff]
    %v233 = vld [vmem:[#allocation6 + $0x38] sm:$0xff]
    %v234 = vld [vmem:[#allocation6 + $0x40] sm:$0xff]
    %v235 = vld [vmem:[#allocation6 + $0x48] sm:$0xff]
    %v236 = vld [vmem:[#allocation6 + $0x50] sm:$0xff]
    %v237 = vld [vmem:[#allocation6 + $0x58] sm:$0xff]
    %v238 = vld [vmem:[#allocation6 + $0x60] sm:$0xff]
    %v239 = vld [vmem:[#allocation6 + $0x68] sm:$0xff]
    %v240 = vld [vmem:[#allocation6 + $0x70] sm:$0xff]
    %v241 = vld [vmem:[#allocation6 + $0x78] sm:$0xff]
    %v242 = vld [vmem:[#allocation6 + $0x80] sm:$0xff]
    %v243 = vld [vmem:[#allocation6 + $0x88] sm:$0xff]
    %v244 = vld [vmem:[#allocation6 + $0x90] sm:$0xff]
    %v245 = vld [vmem:[#allocation6 + $0x98] sm:$0xff]
    %v246 = vld [vmem:[#allocation6 + $0xa0] sm:$0xff]
    %v247 = vld [vmem:[#allocation6 + $0xa8] sm:$0xff]
    %v248 = vld [vmem:[#allocation6 + $0xb0] sm:$0xff]
    %v249 = vld [vmem:[#allocation6 + $0xb8] sm:$0xff]
    %v250 = vld [vmem:[#allocation6 + $0xc0] sm:$0xff]
    %v251 = vld [vmem:[#allocation6 + $0xc8] sm:$0xff]
    %v252 = vld [vmem:[#allocation6 + $0xd0] sm:$0xff]
    %v253 = vld [vmem:[#allocation6 + $0xd8] sm:$0xff]
    %v254 = vld [vmem:[#allocation6 + $0xe0] sm:$0xff]
    %v255 = vld [vmem:[#allocation6 + $0xe8] sm:$0xff]
    %v256 = vld [vmem:[#allocation6 + $0xf0] sm:$0xff]
    %v257 = vld [vmem:[#allocation6 + $0xf8] sm:$0xff]
    %v258 = vld [vmem:[#allocation6 + $0x100] sm:$0xff]
    %v259 = vld [vmem:[#allocation6 + $0x108] sm:$0xff]
    %v260 = vld [vmem:[#allocation6 + $0x110] sm:$0xff]
    %v261 = vld [vmem:[#allocation6 + $0x118] sm:$0xff]
    %v262 = vld [vmem:[#allocation6 + $0x120] sm:$0xff]
    %v263 = vld [vmem:[#allocation6 + $0x128] sm:$0xff]
    %v264 = vld [vmem:[#allocation6 + $0x130] sm:$0xff]
    %v265 = vld [vmem:[#allocation6 + $0x138] sm:$0xff]
    %v266 = vld [vmem:[#allocation6 + $0x140] sm:$0xff]
    %v267 = vld [vmem:[#allocation6 + $0x148] sm:$0xff]
    %v268 = vld [vmem:[#allocation6 + $0x150] sm:$0xff]
    %v269 = vld [vmem:[#allocation6 + $0x158] sm:$0xff]
    %v270 = vld [vmem:[#allocation6 + $0x160] sm:$0xff]
    %v271 = vld [vmem:[#allocation6 + $0x168] sm:$0xff]
    %v272 = vld [vmem:[#allocation6 + $0x170] sm:$0xff]
    %v273 = vld [vmem:[#allocation6 + $0x178] sm:$0xff]
    %v274 = vld [vmem:[#allocation6 + $0x180] sm:$0xff]
    %v275 = vld [vmem:[#allocation6 + $0x188] sm:$0xff]
    %v276 = vld [vmem:[#allocation6 + $0x190] sm:$0xff]
    %v277 = vld [vmem:[#allocation6 + $0x198] sm:$0xff]
    %v278 = vld [vmem:[#allocation6 + $0x1a0] sm:$0xff]
    %v279 = vld [vmem:[#allocation6 + $0x1a8] sm:$0xff]
    %v280 = vld [vmem:[#allocation6 + $0x1b0] sm:$0xff]
    %v281 = vld [vmem:[#allocation6 + $0x1b8] sm:$0xff]
    %v282 = vld [vmem:[#allocation6 + $0x1c0] sm:$0xff]
    %v283 = vld [vmem:[#allocation6 + $0x1c8] sm:$0xff]
    %v284 = vld [vmem:[#allocation6 + $0x1d0] sm:$0xff]
    %v285 = vld [vmem:[#allocation6 + $0x1d8] sm:$0xff]
    %v286 = vld [vmem:[#allocation6 + $0x1e0] sm:$0xff]
    %v287 = vld [vmem:[#allocation6 + $0x1e8] sm:$0xff]
    %v288 = vld [vmem:[#allocation6 + $0x1f0] sm:$0xff]
    %v289 = vld [vmem:[#allocation6 + $0x1f8] sm:$0xff]
    %v290 = vld [vmem:[#allocation6 + $0x200] sm:$0xff]
    %v291 = vld [vmem:[#allocation6 + $0x208] sm:$0xff]
    %v292 = vld [vmem:[#allocation6 + $0x210] sm:$0xff]
    %v293 = vld [vmem:[#allocation6 + $0x218] sm:$0xff]
    %v294 = vld [vmem:[#allocation6 + $0x220] sm:$0xff]
    %v295 = vld [vmem:[#allocation6 + $0x228] sm:$0xff]
    %v296 = vld [vmem:[#allocation6 + $0x230] sm:$0xff]
    %v297 = vld [vmem:[#allocation6 + $0x238] sm:$0xff]
    %v298 = vld [vmem:[#allocation6 + $0x240] sm:$0xff]
    %v299 = vld [vmem:[#allocation6 + $0x248] sm:$0xff]
    %v300 = vld [vmem:[#allocation6 + $0x250] sm:$0xff]
    %v301 = vld [vmem:[#allocation6 + $0x258] sm:$0xff]
    %v302 = vld [vmem:[#allocation6 + $0x260] sm:$0xff]
    %v303 = vld [vmem:[#allocation6 + $0x268] sm:$0xff]
    %v304 = vld [vmem:[#allocation6 + $0x270] sm:$0xff]
    %v305 = vld [vmem:[#allocation6 + $0x278] sm:$0xff]
    %v306 = vld [vmem:[#allocation6 + $0x280] sm:$0xff]
    %v307 = vld [vmem:[#allocation6 + $0x288] sm:$0xff]
    %v308 = vld [vmem:[#allocation6 + $0x290] sm:$0xff]
    %v309 = vld [vmem:[#allocation6 + $0x298] sm:$0xff]
    %v310 = vld [vmem:[#allocation6 + $0x2a0] sm:$0xff]
    %v311 = vld [vmem:[#allocation6 + $0x2a8] sm:$0xff]
    %v312 = vld [vmem:[#allocation6 + $0x2b0] sm:$0xff]
    %v313 = vld [vmem:[#allocation6 + $0x2b8] sm:$0xff]
    %v314 = vld [vmem:[#allocation6 + $0x2c0] sm:$0xff]
    %v315 = vld [vmem:[#allocation6 + $0x2c8] sm:$0xff]
    %v316 = vld [vmem:[#allocation6 + $0x2d0] sm:$0xff]
    %v317 = vld [vmem:[#allocation6 + $0x2d8] sm:$0xff]
    %v318 = vld [vmem:[#allocation6 + $0x2e0] sm:$0xff]
    %v319 = vld [vmem:[#allocation6 + $0x2e8] sm:$0xff]
    %v320 = vld [vmem:[#allocation6 + $0x2f0] sm:$0xff]
    %v321 = vld [vmem:[#allocation6 + $0x2f8] sm:$0xff]
    %v322 = vld [vmem:[#allocation6 + $0x300] sm:$0xff]
    %v323 = vld [vmem:[#allocation6 + $0x308] sm:$0xff]
    %v324 = vld [vmem:[#allocation6 + $0x310] sm:$0xff]
    %v325 = vld [vmem:[#allocation6 + $0x318] sm:$0xff]
    %v326 = vld [vmem:[#allocation6 + $0x320] sm:$0xff]
    %v327 = vld [vmem:[#allocation6 + $0x328] sm:$0xff]
    %v328 = vld [vmem:[#allocation6 + $0x330] sm:$0xff]
    %v329 = vld [vmem:[#allocation6 + $0x338] sm:$0xff]
    %v330 = vld [vmem:[#allocation6 + $0x340] sm:$0xff]
    %v331 = vld [vmem:[#allocation6 + $0x348] sm:$0xff]
    %v332 = vld [vmem:[#allocation6 + $0x350] sm:$0xff]
    %v333 = vld [vmem:[#allocation6 + $0x358] sm:$0xff]
    %v334 = vld [vmem:[#allocation6 + $0x360] sm:$0xff]
    %v335 = vld [vmem:[#allocation6 + $0x368] sm:$0xff]
    %v336 = vld [vmem:[#allocation6 + $0x370] sm:$0xff]
    %v337 = vld [vmem:[#allocation6 + $0x378] sm:$0xff]
    %v338 = vld [vmem:[#allocation6 + $0x380] sm:$0xff]
    %v339 = vld [vmem:[#allocation6 + $0x388] sm:$0xff]
    %v340 = vld [vmem:[#allocation6 + $0x390] sm:$0xff]
    %v341 = vld [vmem:[#allocation6 + $0x398] sm:$0xff]
    %v342 = vld [vmem:[#allocation6 + $0x3a0] sm:$0xff]
    %v343 = vld [vmem:[#allocation6 + $0x3a8] sm:$0xff]
    %v344 = vld [vmem:[#allocation6 + $0x3b0] sm:$0xff]
    %v345 = vld [vmem:[#allocation6 + $0x3b8] sm:$0xff]
    %v346 = vld [vmem:[#allocation6 + $0x3c0] sm:$0xff]
    %v347 = vld [vmem:[#allocation6 + $0x3c8] sm:$0xff]
    %v348 = vld [vmem:[#allocation6 + $0x3d0] sm:$0xff]
    %v349 = vld [vmem:[#allocation6 + $0x3d8] sm:$0xff]
    %v350 = vld [vmem:[#allocation6 + $0x3e0] sm:$0xff]
    %v351 = vld [vmem:[#allocation6 + $0x3e8] sm:$0xff]
    %v352 = vld [vmem:[#allocation6 + $0x3f0] sm:$0xff]
    %v353 = vld [vmem:[#allocation6 + $0x3f8] sm:$0xff]
    %v354 = vld [vmem:[#allocation7] sm:$0xff]
    %v356 = vlaneseq
    %v357 = vshrl.u32 %v356, 7
    %v358 = vsub.s32 0, %v357
    %v359 = vrot.slane %v354, %v358
    %v360 = vlaneseq
    %v361 = vshrl.u32 %v360, 7
    %v362 = vsub.s32 1, %v361
    %v363 = vrot.slane %v354, %v362
    %v364 = vlaneseq
    %v365 = vshrl.u32 %v364, 7
    %v366 = vsub.s32 2, %v365
    %v367 = vrot.slane %v354, %v366
    %v368 = vlaneseq
    %v369 = vshrl.u32 %v368, 7
    %v370 = vsub.s32 3, %v369
    %v371 = vrot.slane %v354, %v370
    %v372 = vlaneseq
    %v373 = vshrl.u32 %v372, 7
    %v374 = vsub.s32 4, %v373
    %v375 = vrot.slane %v354, %v374
    %v376 = vlaneseq
    %v377 = vshrl.u32 %v376, 7
    %v378 = vsub.s32 5, %v377
    %v379 = vrot.slane %v354, %v378
    %v380 = vlaneseq
    %v381 = vshrl.u32 %v380, 7
    %v382 = vsub.s32 6, %v381
    %v383 = vrot.slane %v354, %v382
    %v384 = vlaneseq
    %v385 = vshrl.u32 %v384, 7
    %v386 = vsub.s32 7, %v385
    %v387 = vrot.slane %v354, %v386
    %v524 = vunpack.c.l.b16 %v226
    %v525 = vunpack.c.h.b16 %v226
    %v526 = vunpack.c.l.b16 %v227
    %v527 = vunpack.c.h.b16 %v227
    %v528 = vunpack.c.l.b16 %v228
    %v529 = vunpack.c.h.b16 %v228
    %v530 = vunpack.c.l.b16 %v229
    %v531 = vunpack.c.h.b16 %v229
    %v532 = vunpack.c.l.b16 %v230
    %v533 = vunpack.c.h.b16 %v230
    %v534 = vunpack.c.l.b16 %v231
    %v535 = vunpack.c.h.b16 %v231
    %v536 = vunpack.c.l.b16 %v232
    %v537 = vunpack.c.h.b16 %v232
    %v538 = vunpack.c.l.b16 %v233
    %v539 = vunpack.c.h.b16 %v233
    %v540 = vunpack.c.l.b16 %v234
    %v541 = vunpack.c.h.b16 %v234
    %v542 = vunpack.c.l.b16 %v235
    %v543 = vunpack.c.h.b16 %v235
    %v544 = vunpack.c.l.b16 %v236
    %v545 = vunpack.c.h.b16 %v236
    %v546 = vunpack.c.l.b16 %v237
    %v547 = vunpack.c.h.b16 %v237
    %v548 = vunpack.c.l.b16 %v238
    %v549 = vunpack.c.h.b16 %v238
    %v550 = vunpack.c.l.b16 %v239
    %v551 = vunpack.c.h.b16 %v239
    %v552 = vunpack.c.l.b16 %v240
    %v553 = vunpack.c.h.b16 %v240
    %v554 = vunpack.c.l.b16 %v241
    %v555 = vunpack.c.h.b16 %v241
    %v556 = vunpack.c.l.b16 %v242
    %v557 = vunpack.c.h.b16 %v242
    %v558 = vunpack.c.l.b16 %v243
    %v559 = vunpack.c.h.b16 %v243
    %v560 = vunpack.c.l.b16 %v244
    %v561 = vunpack.c.h.b16 %v244
    %v562 = vunpack.c.l.b16 %v245
    %v563 = vunpack.c.h.b16 %v245
    %v564 = vunpack.c.l.b16 %v246
    %v565 = vunpack.c.h.b16 %v246
    %v566 = vunpack.c.l.b16 %v247
    %v567 = vunpack.c.h.b16 %v247
    %v568 = vunpack.c.l.b16 %v248
    %v569 = vunpack.c.h.b16 %v248
    %v570 = vunpack.c.l.b16 %v249
    %v571 = vunpack.c.h.b16 %v249
    %v572 = vunpack.c.l.b16 %v250
    %v573 = vunpack.c.h.b16 %v250
    %v574 = vunpack.c.l.b16 %v251
    %v575 = vunpack.c.h.b16 %v251
    %v576 = vunpack.c.l.b16 %v252
    %v577 = vunpack.c.h.b16 %v252
    %v578 = vunpack.c.l.b16 %v253
    %v579 = vunpack.c.h.b16 %v253
    %v580 = vunpack.c.l.b16 %v254
    %v581 = vunpack.c.h.b16 %v254
    %v582 = vunpack.c.l.b16 %v255
    %v583 = vunpack.c.h.b16 %v255
    %v584 = vunpack.c.l.b16 %v256
    %v585 = vunpack.c.h.b16 %v256
    %v586 = vunpack.c.l.b16 %v257
    %v587 = vunpack.c.h.b16 %v257
    %v588 = vunpack.c.l.b16 %v258
    %v589 = vunpack.c.h.b16 %v258
    %v590 = vunpack.c.l.b16 %v259
    %v591 = vunpack.c.h.b16 %v259
    %v592 = vunpack.c.l.b16 %v260
    %v593 = vunpack.c.h.b16 %v260
    %v594 = vunpack.c.l.b16 %v261
    %v595 = vunpack.c.h.b16 %v261
    %v596 = vunpack.c.l.b16 %v262
    %v597 = vunpack.c.h.b16 %v262
    %v598 = vunpack.c.l.b16 %v263
    %v599 = vunpack.c.h.b16 %v263
    %v600 = vunpack.c.l.b16 %v264
    %v601 = vunpack.c.h.b16 %v264
    %v602 = vunpack.c.l.b16 %v265
    %v603 = vunpack.c.h.b16 %v265
    %v604 = vunpack.c.l.b16 %v266
    %v605 = vunpack.c.h.b16 %v266
    %v606 = vunpack.c.l.b16 %v267
    %v607 = vunpack.c.h.b16 %v267
    %v608 = vunpack.c.l.b16 %v268
    %v609 = vunpack.c.h.b16 %v268
    %v610 = vunpack.c.l.b16 %v269
    %v611 = vunpack.c.h.b16 %v269
    %v612 = vunpack.c.l.b16 %v270
    %v613 = vunpack.c.h.b16 %v270
    %v614 = vunpack.c.l.b16 %v271
    %v615 = vunpack.c.h.b16 %v271
    %v616 = vunpack.c.l.b16 %v272
    %v617 = vunpack.c.h.b16 %v272
    %v618 = vunpack.c.l.b16 %v273
    %v619 = vunpack.c.h.b16 %v273
    %v620 = vunpack.c.l.b16 %v274
    %v621 = vunpack.c.h.b16 %v274
    %v622 = vunpack.c.l.b16 %v275
    %v623 = vunpack.c.h.b16 %v275
    %v624 = vunpack.c.l.b16 %v276
    %v625 = vunpack.c.h.b16 %v276
    %v626 = vunpack.c.l.b16 %v277
    %v627 = vunpack.c.h.b16 %v277
    %v628 = vunpack.c.l.b16 %v278
    %v629 = vunpack.c.h.b16 %v278
    %v630 = vunpack.c.l.b16 %v279
    %v631 = vunpack.c.h.b16 %v279
    %v632 = vunpack.c.l.b16 %v280
    %v633 = vunpack.c.h.b16 %v280
    %v634 = vunpack.c.l.b16 %v281
    %v635 = vunpack.c.h.b16 %v281
    %v636 = vunpack.c.l.b16 %v282
    %v637 = vunpack.c.h.b16 %v282
    %v638 = vunpack.c.l.b16 %v283
    %v639 = vunpack.c.h.b16 %v283
    %v640 = vunpack.c.l.b16 %v284
    %v641 = vunpack.c.h.b16 %v284
    %v642 = vunpack.c.l.b16 %v285
    %v643 = vunpack.c.h.b16 %v285
    %v644 = vunpack.c.l.b16 %v286
    %v645 = vunpack.c.h.b16 %v286
    %v646 = vunpack.c.l.b16 %v287
    %v647 = vunpack.c.h.b16 %v287
    %v648 = vunpack.c.l.b16 %v288
    %v649 = vunpack.c.h.b16 %v288
    %v650 = vunpack.c.l.b16 %v289
    %v651 = vunpack.c.h.b16 %v289
    %v652 = vunpack.c.l.b16 %v290
    %v653 = vunpack.c.h.b16 %v290
    %v654 = vunpack.c.l.b16 %v291
    %v655 = vunpack.c.h.b16 %v291
    %v656 = vunpack.c.l.b16 %v292
    %v657 = vunpack.c.h.b16 %v292
    %v658 = vunpack.c.l.b16 %v293
    %v659 = vunpack.c.h.b16 %v293
    %v660 = vunpack.c.l.b16 %v294
    %v661 = vunpack.c.h.b16 %v294
    %v662 = vunpack.c.l.b16 %v295
    %v663 = vunpack.c.h.b16 %v295
    %v664 = vunpack.c.l.b16 %v296
    %v665 = vunpack.c.h.b16 %v296
    %v666 = vunpack.c.l.b16 %v297
    %v667 = vunpack.c.h.b16 %v297
    %v668 = vunpack.c.l.b16 %v298
    %v669 = vunpack.c.h.b16 %v298
    %v670 = vunpack.c.l.b16 %v299
    %v671 = vunpack.c.h.b16 %v299
    %v672 = vunpack.c.l.b16 %v300
    %v673 = vunpack.c.h.b16 %v300
    %v674 = vunpack.c.l.b16 %v301
    %v675 = vunpack.c.h.b16 %v301
    %v676 = vunpack.c.l.b16 %v302
    %v677 = vunpack.c.h.b16 %v302
    %v678 = vunpack.c.l.b16 %v303
    %v679 = vunpack.c.h.b16 %v303
    %v680 = vunpack.c.l.b16 %v304
    %v681 = vunpack.c.h.b16 %v304
    %v682 = vunpack.c.l.b16 %v305
    %v683 = vunpack.c.h.b16 %v305
    %v684 = vunpack.c.l.b16 %v306
    %v685 = vunpack.c.h.b16 %v306
    %v686 = vunpack.c.l.b16 %v307
    %v687 = vunpack.c.h.b16 %v307
    %v688 = vunpack.c.l.b16 %v308
    %v689 = vunpack.c.h.b16 %v308
    %v690 = vunpack.c.l.b16 %v309
    %v691 = vunpack.c.h.b16 %v309
    %v692 = vunpack.c.l.b16 %v310
    %v693 = vunpack.c.h.b16 %v310
    %v694 = vunpack.c.l.b16 %v311
    %v695 = vunpack.c.h.b16 %v311
    %v696 = vunpack.c.l.b16 %v312
    %v697 = vunpack.c.h.b16 %v312
    %v698 = vunpack.c.l.b16 %v313
    %v699 = vunpack.c.h.b16 %v313
    %v700 = vunpack.c.l.b16 %v314
    %v701 = vunpack.c.h.b16 %v314
    %v702 = vunpack.c.l.b16 %v315
    %v703 = vunpack.c.h.b16 %v315
    %v704 = vunpack.c.l.b16 %v316
    %v705 = vunpack.c.h.b16 %v316
    %v706 = vunpack.c.l.b16 %v317
    %v707 = vunpack.c.h.b16 %v317
    %v708 = vunpack.c.l.b16 %v318
    %v709 = vunpack.c.h.b16 %v318
    %v710 = vunpack.c.l.b16 %v319
    %v711 = vunpack.c.h.b16 %v319
    %v712 = vunpack.c.l.b16 %v320
    %v713 = vunpack.c.h.b16 %v320
    %v714 = vunpack.c.l.b16 %v321
    %v715 = vunpack.c.h.b16 %v321
    %v716 = vunpack.c.l.b16 %v322
    %v717 = vunpack.c.h.b16 %v322
    %v718 = vunpack.c.l.b16 %v323
    %v719 = vunpack.c.h.b16 %v323
    %v720 = vunpack.c.l.b16 %v324
    %v721 = vunpack.c.h.b16 %v324
    %v722 = vunpack.c.l.b16 %v325
    %v723 = vunpack.c.h.b16 %v325
    %v724 = vunpack.c.l.b16 %v326
    %v725 = vunpack.c.h.b16 %v326
    %v726 = vunpack.c.l.b16 %v327
    %v727 = vunpack.c.h.b16 %v327
    %v728 = vunpack.c.l.b16 %v328
    %v729 = vunpack.c.h.b16 %v328
    %v730 = vunpack.c.l.b16 %v329
    %v731 = vunpack.c.h.b16 %v329
    %v732 = vunpack.c.l.b16 %v330
    %v733 = vunpack.c.h.b16 %v330
    %v734 = vunpack.c.l.b16 %v331
    %v735 = vunpack.c.h.b16 %v331
    %v736 = vunpack.c.l.b16 %v332
    %v737 = vunpack.c.h.b16 %v332
    %v738 = vunpack.c.l.b16 %v333
    %v739 = vunpack.c.h.b16 %v333
    %v740 = vunpack.c.l.b16 %v334
    %v741 = vunpack.c.h.b16 %v334
    %v742 = vunpack.c.l.b16 %v335
    %v743 = vunpack.c.h.b16 %v335
    %v744 = vunpack.c.l.b16 %v336
    %v745 = vunpack.c.h.b16 %v336
    %v746 = vunpack.c.l.b16 %v337
    %v747 = vunpack.c.h.b16 %v337
    %v748 = vunpack.c.l.b16 %v338
    %v749 = vunpack.c.h.b16 %v338
    %v750 = vunpack.c.l.b16 %v339
    %v751 = vunpack.c.h.b16 %v339
    %v752 = vunpack.c.l.b16 %v340
    %v753 = vunpack.c.h.b16 %v340
    %v754 = vunpack.c.l.b16 %v341
    %v755 = vunpack.c.h.b16 %v341
    %v756 = vunpack.c.l.b16 %v342
    %v757 = vunpack.c.h.b16 %v342
    %v758 = vunpack.c.l.b16 %v343
    %v759 = vunpack.c.h.b16 %v343
    %v760 = vunpack.c.l.b16 %v344
    %v761 = vunpack.c.h.b16 %v344
    %v762 = vunpack.c.l.b16 %v345
    %v763 = vunpack.c.h.b16 %v345
    %v764 = vunpack.c.l.b16 %v346
    %v765 = vunpack.c.h.b16 %v346
    %v766 = vunpack.c.l.b16 %v347
    %v767 = vunpack.c.h.b16 %v347
    %v768 = vunpack.c.l.b16 %v348
    %v769 = vunpack.c.h.b16 %v348
    %v770 = vunpack.c.l.b16 %v349
    %v771 = vunpack.c.h.b16 %v349
    %v772 = vunpack.c.l.b16 %v350
    %v773 = vunpack.c.h.b16 %v350
    %v774 = vunpack.c.l.b16 %v351
    %v775 = vunpack.c.h.b16 %v351
    %v776 = vunpack.c.l.b16 %v352
    %v777 = vunpack.c.h.b16 %v352
    %v778 = vunpack.c.l.b16 %v353
    %v779 = vunpack.c.h.b16 %v353
    %v780 = vpack.c.b16 %v532, %v524
    %v781 = vpack.c.b16 %v533, %v525
    %v782 = vpack.c.b16 %v534, %v526
    %v783 = vpack.c.b16 %v535, %v527
    %v784 = vpack.c.b16 %v536, %v528
    %v785 = vpack.c.b16 %v537, %v529
    %v786 = vpack.c.b16 %v538, %v530
    %v787 = vpack.c.b16 %v539, %v531
    %v788 = vpack.c.b16 %v548, %v540
    %v789 = vpack.c.b16 %v549, %v541
    %v790 = vpack.c.b16 %v550, %v542
    %v791 = vpack.c.b16 %v551, %v543
    %v792 = vpack.c.b16 %v552, %v544
    %v793 = vpack.c.b16 %v553, %v545
    %v794 = vpack.c.b16 %v554, %v546
    %v795 = vpack.c.b16 %v555, %v547
    %v796 = vpack.c.b16 %v564, %v556
    %v797 = vpack.c.b16 %v565, %v557
    %v798 = vpack.c.b16 %v566, %v558
    %v799 = vpack.c.b16 %v567, %v559
    %v800 = vpack.c.b16 %v568, %v560
    %v801 = vpack.c.b16 %v569, %v561
    %v802 = vpack.c.b16 %v570, %v562
    %v803 = vpack.c.b16 %v571, %v563
    %v804 = vpack.c.b16 %v580, %v572
    %v805 = vpack.c.b16 %v581, %v573
    %v806 = vpack.c.b16 %v582, %v574
    %v807 = vpack.c.b16 %v583, %v575
    %v808 = vpack.c.b16 %v584, %v576
    %v809 = vpack.c.b16 %v585, %v577
    %v810 = vpack.c.b16 %v586, %v578
    %v811 = vpack.c.b16 %v587, %v579
    %v812 = vpack.c.b16 %v596, %v588
    %v813 = vpack.c.b16 %v597, %v589
    %v814 = vpack.c.b16 %v598, %v590
    %v815 = vpack.c.b16 %v599, %v591
    %v816 = vpack.c.b16 %v600, %v592
    %v817 = vpack.c.b16 %v601, %v593
    %v818 = vpack.c.b16 %v602, %v594
    %v819 = vpack.c.b16 %v603, %v595
    %v820 = vpack.c.b16 %v612, %v604
    %v821 = vpack.c.b16 %v613, %v605
    %v822 = vpack.c.b16 %v614, %v606
    %v823 = vpack.c.b16 %v615, %v607
    %v824 = vpack.c.b16 %v616, %v608
    %v825 = vpack.c.b16 %v617, %v609
    %v826 = vpack.c.b16 %v618, %v610
    %v827 = vpack.c.b16 %v619, %v611
    %v828 = vpack.c.b16 %v628, %v620
    %v829 = vpack.c.b16 %v629, %v621
    %v830 = vpack.c.b16 %v630, %v622
    %v831 = vpack.c.b16 %v631, %v623
    %v832 = vpack.c.b16 %v632, %v624
    %v833 = vpack.c.b16 %v633, %v625
    %v834 = vpack.c.b16 %v634, %v626
    %v835 = vpack.c.b16 %v635, %v627
    %v836 = vpack.c.b16 %v644, %v636
    %v837 = vpack.c.b16 %v645, %v637
    %v838 = vpack.c.b16 %v646, %v638
    %v839 = vpack.c.b16 %v647, %v639
    %v840 = vpack.c.b16 %v648, %v640
    %v841 = vpack.c.b16 %v649, %v641
    %v842 = vpack.c.b16 %v650, %v642
    %v843 = vpack.c.b16 %v651, %v643
    %v844 = vpack.c.b16 %v660, %v652
    %v845 = vpack.c.b16 %v661, %v653
    %v846 = vpack.c.b16 %v662, %v654
    %v847 = vpack.c.b16 %v663, %v655
    %v848 = vpack.c.b16 %v664, %v656
    %v849 = vpack.c.b16 %v665, %v657
    %v850 = vpack.c.b16 %v666, %v658
    %v851 = vpack.c.b16 %v667, %v659
    %v852 = vpack.c.b16 %v676, %v668
    %v853 = vpack.c.b16 %v677, %v669
    %v854 = vpack.c.b16 %v678, %v670
    %v855 = vpack.c.b16 %v679, %v671
    %v856 = vpack.c.b16 %v680, %v672
    %v857 = vpack.c.b16 %v681, %v673
    %v858 = vpack.c.b16 %v682, %v674
    %v859 = vpack.c.b16 %v683, %v675
    %v860 = vpack.c.b16 %v692, %v684
    %v861 = vpack.c.b16 %v693, %v685
    %v862 = vpack.c.b16 %v694, %v686
    %v863 = vpack.c.b16 %v695, %v687
    %v864 = vpack.c.b16 %v696, %v688
    %v865 = vpack.c.b16 %v697, %v689
    %v866 = vpack.c.b16 %v698, %v690
    %v867 = vpack.c.b16 %v699, %v691
    %v868 = vpack.c.b16 %v708, %v700
    %v869 = vpack.c.b16 %v709, %v701
    %v870 = vpack.c.b16 %v710, %v702
    %v871 = vpack.c.b16 %v711, %v703
    %v872 = vpack.c.b16 %v712, %v704
    %v873 = vpack.c.b16 %v713, %v705
    %v874 = vpack.c.b16 %v714, %v706
    %v875 = vpack.c.b16 %v715, %v707
    %v876 = vpack.c.b16 %v724, %v716
    %v877 = vpack.c.b16 %v725, %v717
    %v878 = vpack.c.b16 %v726, %v718
    %v879 = vpack.c.b16 %v727, %v719
    %v880 = vpack.c.b16 %v728, %v720
    %v881 = vpack.c.b16 %v729, %v721
    %v882 = vpack.c.b16 %v730, %v722
    %v883 = vpack.c.b16 %v731, %v723
    %v884 = vpack.c.b16 %v740, %v732
    %v885 = vpack.c.b16 %v741, %v733
    %v886 = vpack.c.b16 %v742, %v734
    %v887 = vpack.c.b16 %v743, %v735
    %v888 = vpack.c.b16 %v744, %v736
    %v889 = vpack.c.b16 %v745, %v737
    %v890 = vpack.c.b16 %v746, %v738
    %v891 = vpack.c.b16 %v747, %v739
    %v892 = vpack.c.b16 %v756, %v748
    %v893 = vpack.c.b16 %v757, %v749
    %v894 = vpack.c.b16 %v758, %v750
    %v895 = vpack.c.b16 %v759, %v751
    %v896 = vpack.c.b16 %v760, %v752
    %v897 = vpack.c.b16 %v761, %v753
    %v898 = vpack.c.b16 %v762, %v754
    %v899 = vpack.c.b16 %v763, %v755
    %v900 = vpack.c.b16 %v772, %v764
    %v901 = vpack.c.b16 %v773, %v765
    %v902 = vpack.c.b16 %v774, %v766
    %v903 = vpack.c.b16 %v775, %v767
    %v904 = vpack.c.b16 %v776, %v768
    %v905 = vpack.c.b16 %v777, %v769
    %v906 = vpack.c.b16 %v778, %v770
    %v907 = vpack.c.b16 %v779, %v771
    %1036 = vmatprep.subr.bf16.mxu0 %v837
    %1037 = vmatpush1.bf16.msra.mxu0 %v836
    %1038 = vmatprep.subr.bf16.mxu0 %v829
    %1039 = vmatpush1.bf16.msra.mxu0 %v828
    %1040 = vmatprep.subr.bf16.mxu0 %v821
    %1041 = vmatpush1.bf16.msra.mxu0 %v820
    %1042 = vmatprep.subr.bf16.mxu0 %v813
    %1043 = vmatpush1.bf16.msra.mxu0 %v812
    %1044 = vmatprep.subr.bf16.mxu0 %v805
    %1045 = vmatpush1.bf16.msra.mxu0 %v804
    %1046 = vmatprep.subr.bf16.mxu0 %v797
    %1047 = vmatpush1.bf16.msra.mxu0 %v796
    %1048 = vmatprep.subr.bf16.mxu0 %v789
    %1049 = vmatpush1.bf16.msra.mxu0 %v788
    %1050 = vmatprep.subr.bf16.mxu0 %v781
    %1051 = vmatpush1.bf16.msra.mxu0 %v780
    %1052 = vmatprep.subr.bf16.mxu0 %v901
    %1053 = vmatpush2.bf16.msra.mxu0 %v900
    %1054 = vmatprep.subr.bf16.mxu0 %v893
    %1055 = vmatpush2.bf16.msra.mxu0 %v892
    %1056 = vmatprep.subr.bf16.mxu0 %v885
    %1057 = vmatpush2.bf16.msra.mxu0 %v884
    %1058 = vmatprep.subr.bf16.mxu0 %v877
    %1059 = vmatpush2.bf16.msra.mxu0 %v876
    %1060 = vmatprep.subr.bf16.mxu0 %v869
    %1061 = vmatpush2.bf16.msra.mxu0 %v868
    %1062 = vmatprep.subr.bf16.mxu0 %v861
    %1063 = vmatpush2.bf16.msra.mxu0 %v860
    %1064 = vmatprep.subr.bf16.mxu0 %v853
    %1065 = vmatpush2.bf16.msra.mxu0 %v852
    %1066 = vmatprep.subr.bf16.mxu0 %v845
    %1067 = vmatpush2.bf16.msra.mxu0 %v844
    %1068 = vmatprep.mubr.bf16.mxu0 %v225
    %1069 = vmatmul.mubr.bf16.gmra.mxu0 %v224
    %v1070 = vpop.f32.mrf.mxu0
    %v1071 = vadd.f32 %v359, %v1070
    %v1072 = vpop.f32.mrf.mxu0
    %v1073 = vadd.f32 %v363, %v1072
    %v1074 = vpop.f32.mrf.mxu0
    %v1075 = vpop.f32.mrf.mxu0
    %1076 = vdwg.mxu0
    %1077 = vmatprep.subr.bf16.mxu0 %v839
    %1078 = vmatpush1.bf16.msra.mxu0 %v838
    %1079 = vmatprep.subr.bf16.mxu0 %v831
    %1080 = vmatpush1.bf16.msra.mxu0 %v830
    %1081 = vmatprep.subr.bf16.mxu0 %v823
    %1082 = vmatpush1.bf16.msra.mxu0 %v822
    %1083 = vmatprep.subr.bf16.mxu0 %v815
    %1084 = vmatpush1.bf16.msra.mxu0 %v814
    %1085 = vmatprep.subr.bf16.mxu0 %v807
    %1086 = vmatpush1.bf16.msra.mxu0 %v806
    %1087 = vmatprep.subr.bf16.mxu0 %v799
    %1088 = vmatpush1.bf16.msra.mxu0 %v798
    %1089 = vmatprep.subr.bf16.mxu0 %v791
    %1090 = vmatpush1.bf16.msra.mxu0 %v790
    %1091 = vmatprep.subr.bf16.mxu0 %v783
    %1092 = vmatpush1.bf16.msra.mxu0 %v782
    %1093 = vmatprep.subr.bf16.mxu0 %v903
    %1094 = vmatpush2.bf16.msra.mxu0 %v902
    %1095 = vmatprep.subr.bf16.mxu0 %v895
    %1096 = vmatpush2.bf16.msra.mxu0 %v894
    %1097 = vmatprep.subr.bf16.mxu0 %v887
    %1098 = vmatpush2.bf16.msra.mxu0 %v886
    %1099 = vmatprep.subr.bf16.mxu0 %v879
    %1100 = vmatpush2.bf16.msra.mxu0 %v878
    %1101 = vmatprep.subr.bf16.mxu0 %v871
    %1102 = vmatpush2.bf16.msra.mxu0 %v870
    %1103 = vmatprep.subr.bf16.mxu0 %v863
    %1104 = vmatpush2.bf16.msra.mxu0 %v862
    %1105 = vmatprep.subr.bf16.mxu0 %v855
    %1106 = vmatpush2.bf16.msra.mxu0 %v854
    %1107 = vmatprep.subr.bf16.mxu0 %v847
    %1108 = vmatpush2.bf16.msra.mxu0 %v846
    %1109 = vmatprep.mubr.bf16.mxu0 %v225
    %1110 = vmatmul.mubr.bf16.gmra.mxu0 %v224
    %v1111 = vpop.f32.mrf.mxu0
    %v1112 = vadd.f32 %v367, %v1111
    %v1113 = vpop.f32.mrf.mxu0
    %v1114 = vadd.f32 %v371, %v1113
    %v1115 = vpop.f32.mrf.mxu0
    %v1116 = vpop.f32.mrf.mxu0
    %1117 = vdwg.mxu0
    %1118 = vmatprep.subr.bf16.mxu0 %v841
    %1119 = vmatpush1.bf16.msra.mxu0 %v840
    %1120 = vmatprep.subr.bf16.mxu0 %v833
    %1121 = vmatpush1.bf16.msra.mxu0 %v832
    %1122 = vmatprep.subr.bf16.mxu0 %v825
    %1123 = vmatpush1.bf16.msra.mxu0 %v824
    %1124 = vmatprep.subr.bf16.mxu0 %v817
    %1125 = vmatpush1.bf16.msra.mxu0 %v816
    %1126 = vmatprep.subr.bf16.mxu0 %v809
    %1127 = vmatpush1.bf16.msra.mxu0 %v808
    %1128 = vmatprep.subr.bf16.mxu0 %v801
    %1129 = vmatpush1.bf16.msra.mxu0 %v800
    %1130 = vmatprep.subr.bf16.mxu0 %v793
    %1131 = vmatpush1.bf16.msra.mxu0 %v792
    %1132 = vmatprep.subr.bf16.mxu0 %v785
    %1133 = vmatpush1.bf16.msra.mxu0 %v784
    %1134 = vmatprep.subr.bf16.mxu0 %v905
    %1135 = vmatpush2.bf16.msra.mxu0 %v904
    %1136 = vmatprep.subr.bf16.mxu0 %v897
    %1137 = vmatpush2.bf16.msra.mxu0 %v896
    %1138 = vmatprep.subr.bf16.mxu0 %v889
    %1139 = vmatpush2.bf16.msra.mxu0 %v888
    %1140 = vmatprep.subr.bf16.mxu0 %v881
    %1141 = vmatpush2.bf16.msra.mxu0 %v880
    %1142 = vmatprep.subr.bf16.mxu0 %v873
    %1143 = vmatpush2.bf16.msra.mxu0 %v872
    %1144 = vmatprep.subr.bf16.mxu0 %v865
    %1145 = vmatpush2.bf16.msra.mxu0 %v864
    %1146 = vmatprep.subr.bf16.mxu0 %v857
    %1147 = vmatpush2.bf16.msra.mxu0 %v856
    %1148 = vmatprep.subr.bf16.mxu0 %v849
    %1149 = vmatpush2.bf16.msra.mxu0 %v848
    %1150 = vmatprep.mubr.bf16.mxu0 %v225
    %1151 = vmatmul.mubr.bf16.gmra.mxu0 %v224
    %v1152 = vpop.f32.mrf.mxu0
    %v1153 = vadd.f32 %v375, %v1152
    %v1154 = vpop.f32.mrf.mxu0
    %v1155 = vadd.f32 %v379, %v1154
    %v1156 = vpop.f32.mrf.mxu0
    %v1157 = vpop.f32.mrf.mxu0
    %1158 = vdwg.mxu0
    %1159 = vmatprep.subr.bf16.mxu0 %v843
    %1160 = vmatpush1.bf16.msra.mxu0 %v842
    %1161 = vmatprep.subr.bf16.mxu0 %v835
    %1162 = vmatpush1.bf16.msra.mxu0 %v834
    %1163 = vmatprep.subr.bf16.mxu0 %v827
    %1164 = vmatpush1.bf16.msra.mxu0 %v826
    %1165 = vmatprep.subr.bf16.mxu0 %v819
    %1166 = vmatpush1.bf16.msra.mxu0 %v818
    %1167 = vmatprep.subr.bf16.mxu0 %v811
    %1168 = vmatpush1.bf16.msra.mxu0 %v810
    %1169 = vmatprep.subr.bf16.mxu0 %v803
    %1170 = vmatpush1.bf16.msra.mxu0 %v802
    %1171 = vmatprep.subr.bf16.mxu0 %v795
    %1172 = vmatpush1.bf16.msra.mxu0 %v794
    %1173 = vmatprep.subr.bf16.mxu0 %v787
    %1174 = vmatpush1.bf16.msra.mxu0 %v786
    %1175 = vmatprep.subr.bf16.mxu0 %v907
    %1176 = vmatpush2.bf16.msra.mxu0 %v906
    %1177 = vmatprep.subr.bf16.mxu0 %v899
    %1178 = vmatpush2.bf16.msra.mxu0 %v898
    %1179 = vmatprep.subr.bf16.mxu0 %v891
    %1180 = vmatpush2.bf16.msra.mxu0 %v890
    %1181 = vmatprep.subr.bf16.mxu0 %v883
    %1182 = vmatpush2.bf16.msra.mxu0 %v882
    %1183 = vmatprep.subr.bf16.mxu0 %v875
    %1184 = vmatpush2.bf16.msra.mxu0 %v874
    %1185 = vmatprep.subr.bf16.mxu0 %v867
    %1186 = vmatpush2.bf16.msra.mxu0 %v866
    %1187 = vmatprep.subr.bf16.mxu0 %v859
    %1188 = vmatpush2.bf16.msra.mxu0 %v858
    %1189 = vmatprep.subr.bf16.mxu0 %v851
    %1190 = vmatpush2.bf16.msra.mxu0 %v850
    %1191 = vmatprep.mubr.bf16.mxu0 %v225
    %1192 = vmatmul.mubr.bf16.gmra.mxu0 %v224
    %v1193 = vpop.f32.mrf.mxu0
    %v1194 = vadd.f32 %v383, %v1193
    %v1195 = vpop.f32.mrf.mxu0
    %v1196 = vadd.f32 %v387, %v1195
    %v1197 = vpop.f32.mrf.mxu0
    %v1198 = vpop.f32.mrf.mxu0
    %1199 = vdwg.mxu0
    %v1200 = vmax.f32 %v1071, 0.0
    %v1201 = vmax.f32 %v1073, 0.0
    %v1202 = vmax.f32 %v1112, 0.0
    %v1203 = vmax.f32 %v1114, 0.0
    %v1204 = vmax.f32 %v1153, 0.0
    %v1205 = vmax.f32 %v1155, 0.0
    %v1206 = vmax.f32 %v1194, 0.0
    %v1207 = vmax.f32 %v1196, 0.0
    %v1208 = vpack.c.bf16 %v1200, %v1200
    %v1209 = vpack.c.bf16 %v1201, %v1201
    %v1210 = vpack.c.bf16 %v1202, %v1202
    %v1211 = vpack.c.bf16 %v1203, %v1203
    %v1212 = vpack.c.bf16 %v1204, %v1204
    %v1213 = vpack.c.bf16 %v1205, %v1205
    %v1214 = vpack.c.bf16 %v1206, %v1206
    %v1215 = vpack.c.bf16 %v1207, %v1207
    %v1224 = vunpack.c.l.b16 %v1208
    %v1225 = vunpack.c.l.b16 %v1209
    %v1226 = vunpack.c.l.b16 %v1210
    %v1227 = vunpack.c.l.b16 %v1211
    %v1228 = vunpack.c.l.b16 %v1212
    %v1229 = vunpack.c.l.b16 %v1213
    %v1230 = vunpack.c.l.b16 %v1214
    %v1231 = vunpack.c.l.b16 %v1215
    %v1232 = vpack.c.b16 %v1225, %v1224
    %v1233 = vpack.c.b16 %v1227, %v1226
    %v1234 = vpack.c.b16 %v1229, %v1228
    %v1235 = vpack.c.b16 %v1231, %v1230
    %1240 = vst [vmem:[%s5] sm:$0xff] %v1232
    %1241 = vst [vmem:[%s5 + $0x8] sm:$0xff] %v1233
    %1242 = vst [vmem:[%s5 + $0x10] sm:$0xff] %v1234
    %1243 = vst [vmem:[%s5 + $0x18] sm:$0xff] %v1235
    // Predicated region
    $region38: #{image_decoder_forward.5} parent=1 // pred_check
      _
    $region39: #{image_decoder_forward.5} parent=1 // pred_check_branch
      %1245 = sbr.rel (0) target = $region41
    $region40: #{image_decoder_forward.5} parent=1 // pred_region
      _
    $region41: #{image_decoder_forward.5} parent=1 // pred_fallthru
      _
    // Predicated region
    $region42: #{image_decoder_forward.5} parent=1 // pred_check
      _
    $region43: #{image_decoder_forward.5} parent=1 // pred_check_branch
      %1247 = sbr.rel (0) target = $region45
    $region44: #{image_decoder_forward.5} parent=1 // pred_region
      _
    $region45: #{image_decoder_forward.5} parent=1 // pred_fallthru
      _
    %1248 = vsyncpa [#allocation3], 1
    %1249 = vsyncpa [#allocation5], 1
    %1250 = vsyncpa [#allocation8], 1

// kernel: image_decoder_forward.6
$region0: #{image_decoder_forward.6}
  #allocation0 [shape = 'u32[]', space=smem, size = 0x4, offset = 0x4, fixed_abs, tag = 'smem constant byte address 0x4 - core index']
  #allocation1 [shape = 'u32[144,128]{1,0:T(1,128)}', space=vmem, size = 0x12000, scoped, tag = 'internal scratch']
  %s0 = inlined_call_operand.vmem [shape: bf16[64,256], index: 0, kind: input, shape index: {}]
  %s1 = inlined_call_operand.hbm [shape: bf16[256,256], index: 1, kind: input, shape index: {}]
  %s2 = inlined_call_operand.hbm [shape: f32[1,256], index: 2, kind: input, shape index: {}]
  %s3 = inlined_call_operand.vmem [shape: bf16[64,256], index: 3, kind: output, shape index: {}]
  %s4 = sld [smem:[#allocation0]]
  $region53: #{image_decoder_forward.6} parent=0
    _
  %s6 = ssub.s32 1, %s4
  %s7 = scalar_select 0, %s6, %s4
  $region1: #{image_decoder_forward.6} parent=0
    #allocation2 [shape = 'u8[131072]{0}', space=vmem, size = 0x20000, scoped, tag = 'input window, operand 1, single buffered']
    #allocation3 [shape = 's32[2]{0}', space=sflag, size = 0x8, scoped, tag = 'scoped memory for image_decoder_forward.6']
    #allocation4 [shape = 'u8[1024]{0}', space=vmem, size = 0x400, scoped, tag = 'input window, operand 2, single buffered']
    #allocation5 [shape = 's32[1]{0}', space=sflag, size = 0x4, scoped, tag = 'scoped memory for image_decoder_forward.6']
    %8 = vsyncpa [#allocation3], 0
    %9 = vsyncpa [#allocation5], 0
    loop: start=0, step=1, limit=4
    $region2: #{image_decoder_forward.6} parent=1 // loop_pre_header
      _
    $region3: #{image_decoder_forward.6} parent=1 // loop_header
      %s11 = sphi 0, %s15
      %p12 = scmp.ge.s32.totalorder %s11, 4
      %s21 = sphi 0, %s23
      %s24 = sphi 0, %s21
      %s25 = sphi 0, %s24
      %s41 = sphi 0, %s25
      %s45 = sphi 0, %s45
      %s47 = sphi 0, %s45
      %s48 = sphi 0, %s47
      %s62 = sphi 0, %s48
      %s66 = sphi 0, %s66
      %s68 = sphi 0, %s66
      %s69 = sphi 0, %s68
      %s83 = sphi 0, %s69
      %s89 = sphi 0, %s91
      %s92 = sphi 0, %s89
      %s93 = sphi 0, %s92
      %s109 = sphi 0, %s93
    $region4: #{image_decoder_forward.6} parent=1 // loop_header_branch
      %14 = sbr.rel (%p12) target = $region8
    $region5: #{image_decoder_forward.6} parent=1 // loop_body
      %s16 = ssub.s32 %s11, 1
      %s17 = ssub.s32 %s11, 2
      %s18 = sadd.s32 %s11, 1
      %s19 = ssub.s32 %s11, %s18
      %p20 = scmp.eq.s32.totalorder %s19, 0
      %s22 = sadd.s32 %s21, 1
      %s23 = scalar_select %p20, %s21, %s22
      %p26 = pneg %p20
      %p27 = scmp.eq.s32.totalorder %s11, 1
      %p28 = por %p26, %p27
      %p29 = scmp.ne.s32.totalorder %s21, %s24
      %p30 = scmp.eq.s32.totalorder %s11, 0
      %p31 = por %p29, %p30
      %p32 = scmp.ne.s32.totalorder %s21, %s24
      %p33 = scmp.eq.s32.totalorder %s16, 1
      %p34 = por %p32, %p33
      %p35 = scmp.ne.s32.totalorder %s24, %s25
      %p36 = scmp.eq.s32.totalorder %s16, 0
      %p37 = por %p35, %p36
      %p38 = scmp.ne.s32.totalorder %s24, %s25
      %p39 = scmp.eq.s32.totalorder %s17, 1
      %p40 = por %p38, %p39
      %p42 = scmp.ne.s32.totalorder %s25, %s41
      %p43 = scmp.eq.s32.totalorder %s17, 0
      %p44 = por %p42, %p43
      %s46 = sadd.s32 %s45, 1
      %p49 = scmp.eq.s32.totalorder %s11, 1
      %p50 = scmp.ne.s32.totalorder %s45, %s47
      %p51 = scmp.eq.s32.totalorder %s11, 0
      %p52 = por %p50, %p51
      %p53 = scmp.ne.s32.totalorder %s45, %s47
      %p54 = scmp.eq.s32.totalorder %s16, 1
      %p55 = por %p53, %p54
      %p56 = scmp.ne.s32.totalorder %s47, %s48
      %p57 = scmp.eq.s32.totalorder %s16, 0
      %p58 = por %p56, %p57
      %p59 = scmp.ne.s32.totalorder %s47, %s48
      %p60 = scmp.eq.s32.totalorder %s17, 1
      %p61 = por %p59, %p60
      %p63 = scmp.ne.s32.totalorder %s48, %s62
      %p64 = scmp.eq.s32.totalorder %s17, 0
      %p65 = por %p63, %p64
      %s67 = sadd.s32 %s66, 1
      %p70 = scmp.eq.s32.totalorder %s11, 1
      %p71 = scmp.ne.s32.totalorder %s66, %s68
      %p72 = scmp.eq.s32.totalorder %s11, 0
      %p73 = por %p71, %p72
      %p74 = scmp.ne.s32.totalorder %s66, %s68
      %p75 = scmp.eq.s32.totalorder %s16, 1
      %p76 = por %p74, %p75
      %p77 = scmp.ne.s32.totalorder %s68, %s69
      %p78 = scmp.eq.s32.totalorder %s16, 0
      %p79 = por %p77, %p78
      %p80 = scmp.ne.s32.totalorder %s68, %s69
      %p81 = scmp.eq.s32.totalorder %s17, 1
      %p82 = por %p80, %p81
      %p84 = scmp.ne.s32.totalorder %s69, %s83
      %p85 = scmp.eq.s32.totalorder %s17, 0
      %p86 = por %p84, %p85
      %s87 = ssub.s32 %s11, %s18
      %p88 = scmp.eq.s32.totalorder %s87, 0
      %s90 = sadd.s32 %s89, 1
      %s91 = scalar_select %p88, %s89, %s90
      %p94 = pneg %p88
      %p95 = scmp.eq.s32.totalorder %s11, 1
      %p96 = por %p94, %p95
      %p97 = scmp.ne.s32.totalorder %s89, %s92
      %p98 = scmp.eq.s32.totalorder %s11, 0
      %p99 = por %p97, %p98
      %p100 = scmp.ne.s32.totalorder %s89, %s92
      %p101 = scmp.eq.s32.totalorder %s16, 1
      %p102 = por %p100, %p101
      %p103 = scmp.ne.s32.totalorder %s92, %s93
      %p104 = scmp.eq.s32.totalorder %s16, 0
      %p105 = por %p103, %p104
      %p106 = scmp.ne.s32.totalorder %s92, %s93
      %p107 = scmp.eq.s32.totalorder %s17, 1
      %p108 = por %p106, %p107
      %p110 = scmp.ne.s32.totalorder %s93, %s109
      %p111 = scmp.eq.s32.totalorder %s17, 0
      %p112 = por %p110, %p111
      %p113 = scmp.le.s32.totalorder 1, %s11
      %p114 = scmp.lt.s32.totalorder %s11, 3
      %p115 = pnand %p113, %p114
      %p116 = pneg %p115
      // Predicated region
      $region9: #{image_decoder_forward.6} parent=5 // pred_check
        _
      $region10: #{image_decoder_forward.6} parent=5 // pred_check_branch
        %118 = sbr.rel (%p115) target = $region12
      $region11: #{image_decoder_forward.6} parent=5 // pred_region
        %s119 = ssub.s32 %s11, 1
        // Predicated region
        $region13: #{image_decoder_forward.6} parent=11 // pred_check
          %p120 = pneg %p58
        $region14: #{image_decoder_forward.6} parent=11 // pred_check_branch
          %122 = sbr.rel (%p120) target = $region16
        $region15: #{image_decoder_forward.6} parent=11 // pred_region
          %s124 = ssub.s32 4096, 4096
          %125 = vsyncadd [#allocation3], %s124
          %s126 = sshll.u32 [#allocation2], 4
          %s127 = int_to_ptr.vmem [resolvable:$true] %s126
          %132 = dma.hbm_to_vmem [thread:$0]  %s1, 4096, %s127, [#allocation3], 128, 128, 8
        $region16: #{image_decoder_forward.6} parent=11 // pred_fallthru
          _
        // Predicated region
        $region17: #{image_decoder_forward.6} parent=11 // pred_check
          %p133 = pneg %p79
        $region18: #{image_decoder_forward.6} parent=11 // pred_check_branch
          %135 = sbr.rel (%p133) target = $region20
        $region19: #{image_decoder_forward.6} parent=11 // pred_region
          %s137 = ssub.s32 32, 32
          %138 = vsyncadd [#allocation5], %s137
          %s140 = sshll.u32 [#allocation4], 4
          %s141 = int_to_ptr.vmem [resolvable:$true] %s140
          %143 = dma.hbm_to_vmem [thread:$0]  %s2, 32, %s141, [#allocation5]
        $region20: #{image_decoder_forward.6} parent=11 // pred_fallthru
          _
      $region12: #{image_decoder_forward.6} parent=5 // pred_fallthru
        _
      %p144 = scmp.lt.s32.totalorder %s11, 2
      // Predicated region
      $region21: #{image_decoder_forward.6} parent=5 // pred_check
        %p145 = pneg %p144
      $region22: #{image_decoder_forward.6} parent=5 // pred_check_branch
        %147 = sbr.rel (%p145) target = $region24
      $region23: #{image_decoder_forward.6} parent=5 // pred_region
        // Predicated region
        $region25: #{image_decoder_forward.6} parent=23 // pred_check
          %p148 = pneg %p31
        $region26: #{image_decoder_forward.6} parent=23 // pred_check_branch
          %150 = sbr.rel (%p148) target = $region28
        $region27: #{image_decoder_forward.6} parent=23 // pred_region
          %s151 = smul.u32 4, %s11
          %p152 = scmp.lt.s32.totalorder %s151, 7
          %s153 = scalar_select %p152, %s151, 7
          %s154 = smul.addr %s153, 2
          %s155 = smul.addr %s154, 4
          %s156 = scalar_lea.vmem %s0, %s155
          %s157 = smul.u32 4, %s11
        $region28: #{image_decoder_forward.6} parent=23 // pred_fallthru
          _
      $region24: #{image_decoder_forward.6} parent=5 // pred_fallthru
        _
      %p158 = scmp.le.s32.totalorder 1, %s11
      %p159 = scmp.lt.s32.totalorder %s11, 3
      %p160 = pnand %p158, %p159
      %p161 = pneg %p160
      // Predicated region
      $region29: #{image_decoder_forward.6} parent=5 // pred_check
        _
      $region30: #{image_decoder_forward.6} parent=5 // pred_check_branch
        %163 = sbr.rel (%p160) target = $region32
      $region31: #{image_decoder_forward.6} parent=5 // pred_region
        %s164 = ssub.s32 %s11, 1
        // Predicated region
        $region33: #{image_decoder_forward.6} parent=31 // pred_check
          %p165 = pneg %p58
        $region34: #{image_decoder_forward.6} parent=31 // pred_check_branch
          %167 = sbr.rel (%p165) target = $region36
        $region35: #{image_decoder_forward.6} parent=31 // pred_region
          %168 = dma.done [#allocation3], 4096
        $region36: #{image_decoder_forward.6} parent=31 // pred_fallthru
          _
        // Predicated region
        $region37: #{image_decoder_forward.6} parent=31 // pred_check
          %p169 = pneg %p79
        $region38: #{image_decoder_forward.6} parent=31 // pred_check_branch
          %171 = sbr.rel (%p169) target = $region40
        $region39: #{image_decoder_forward.6} parent=31 // pred_region
          %172 = dma.done [#allocation5], 32
        $region40: #{image_decoder_forward.6} parent=31 // pred_fallthru
          _
        %s173 = smul.u32 4, %s16
        %p174 = scmp.lt.s32.totalorder %s173, 7
        %s175 = scalar_select %p174, %s173, 7
        %s176 = smul.addr %s175, 2
        %s177 = smul.addr %s176, 4
        %s178 = scalar_lea.vmem %s0, %s177
        %p179 = pneg %p37
        %p180 = pneg %p34
        %p181 = pneg %p58
        %p182 = pneg %p55
        %p183 = pneg %p79
        %p184 = pneg %p76
        %p185 = pneg %p105
        %p186 = pneg %p102
        %s187 = smul.u32 4, %s16
        %p188 = scmp.lt.s32.totalorder %s187, 7
        %s189 = scalar_select %p188, %s187, 7
        %s190 = smul.addr %s189, 2
        %s191 = smul.addr %s190, 4
        %s192 = scalar_lea.vmem %s3, %s191
        %s193 = smul.u32 4, %s16
        %p194 = scmp.lt.s32.totalorder %s193, 7
        %s195 = scalar_select %p194, %s193, 7
        %s196 = smul.addr %s195, 2
        %s197 = smul.addr %s196, 4
        %s198 = scalar_lea.vmem %s0, %s197
        %s199 = smul.u32 4, %s16
        %s200 = smul.u32 4, %s16
        %p201 = scmp.lt.s32.totalorder %s200, 7
        %s202 = scalar_select %p201, %s200, 7
        %s203 = smul.addr %s202, 2
        %s204 = smul.addr %s203, 4
        %s205 = scalar_lea.vmem %s3, %s204
        %s206 = smul.u32 4, %s16
        %v207 = vld [vmem:[%s198] sm:$0xff]
        %v208 = vld [vmem:[%s198 + $0x8] sm:$0xff]
        %v209 = vld [vmem:[%s198 + $0x10] sm:$0xff]
        %v210 = vld [vmem:[%s198 + $0x18] sm:$0xff]
        %v211 = vld [vmem:[#allocation2] sm:$0xff]
        %v212 = vld [vmem:[#allocation2 + $0x8] sm:$0xff]
        %v213 = vld [vmem:[#allocation2 + $0x10] sm:$0xff]
        %v214 = vld [vmem:[#allocation2 + $0x18] sm:$0xff]
        %v215 = vld [vmem:[#allocation2 + $0x20] sm:$0xff]
        %v216 = vld [vmem:[#allocation2 + $0x28] sm:$0xff]
        %v217 = vld [vmem:[#allocation2 + $0x30] sm:$0xff]
        %v218 = vld [vmem:[#allocation2 + $0x38] sm:$0xff]
        %v219 = vld [vmem:[#allocation2 + $0x40] sm:$0xff]
        %v220 = vld [vmem:[#allocation2 + $0x48] sm:$0xff]
        %v221 = vld [vmem:[#allocation2 + $0x50] sm:$0xff]
        %v222 = vld [vmem:[#allocation2 + $0x58] sm:$0xff]
        %v223 = vld [vmem:[#allocation2 + $0x60] sm:$0xff]
        %v224 = vld [vmem:[#allocation2 + $0x68] sm:$0xff]
        %v225 = vld [vmem:[#allocation2 + $0x70] sm:$0xff]
        %v226 = vld [vmem:[#allocation2 + $0x78] sm:$0xff]
        %v227 = vld [vmem:[#allocation2 + $0x80] sm:$0xff]
        %v228 = vld [vmem:[#allocation2 + $0x88] sm:$0xff]
        %v229 = vld [vmem:[#allocation2 + $0x90] sm:$0xff]
        %v230 = vld [vmem:[#allocation2 + $0x98] sm:$0xff]
        %v231 = vld [vmem:[#allocation2 + $0xa0] sm:$0xff]
        %v232 = vld [vmem:[#allocation2 + $0xa8] sm:$0xff]
        %v233 = vld [vmem:[#allocation2 + $0xb0] sm:$0xff]
        %v234 = vld [vmem:[#allocation2 + $0xb8] sm:$0xff]
        %v235 = vld [vmem:[#allocation2 + $0xc0] sm:$0xff]
        %v236 = vld [vmem:[#allocation2 + $0xc8] sm:$0xff]
        %v237 = vld [vmem:[#allocation2 + $0xd0] sm:$0xff]
        %v238 = vld [vmem:[#allocation2 + $0xd8] sm:$0xff]
        %v239 = vld [vmem:[#allocation2 + $0xe0] sm:$0xff]
        %v240 = vld [vmem:[#allocation2 + $0xe8] sm:$0xff]
        %v241 = vld [vmem:[#allocation2 + $0xf0] sm:$0xff]
        %v242 = vld [vmem:[#allocation2 + $0xf8] sm:$0xff]
        %v243 = vld [vmem:[#allocation4] sm:$0x3]
        %v245 = vlaneseq
        %v246 = vshrl.u32 %v245, 7
        %v247 = vsub.s32 0, %v246
        %v248 = vrot.slane %v243, %v247
        %v249 = vlaneseq
        %v250 = vshrl.u32 %v249, 7
        %v251 = vsub.s32 1, %v250
        %v252 = vrot.slane %v243, %v251
        %v259 = vunpack.c.l.b16 %v207
        %v260 = vunpack.c.h.b16 %v207
        %v261 = vunpack.c.l.b16 %v208
        %v262 = vunpack.c.h.b16 %v208
        %v263 = vunpack.c.l.b16 %v209
        %v264 = vunpack.c.h.b16 %v209
        %v265 = vunpack.c.l.b16 %v210
        %v266 = vunpack.c.h.b16 %v210
        %v267 = vpack.c.b16 %v261, %v259
        %v268 = vpack.c.b16 %v262, %v260
        %v269 = vpack.c.b16 %v265, %v263
        %v270 = vpack.c.b16 %v266, %v264
        %v307 = vunpack.c.l.b16 %v211
        %v308 = vunpack.c.h.b16 %v211
        %v309 = vunpack.c.l.b16 %v212
        %v310 = vunpack.c.h.b16 %v212
        %v311 = vunpack.c.l.b16 %v213
        %v312 = vunpack.c.h.b16 %v213
        %v313 = vunpack.c.l.b16 %v214
        %v314 = vunpack.c.h.b16 %v214
        %v315 = vunpack.c.l.b16 %v215
        %v316 = vunpack.c.h.b16 %v215
        %v317 = vunpack.c.l.b16 %v216
        %v318 = vunpack.c.h.b16 %v216
        %v319 = vunpack.c.l.b16 %v217
        %v320 = vunpack.c.h.b16 %v217
        %v321 = vunpack.c.l.b16 %v218
        %v322 = vunpack.c.h.b16 %v218
        %v323 = vunpack.c.l.b16 %v219
        %v324 = vunpack.c.h.b16 %v219
        %v325 = vunpack.c.l.b16 %v220
        %v326 = vunpack.c.h.b16 %v220
        %v327 = vunpack.c.l.b16 %v221
        %v328 = vunpack.c.h.b16 %v221
        %v329 = vunpack.c.l.b16 %v222
        %v330 = vunpack.c.h.b16 %v222
        %v331 = vunpack.c.l.b16 %v223
        %v332 = vunpack.c.h.b16 %v223
        %v333 = vunpack.c.l.b16 %v224
        %v334 = vunpack.c.h.b16 %v224
        %v335 = vunpack.c.l.b16 %v225
        %v336 = vunpack.c.h.b16 %v225
        %v337 = vunpack.c.l.b16 %v226
        %v338 = vunpack.c.h.b16 %v226
        %v339 = vunpack.c.l.b16 %v227
        %v340 = vunpack.c.h.b16 %v227
        %v341 = vunpack.c.l.b16 %v228
        %v342 = vunpack.c.h.b16 %v228
        %v343 = vunpack.c.l.b16 %v229
        %v344 = vunpack.c.h.b16 %v229
        %v345 = vunpack.c.l.b16 %v230
        %v346 = vunpack.c.h.b16 %v230
        %v347 = vunpack.c.l.b16 %v231
        %v348 = vunpack.c.h.b16 %v231
        %v349 = vunpack.c.l.b16 %v232
        %v350 = vunpack.c.h.b16 %v232
        %v351 = vunpack.c.l.b16 %v233
        %v352 = vunpack.c.h.b16 %v233
        %v353 = vunpack.c.l.b16 %v234
        %v354 = vunpack.c.h.b16 %v234
        %v355 = vunpack.c.l.b16 %v235
        %v356 = vunpack.c.h.b16 %v235
        %v357 = vunpack.c.l.b16 %v236
        %v358 = vunpack.c.h.b16 %v236
        %v359 = vunpack.c.l.b16 %v237
        %v360 = vunpack.c.h.b16 %v237
        %v361 = vunpack.c.l.b16 %v238
        %v362 = vunpack.c.h.b16 %v238
        %v363 = vunpack.c.l.b16 %v239
        %v364 = vunpack.c.h.b16 %v239
        %v365 = vunpack.c.l.b16 %v240
        %v366 = vunpack.c.h.b16 %v240
        %v367 = vunpack.c.l.b16 %v241
        %v368 = vunpack.c.h.b16 %v241
        %v369 = vunpack.c.l.b16 %v242
        %v370 = vunpack.c.h.b16 %v242
        %v371 = vpack.c.b16 %v309, %v307
        %v372 = vpack.c.b16 %v310, %v308
        %v373 = vpack.c.b16 %v313, %v311
        %v374 = vpack.c.b16 %v314, %v312
        %v375 = vpack.c.b16 %v317, %v315
        %v376 = vpack.c.b16 %v318, %v316
        %v377 = vpack.c.b16 %v321, %v319
        %v378 = vpack.c.b16 %v322, %v320
        %v379 = vpack.c.b16 %v325, %v323
        %v380 = vpack.c.b16 %v326, %v324
        %v381 = vpack.c.b16 %v329, %v327
        %v382 = vpack.c.b16 %v330, %v328
        %v383 = vpack.c.b16 %v333, %v331
        %v384 = vpack.c.b16 %v334, %v332
        %v385 = vpack.c.b16 %v337, %v335
        %v386 = vpack.c.b16 %v338, %v336
        %v387 = vpack.c.b16 %v341, %v339
        %v388 = vpack.c.b16 %v342, %v340
        %v389 = vpack.c.b16 %v345, %v343
        %v390 = vpack.c.b16 %v346, %v344
        %v391 = vpack.c.b16 %v349, %v347
        %v392 = vpack.c.b16 %v350, %v348
        %v393 = vpack.c.b16 %v353, %v351
        %v394 = vpack.c.b16 %v354, %v352
        %v395 = vpack.c.b16 %v357, %v355
        %v396 = vpack.c.b16 %v358, %v356
        %v397 = vpack.c.b16 %v361, %v359
        %v398 = vpack.c.b16 %v362, %v360
        %v399 = vpack.c.b16 %v365, %v363
        %v400 = vpack.c.b16 %v366, %v364
        %v401 = vpack.c.b16 %v369, %v367
        %v402 = vpack.c.b16 %v370, %v368
        %435 = vmatprep.subr.bf16.mxu0 %v386
        %436 = vmatpush1.bf16.msra.mxu0 %v385
        %437 = vmatprep.subr.bf16.mxu0 %v384
        %438 = vmatpush1.bf16.msra.mxu0 %v383
        %439 = vmatprep.subr.bf16.mxu0 %v382
        %440 = vmatpush1.bf16.msra.mxu0 %v381
        %441 = vmatprep.subr.bf16.mxu0 %v380
        %442 = vmatpush1.bf16.msra.mxu0 %v379
        %443 = vmatprep.subr.bf16.mxu0 %v378
        %444 = vmatpush1.bf16.msra.mxu0 %v377
        %445 = vmatprep.subr.bf16.mxu0 %v376
        %446 = vmatpush1.bf16.msra.mxu0 %v375
        %447 = vmatprep.subr.bf16.mxu0 %v374
        %448 = vmatpush1.bf16.msra.mxu0 %v373
        %449 = vmatprep.subr.bf16.mxu0 %v372
        %450 = vmatpush1.bf16.msra.mxu0 %v371
        %451 = vmatprep.subr.bf16.mxu0 %v402
        %452 = vmatpush2.bf16.msra.mxu0 %v401
        %453 = vmatprep.subr.bf16.mxu0 %v400
        %454 = vmatpush2.bf16.msra.mxu0 %v399
        %455 = vmatprep.subr.bf16.mxu0 %v398
        %456 = vmatpush2.bf16.msra.mxu0 %v397
        %457 = vmatprep.subr.bf16.mxu0 %v396
        %458 = vmatpush2.bf16.msra.mxu0 %v395
        %459 = vmatprep.subr.bf16.mxu0 %v394
        %460 = vmatpush2.bf16.msra.mxu0 %v393
        %461 = vmatprep.subr.bf16.mxu0 %v392
        %462 = vmatpush2.bf16.msra.mxu0 %v391
        %463 = vmatprep.subr.bf16.mxu0 %v390
        %464 = vmatpush2.bf16.msra.mxu0 %v389
        %465 = vmatprep.subr.bf16.mxu0 %v388
        %466 = vmatpush2.bf16.msra.mxu0 %v387
        %467 = vmatprep.mubr.bf16.mxu0 %v268
        %468 = vmatmul.mubr.bf16.gmra.mxu0 %v267
        %v469 = vpop.f32.mrf.mxu0
        %v470 = vadd.f32 %v248, %v469
        %v471 = vpop.f32.mrf.mxu0
        %v472 = vadd.f32 %v252, %v471
        %v473 = vpop.f32.mrf.mxu0
        %v474 = vadd.f32 %v248, %v473
        %v475 = vpop.f32.mrf.mxu0
        %v476 = vadd.f32 %v252, %v475
        %477 = vmatprep.mubr.bf16.mxu0 %v270
        %478 = vmatmul.mubr.bf16.gmra.mxu0 %v269
        %v479 = vpop.f32.mrf.mxu0
        %v480 = vadd.f32 %v248, %v479
        %v481 = vpop.f32.mrf.mxu0
        %v482 = vadd.f32 %v252, %v481
        %v483 = vpop.f32.mrf.mxu0
        %v484 = vadd.f32 %v248, %v483
        %v485 = vpop.f32.mrf.mxu0
        %v486 = vadd.f32 %v252, %v485
        %487 = vdwg.mxu0
        %v488 = vmax.f32 %v470, 0.0
        %v489 = vmax.f32 %v472, 0.0
        %v490 = vmax.f32 %v474, 0.0
        %v491 = vmax.f32 %v476, 0.0
        %v492 = vmax.f32 %v480, 0.0
        %v493 = vmax.f32 %v482, 0.0
        %v494 = vmax.f32 %v484, 0.0
        %v495 = vmax.f32 %v486, 0.0
        %v496 = vpack.c.bf16 %v490, %v488
        %v497 = vpack.c.bf16 %v491, %v489
        %v498 = vpack.c.bf16 %v494, %v492
        %v499 = vpack.c.bf16 %v495, %v493
        %v504 = vunpack.c.l.b16 %v496
        %v505 = vunpack.c.l.b16 %v497
        %v506 = vunpack.c.h.b16 %v496
        %v507 = vunpack.c.h.b16 %v497
        %v508 = vunpack.c.l.b16 %v498
        %v509 = vunpack.c.l.b16 %v499
        %v510 = vunpack.c.h.b16 %v498
        %v511 = vunpack.c.h.b16 %v499
        %v512 = vpack.c.b16 %v505, %v504
        %v513 = vpack.c.b16 %v507, %v506
        %v514 = vpack.c.b16 %v509, %v508
        %v515 = vpack.c.b16 %v511, %v510
        %520 = vst [vmem:[%s205] sm:$0xff] %v512
        %521 = vst [vmem:[%s205 + $0x8] sm:$0xff] %v513
        %522 = vst [vmem:[%s205 + $0x10] sm:$0xff] %v514
        %523 = vst [vmem:[%s205 + $0x18] sm:$0xff] %v515
        %s524 = smul.u32 4, %s16
        %p525 = scmp.lt.s32.totalorder %s524, 7
        %s526 = scalar_select %p525, %s524, 7
        %s527 = smul.addr %s526, 2
        %s528 = smul.addr %s527, 4
        %s529 = scalar_lea.vmem %s3, %s528
        // Predicated region
        $region41: #{image_decoder_forward.6} parent=31 // pred_check
          %p530 = pneg %p102
        $region42: #{image_decoder_forward.6} parent=31 // pred_check_branch
          %532 = sbr.rel (%p530) target = $region44
        $region43: #{image_decoder_forward.6} parent=31 // pred_region
          %s533 = smul.u32 4, %s16
        $region44: #{image_decoder_forward.6} parent=31 // pred_fallthru
          _
      $region32: #{image_decoder_forward.6} parent=5 // pred_fallthru
        _
      %p534 = scmp.le.s32.totalorder 2, %s11
      // Predicated region
      $region45: #{image_decoder_forward.6} parent=5 // pred_check
        %p535 = pneg %p534
      $region46: #{image_decoder_forward.6} parent=5 // pred_check_branch
        %537 = sbr.rel (%p535) target = $region48
      $region47: #{image_decoder_forward.6} parent=5 // pred_region
        %s538 = ssub.s32 %s11, 2
        // Predicated region
        $region49: #{image_decoder_forward.6} parent=47 // pred_check
          %p539 = pneg %p108
        $region50: #{image_decoder_forward.6} parent=47 // pred_check_branch
          %541 = sbr.rel (%p539) target = $region52
        $region51: #{image_decoder_forward.6} parent=47 // pred_region
          %s542 = smul.u32 4, %s17
          %p543 = scmp.lt.s32.totalorder %s542, 7
          %s544 = scalar_select %p543, %s542, 7
          %s545 = smul.addr %s544, 2
          %s546 = smul.addr %s545, 4
          %s547 = scalar_lea.vmem %s3, %s546
        $region52: #{image_decoder_forward.6} parent=47 // pred_fallthru
          _
      $region48: #{image_decoder_forward.6} parent=5 // pred_fallthru
        _
    $region6: #{image_decoder_forward.6} parent=1 // loop_footer
      %s15 = sadd.s32 1, %s11
    $region7: #{image_decoder_forward.6} parent=1 // loop_footer_branch
      %10 = sbr.rel target = $region3
    $region8: #{image_decoder_forward.6} parent=1 // loop_exit
      _
    %548 = vsyncpa [#allocation3], 1
    %s549 = scalar_lea.sflag [#allocation3], 1
    %550 = vsyncpa %s549, 1
    %551 = vsyncpa [#allocation5], 1

// kernel: image_decoder_forward.7
$region0: #{image_decoder_forward.7}
  #allocation0 [shape = 'u32[]', space=smem, size = 0x4, offset = 0x4, fixed_abs, tag = 'smem constant byte address 0x4 - core index']
  #allocation1 [shape = 'u32[144,128]{1,0:T(1,128)}', space=vmem, size = 0x12000, scoped, tag = 'internal scratch']
  %s0 = inlined_call_operand.vmem [shape: bf16[176,256], index: 0, kind: input, shape index: {}]
  %s1 = inlined_call_operand.hbm [shape: bf16[256,128], index: 1, kind: input, shape index: {}]
  %s2 = inlined_call_operand.hbm [shape: f32[1,128], index: 2, kind: input, shape index: {}]
  %s3 = inlined_call_operand.vmem [shape: bf16[176,128], index: 3, kind: output, shape index: {}]
  %s4 = sld [smem:[#allocation0]]
  $region53: #{image_decoder_forward.7} parent=0
    _
  %s6 = ssub.s32 1, %s4
  %s7 = scalar_select 0, %s6, %s4
  $region1: #{image_decoder_forward.7} parent=0
    #allocation2 [shape = 'u8[65536]{0}', space=vmem, size = 0x10000, scoped, tag = 'input window, operand 1, single buffered']
    #allocation3 [shape = 's32[2]{0}', space=sflag, size = 0x8, scoped, tag = 'scoped memory for image_decoder_forward.7']
    #allocation4 [shape = 'u8[512]{0}', space=vmem, size = 0x400, scoped, tag = 'input window, operand 2, single buffered']
    #allocation5 [shape = 's32[1]{0}', space=sflag, size = 0x4, scoped, tag = 'scoped memory for image_decoder_forward.7']
    %8 = vsyncpa [#allocation3], 0
    %9 = vsyncpa [#allocation5], 0
    loop: start=0, step=1, limit=4
    $region2: #{image_decoder_forward.7} parent=1 // loop_pre_header
      _
    $region3: #{image_decoder_forward.7} parent=1 // loop_header
      %s11 = sphi 0, %s15
      %p12 = scmp.ge.s32.totalorder %s11, 4
      %s21 = sphi 0, %s23
      %s24 = sphi 0, %s21
      %s25 = sphi 0, %s24
      %s41 = sphi 0, %s25
      %s45 = sphi 0, %s45
      %s47 = sphi 0, %s45
      %s48 = sphi 0, %s47
      %s62 = sphi 0, %s48
      %s66 = sphi 0, %s66
      %s68 = sphi 0, %s66
      %s69 = sphi 0, %s68
      %s83 = sphi 0, %s69
      %s89 = sphi 0, %s91
      %s92 = sphi 0, %s89
      %s93 = sphi 0, %s92
      %s109 = sphi 0, %s93
    $region4: #{image_decoder_forward.7} parent=1 // loop_header_branch
      %14 = sbr.rel (%p12) target = $region8
    $region5: #{image_decoder_forward.7} parent=1 // loop_body
      %s16 = ssub.s32 %s11, 1
      %s17 = ssub.s32 %s11, 2
      %s18 = sadd.s32 %s11, 1
      %s19 = ssub.s32 %s11, %s18
      %p20 = scmp.eq.s32.totalorder %s19, 0
      %s22 = sadd.s32 %s21, 1
      %s23 = scalar_select %p20, %s21, %s22
      %p26 = pneg %p20
      %p27 = scmp.eq.s32.totalorder %s11, 1
      %p28 = por %p26, %p27
      %p29 = scmp.ne.s32.totalorder %s21, %s24
      %p30 = scmp.eq.s32.totalorder %s11, 0
      %p31 = por %p29, %p30
      %p32 = scmp.ne.s32.totalorder %s21, %s24
      %p33 = scmp.eq.s32.totalorder %s16, 1
      %p34 = por %p32, %p33
      %p35 = scmp.ne.s32.totalorder %s24, %s25
      %p36 = scmp.eq.s32.totalorder %s16, 0
      %p37 = por %p35, %p36
      %p38 = scmp.ne.s32.totalorder %s24, %s25
      %p39 = scmp.eq.s32.totalorder %s17, 1
      %p40 = por %p38, %p39
      %p42 = scmp.ne.s32.totalorder %s25, %s41
      %p43 = scmp.eq.s32.totalorder %s17, 0
      %p44 = por %p42, %p43
      %s46 = sadd.s32 %s45, 1
      %p49 = scmp.eq.s32.totalorder %s11, 1
      %p50 = scmp.ne.s32.totalorder %s45, %s47
      %p51 = scmp.eq.s32.totalorder %s11, 0
      %p52 = por %p50, %p51
      %p53 = scmp.ne.s32.totalorder %s45, %s47
      %p54 = scmp.eq.s32.totalorder %s16, 1
      %p55 = por %p53, %p54
      %p56 = scmp.ne.s32.totalorder %s47, %s48
      %p57 = scmp.eq.s32.totalorder %s16, 0
      %p58 = por %p56, %p57
      %p59 = scmp.ne.s32.totalorder %s47, %s48
      %p60 = scmp.eq.s32.totalorder %s17, 1
      %p61 = por %p59, %p60
      %p63 = scmp.ne.s32.totalorder %s48, %s62
      %p64 = scmp.eq.s32.totalorder %s17, 0
      %p65 = por %p63, %p64
      %s67 = sadd.s32 %s66, 1
      %p70 = scmp.eq.s32.totalorder %s11, 1
      %p71 = scmp.ne.s32.totalorder %s66, %s68
      %p72 = scmp.eq.s32.totalorder %s11, 0
      %p73 = por %p71, %p72
      %p74 = scmp.ne.s32.totalorder %s66, %s68
      %p75 = scmp.eq.s32.totalorder %s16, 1
      %p76 = por %p74, %p75
      %p77 = scmp.ne.s32.totalorder %s68, %s69
      %p78 = scmp.eq.s32.totalorder %s16, 0
      %p79 = por %p77, %p78
      %p80 = scmp.ne.s32.totalorder %s68, %s69
      %p81 = scmp.eq.s32.totalorder %s17, 1
      %p82 = por %p80, %p81
      %p84 = scmp.ne.s32.totalorder %s69, %s83
      %p85 = scmp.eq.s32.totalorder %s17, 0
      %p86 = por %p84, %p85
      %s87 = ssub.s32 %s11, %s18
      %p88 = scmp.eq.s32.totalorder %s87, 0
      %s90 = sadd.s32 %s89, 1
      %s91 = scalar_select %p88, %s89, %s90
      %p94 = pneg %p88
      %p95 = scmp.eq.s32.totalorder %s11, 1
      %p96 = por %p94, %p95
      %p97 = scmp.ne.s32.totalorder %s89, %s92
      %p98 = scmp.eq.s32.totalorder %s11, 0
      %p99 = por %p97, %p98
      %p100 = scmp.ne.s32.totalorder %s89, %s92
      %p101 = scmp.eq.s32.totalorder %s16, 1
      %p102 = por %p100, %p101
      %p103 = scmp.ne.s32.totalorder %s92, %s93
      %p104 = scmp.eq.s32.totalorder %s16, 0
      %p105 = por %p103, %p104
      %p106 = scmp.ne.s32.totalorder %s92, %s93
      %p107 = scmp.eq.s32.totalorder %s17, 1
      %p108 = por %p106, %p107
      %p110 = scmp.ne.s32.totalorder %s93, %s109
      %p111 = scmp.eq.s32.totalorder %s17, 0
      %p112 = por %p110, %p111
      %p113 = scmp.le.s32.totalorder 1, %s11
      %p114 = scmp.lt.s32.totalorder %s11, 3
      %p115 = pnand %p113, %p114
      %p116 = pneg %p115
      // Predicated region
      $region9: #{image_decoder_forward.7} parent=5 // pred_check
        _
      $region10: #{image_decoder_forward.7} parent=5 // pred_check_branch
        %118 = sbr.rel (%p115) target = $region12
      $region11: #{image_decoder_forward.7} parent=5 // pred_region
        %s119 = ssub.s32 %s11, 1
        // Predicated region
        $region13: #{image_decoder_forward.7} parent=11 // pred_check
          %p120 = pneg %p58
        $region14: #{image_decoder_forward.7} parent=11 // pred_check_branch
          %122 = sbr.rel (%p120) target = $region16
        $region15: #{image_decoder_forward.7} parent=11 // pred_region
          %s124 = ssub.s32 2048, 2048
          %125 = vsyncadd [#allocation3], %s124
          %s126 = sshll.u32 [#allocation2], 4
          %s127 = int_to_ptr.vmem [resolvable:$true] %s126
          %132 = dma.hbm_to_vmem [thread:$0]  %s1, 2048, %s127, [#allocation3], 64, 64, 4
        $region16: #{image_decoder_forward.7} parent=11 // pred_fallthru
          _
        // Predicated region
        $region17: #{image_decoder_forward.7} parent=11 // pred_check
          %p133 = pneg %p79
        $region18: #{image_decoder_forward.7} parent=11 // pred_check_branch
          %135 = sbr.rel (%p133) target = $region20
        $region19: #{image_decoder_forward.7} parent=11 // pred_region
          %s137 = ssub.s32 16, 16
          %138 = vsyncadd [#allocation5], %s137
          %s140 = sshll.u32 [#allocation4], 4
          %s141 = int_to_ptr.vmem [resolvable:$true] %s140
          %143 = dma.hbm_to_vmem [thread:$0]  %s2, 16, %s141, [#allocation5]
        $region20: #{image_decoder_forward.7} parent=11 // pred_fallthru
          _
      $region12: #{image_decoder_forward.7} parent=5 // pred_fallthru
        _
      %p144 = scmp.lt.s32.totalorder %s11, 2
      // Predicated region
      $region21: #{image_decoder_forward.7} parent=5 // pred_check
        %p145 = pneg %p144
      $region22: #{image_decoder_forward.7} parent=5 // pred_check_branch
        %147 = sbr.rel (%p145) target = $region24
      $region23: #{image_decoder_forward.7} parent=5 // pred_region
        // Predicated region
        $region25: #{image_decoder_forward.7} parent=23 // pred_check
          %p148 = pneg %p31
        $region26: #{image_decoder_forward.7} parent=23 // pred_check_branch
          %150 = sbr.rel (%p148) target = $region28
        $region27: #{image_decoder_forward.7} parent=23 // pred_region
          %s151 = smul.u32 11, %s11
          %p152 = scmp.lt.s32.totalorder %s151, 21
          %s153 = scalar_select %p152, %s151, 21
          %s154 = smul.addr %s153, 2
          %s155 = smul.addr %s154, 4
          %s156 = scalar_lea.vmem %s0, %s155
          %s157 = smul.u32 11, %s11
        $region28: #{image_decoder_forward.7} parent=23 // pred_fallthru
          _
      $region24: #{image_decoder_forward.7} parent=5 // pred_fallthru
        _
      %p158 = scmp.le.s32.totalorder 1, %s11
      %p159 = scmp.lt.s32.totalorder %s11, 3
      %p160 = pnand %p158, %p159
      %p161 = pneg %p160
      // Predicated region
      $region29: #{image_decoder_forward.7} parent=5 // pred_check
        _
      $region30: #{image_decoder_forward.7} parent=5 // pred_check_branch
        %163 = sbr.rel (%p160) target = $region32
      $region31: #{image_decoder_forward.7} parent=5 // pred_region
        %s164 = ssub.s32 %s11, 1
        // Predicated region
        $region33: #{image_decoder_forward.7} parent=31 // pred_check
          %p165 = pneg %p58
        $region34: #{image_decoder_forward.7} parent=31 // pred_check_branch
          %167 = sbr.rel (%p165) target = $region36
        $region35: #{image_decoder_forward.7} parent=31 // pred_region
          %168 = dma.done [#allocation3], 2048
        $region36: #{image_decoder_forward.7} parent=31 // pred_fallthru
          _
        // Predicated region
        $region37: #{image_decoder_forward.7} parent=31 // pred_check
          %p169 = pneg %p79
        $region38: #{image_decoder_forward.7} parent=31 // pred_check_branch
          %171 = sbr.rel (%p169) target = $region40
        $region39: #{image_decoder_forward.7} parent=31 // pred_region
          %172 = dma.done [#allocation5], 16
        $region40: #{image_decoder_forward.7} parent=31 // pred_fallthru
          _
        %s173 = smul.u32 11, %s16
        %p174 = scmp.lt.s32.totalorder %s173, 21
        %s175 = scalar_select %p174, %s173, 21
        %s176 = smul.addr %s175, 2
        %s177 = smul.addr %s176, 4
        %s178 = scalar_lea.vmem %s0, %s177
        %p179 = pneg %p37
        %p180 = pneg %p34
        %p181 = pneg %p58
        %p182 = pneg %p55
        %p183 = pneg %p79
        %p184 = pneg %p76
        %p185 = pneg %p105
        %p186 = pneg %p102
        %s187 = smul.u32 11, %s16
        %p188 = scmp.lt.s32.totalorder %s187, 21
        %s189 = scalar_select %p188, %s187, 21
        %s190 = smul.addr %s189, 4
        %s191 = scalar_lea.vmem %s3, %s190
        %s192 = smul.u32 11, %s16
        %p193 = scmp.lt.s32.totalorder %s192, 21
        %s194 = scalar_select %p193, %s192, 21
        %s195 = smul.addr %s194, 2
        %s196 = smul.addr %s195, 4
        %s197 = scalar_lea.vmem %s0, %s196
        %s198 = smul.u32 11, %s16
        %s199 = smul.u32 11, %s16
        %p200 = scmp.lt.s32.totalorder %s199, 21
        %s201 = scalar_select %p200, %s199, 21
        %s202 = smul.addr %s201, 4
        %s203 = scalar_lea.vmem %s3, %s202
        %s204 = smul.u32 11, %s16
        %v206 = vld [vmem:[%s197] sm:$0xff]
        %v207 = vld [vmem:[%s197 + $0x8] sm:$0xff]
        %v208 = vld [vmem:[%s197 + $0x10] sm:$0xff]
        %v209 = vld [vmem:[%s197 + $0x18] sm:$0xff]
        %v210 = vld [vmem:[%s197 + $0x20] sm:$0xff]
        %v211 = vld [vmem:[%s197 + $0x28] sm:$0xff]
        %v212 = vld [vmem:[%s197 + $0x30] sm:$0xff]
        %v213 = vld [vmem:[%s197 + $0x38] sm:$0xff]
        %v214 = vld [vmem:[%s197 + $0x40] sm:$0xff]
        %v215 = vld [vmem:[%s197 + $0x48] sm:$0xff]
        %v216 = vld [vmem:[%s197 + $0x50] sm:$0xff]
        %v217 = vld [vmem:[#allocation2] sm:$0xf]
        %v218 = vld [vmem:[#allocation2 + $0x4] sm:$0xf]
        %v219 = vld [vmem:[#allocation2 + $0x8] sm:$0xf]
        %v220 = vld [vmem:[#allocation2 + $0xc] sm:$0xf]
        %v221 = vld [vmem:[#allocation2 + $0x10] sm:$0xf]
        %v222 = vld [vmem:[#allocation2 + $0x14] sm:$0xf]
        %v223 = vld [vmem:[#allocation2 + $0x18] sm:$0xf]
        %v224 = vld [vmem:[#allocation2 + $0x1c] sm:$0xf]
        %v225 = vld [vmem:[#allocation2 + $0x20] sm:$0xf]
        %v226 = vld [vmem:[#allocation2 + $0x24] sm:$0xf]
        %v227 = vld [vmem:[#allocation2 + $0x28] sm:$0xf]
        %v228 = vld [vmem:[#allocation2 + $0x2c] sm:$0xf]
        %v229 = vld [vmem:[#allocation2 + $0x30] sm:$0xf]
        %v230 = vld [vmem:[#allocation2 + $0x34] sm:$0xf]
        %v231 = vld [vmem:[#allocation2 + $0x38] sm:$0xf]
        %v232 = vld [vmem:[#allocation2 + $0x3c] sm:$0xf]
        %v233 = vld [vmem:[#allocation2 + $0x40] sm:$0xf]
        %v234 = vld [vmem:[#allocation2 + $0x44] sm:$0xf]
        %v235 = vld [vmem:[#allocation2 + $0x48] sm:$0xf]
        %v236 = vld [vmem:[#allocation2 + $0x4c] sm:$0xf]
        %v237 = vld [vmem:[#allocation2 + $0x50] sm:$0xf]
        %v238 = vld [vmem:[#allocation2 + $0x54] sm:$0xf]
        %v239 = vld [vmem:[#allocation2 + $0x58] sm:$0xf]
        %v240 = vld [vmem:[#allocation2 + $0x5c] sm:$0xf]
        %v241 = vld [vmem:[#allocation2 + $0x60] sm:$0xf]
        %v242 = vld [vmem:[#allocation2 + $0x64] sm:$0xf]
        %v243 = vld [vmem:[#allocation2 + $0x68] sm:$0xf]
        %v244 = vld [vmem:[#allocation2 + $0x6c] sm:$0xf]
        %v245 = vld [vmem:[#allocation2 + $0x70] sm:$0xf]
        %v246 = vld [vmem:[#allocation2 + $0x74] sm:$0xf]
        %v247 = vld [vmem:[#allocation2 + $0x78] sm:$0xf]
        %v248 = vld [vmem:[#allocation2 + $0x7c] sm:$0xf]
        %v249 = vld [vmem:[#allocation4] sm:$0x1]
        %v251 = vlaneseq
        %v252 = vshrl.u32 %v251, 7
        %v253 = vsub.s32 0, %v252
        %v254 = vrot.slane %v249, %v253
        %v267 = vunpack.c.l.b16 %v206
        %v268 = vunpack.c.h.b16 %v206
        %v269 = vunpack.c.l.b16 %v207
        %v270 = vunpack.c.h.b16 %v207
        %v271 = vunpack.c.l.b16 %v208
        %v272 = vunpack.c.h.b16 %v208
        %v273 = vunpack.c.l.b16 %v209
        %v274 = vunpack.c.h.b16 %v209
        %v275 = vunpack.c.l.b16 %v210
        %v276 = vunpack.c.h.b16 %v210
        %v277 = vunpack.c.l.b16 %v211
        %v278 = vunpack.c.h.b16 %v211
        %v279 = vunpack.c.l.b16 %v212
        %v280 = vunpack.c.h.b16 %v212
        %v281 = vunpack.c.l.b16 %v213
        %v282 = vunpack.c.h.b16 %v213
        %v283 = vunpack.c.l.b16 %v214
        %v284 = vunpack.c.h.b16 %v214
        %v285 = vunpack.c.l.b16 %v215
        %v286 = vunpack.c.h.b16 %v215
        %v287 = vunpack.c.l.b16 %v216
        %v288 = vunpack.c.h.b16 %v216
        %v289 = vpack.c.b16 %v269, %v267
        %v290 = vpack.c.b16 %v270, %v268
        %v291 = vpack.c.b16 %v273, %v271
        %v292 = vpack.c.b16 %v274, %v272
        %v293 = vpack.c.b16 %v277, %v275
        %v294 = vpack.c.b16 %v278, %v276
        %v295 = vpack.c.b16 %v281, %v279
        %v296 = vpack.c.b16 %v282, %v280
        %v297 = vpack.c.b16 %v285, %v283
        %v298 = vpack.c.b16 %v286, %v284
        %v299 = vpack.c.b16 %v287, %v287
        %v300 = vpack.c.b16 %v288, %v288
        %v345 = vunpack.c.l.b16 %v217
        %v346 = vunpack.c.l.b16 %v218
        %v347 = vunpack.c.l.b16 %v219
        %v348 = vunpack.c.l.b16 %v220
        %v349 = vunpack.c.l.b16 %v221
        %v350 = vunpack.c.l.b16 %v222
        %v351 = vunpack.c.l.b16 %v223
        %v352 = vunpack.c.l.b16 %v224
        %v353 = vunpack.c.l.b16 %v225
        %v354 = vunpack.c.l.b16 %v226
        %v355 = vunpack.c.l.b16 %v227
        %v356 = vunpack.c.l.b16 %v228
        %v357 = vunpack.c.l.b16 %v229
        %v358 = vunpack.c.l.b16 %v230
        %v359 = vunpack.c.l.b16 %v231
        %v360 = vunpack.c.l.b16 %v232
        %v361 = vunpack.c.l.b16 %v233
        %v362 = vunpack.c.l.b16 %v234
        %v363 = vunpack.c.l.b16 %v235
        %v364 = vunpack.c.l.b16 %v236
        %v365 = vunpack.c.l.b16 %v237
        %v366 = vunpack.c.l.b16 %v238
        %v367 = vunpack.c.l.b16 %v239
        %v368 = vunpack.c.l.b16 %v240
        %v369 = vunpack.c.l.b16 %v241
        %v370 = vunpack.c.l.b16 %v242
        %v371 = vunpack.c.l.b16 %v243
        %v372 = vunpack.c.l.b16 %v244
        %v373 = vunpack.c.l.b16 %v245
        %v374 = vunpack.c.l.b16 %v246
        %v375 = vunpack.c.l.b16 %v247
        %v376 = vunpack.c.l.b16 %v248
        %v377 = vpack.c.b16 %v346, %v345
        %v378 = vpack.c.b16 %v348, %v347
        %v379 = vpack.c.b16 %v350, %v349
        %v380 = vpack.c.b16 %v352, %v351
        %v381 = vpack.c.b16 %v354, %v353
        %v382 = vpack.c.b16 %v356, %v355
        %v383 = vpack.c.b16 %v358, %v357
        %v384 = vpack.c.b16 %v360, %v359
        %v385 = vpack.c.b16 %v362, %v361
        %v386 = vpack.c.b16 %v364, %v363
        %v387 = vpack.c.b16 %v366, %v365
        %v388 = vpack.c.b16 %v368, %v367
        %v389 = vpack.c.b16 %v370, %v369
        %v390 = vpack.c.b16 %v372, %v371
        %v391 = vpack.c.b16 %v374, %v373
        %v392 = vpack.c.b16 %v376, %v375
        %409 = vmatprep.subr.bf16.mxu0 0
        %410 = vmatpush1.bf16.msra.mxu0 %v384
        %411 = vmatprep.subr.bf16.mxu0 0
        %412 = vmatpush1.bf16.msra.mxu0 %v383
        %413 = vmatprep.subr.bf16.mxu0 0
        %414 = vmatpush1.bf16.msra.mxu0 %v382
        %415 = vmatprep.subr.bf16.mxu0 0
        %416 = vmatpush1.bf16.msra.mxu0 %v381
        %417 = vmatprep.subr.bf16.mxu0 0
        %418 = vmatpush1.bf16.msra.mxu0 %v380
        %419 = vmatprep.subr.bf16.mxu0 0
        %420 = vmatpush1.bf16.msra.mxu0 %v379
        %421 = vmatprep.subr.bf16.mxu0 0
        %422 = vmatpush1.bf16.msra.mxu0 %v378
        %423 = vmatprep.subr.bf16.mxu0 0
        %424 = vmatpush1.bf16.msra.mxu0 %v377
        %425 = vmatprep.subr.bf16.mxu0 0
        %426 = vmatpush2.bf16.msra.mxu0 %v392
        %427 = vmatprep.subr.bf16.mxu0 0
        %428 = vmatpush2.bf16.msra.mxu0 %v391
        %429 = vmatprep.subr.bf16.mxu0 0
        %430 = vmatpush2.bf16.msra.mxu0 %v390
        %431 = vmatprep.subr.bf16.mxu0 0
        %432 = vmatpush2.bf16.msra.mxu0 %v389
        %433 = vmatprep.subr.bf16.mxu0 0
        %434 = vmatpush2.bf16.msra.mxu0 %v388
        %435 = vmatprep.subr.bf16.mxu0 0
        %436 = vmatpush2.bf16.msra.mxu0 %v387
        %437 = vmatprep.subr.bf16.mxu0 0
        %438 = vmatpush2.bf16.msra.mxu0 %v386
        %439 = vmatprep.subr.bf16.mxu0 0
        %440 = vmatpush2.bf16.msra.mxu0 %v385
        %441 = vmatprep.mubr.bf16.mxu0 %v290
        %442 = vmatmul.mubr.bf16.gmra.mxu0 %v289
        %v443 = vpop.f32.mrf.mxu0
        %v444 = vadd.f32 %v254, %v443
        %v445 = vpop.f32.mrf.mxu0
        %v446 = vpop.f32.mrf.mxu0
        %v447 = vadd.f32 %v254, %v446
        %v448 = vpop.f32.mrf.mxu0
        %449 = vmatprep.mubr.bf16.mxu0 %v292
        %450 = vmatmul.mubr.bf16.gmra.mxu0 %v291
        %v451 = vpop.f32.mrf.mxu0
        %v452 = vadd.f32 %v254, %v451
        %v453 = vpop.f32.mrf.mxu0
        %v454 = vpop.f32.mrf.mxu0
        %v455 = vadd.f32 %v254, %v454
        %v456 = vpop.f32.mrf.mxu0
        %457 = vmatprep.mubr.bf16.mxu0 %v294
        %458 = vmatmul.mubr.bf16.gmra.mxu0 %v293
        %v459 = vpop.f32.mrf.mxu0
        %v460 = vadd.f32 %v254, %v459
        %v461 = vpop.f32.mrf.mxu0
        %v462 = vpop.f32.mrf.mxu0
        %v463 = vadd.f32 %v254, %v462
        %v464 = vpop.f32.mrf.mxu0
        %465 = vmatprep.mubr.bf16.mxu0 %v296
        %466 = vmatmul.mubr.bf16.gmra.mxu0 %v295
        %v467 = vpop.f32.mrf.mxu0
        %v468 = vadd.f32 %v254, %v467
        %v469 = vpop.f32.mrf.mxu0
        %v470 = vpop.f32.mrf.mxu0
        %v471 = vadd.f32 %v254, %v470
        %v472 = vpop.f32.mrf.mxu0
        %473 = vmatprep.mubr.bf16.mxu0 %v298
        %474 = vmatmul.mubr.bf16.gmra.mxu0 %v297
        %v475 = vpop.f32.mrf.mxu0
        %v476 = vadd.f32 %v254, %v475
        %v477 = vpop.f32.mrf.mxu0
        %v478 = vpop.f32.mrf.mxu0
        %v479 = vadd.f32 %v254, %v478
        %v480 = vpop.f32.mrf.mxu0
        %481 = vmatprep.mubr.bf16.mxu0 %v300
        %482 = vmatmul.mubr.bf16.gmra.mxu0 %v299
        %v483 = vpop.f32.mrf.mxu0
        %v484 = vadd.f32 %v254, %v483
        %v485 = vpop.f32.mrf.mxu0
        %v486 = vpop.f32.mrf.mxu0
        %v487 = vpop.f32.mrf.mxu0
        %488 = vdwg.mxu0
        %v489 = vmax.f32 %v444, 0.0
        %v490 = vmax.f32 %v447, 0.0
        %v491 = vmax.f32 %v452, 0.0
        %v492 = vmax.f32 %v455, 0.0
        %v493 = vmax.f32 %v460, 0.0
        %v494 = vmax.f32 %v463, 0.0
        %v495 = vmax.f32 %v468, 0.0
        %v496 = vmax.f32 %v471, 0.0
        %v497 = vmax.f32 %v476, 0.0
        %v498 = vmax.f32 %v479, 0.0
        %v499 = vmax.f32 %v484, 0.0
        %v500 = vpack.c.bf16 %v490, %v489
        %v501 = vpack.c.bf16 %v492, %v491
        %v502 = vpack.c.bf16 %v494, %v493
        %v503 = vpack.c.bf16 %v496, %v495
        %v504 = vpack.c.bf16 %v498, %v497
        %v505 = vpack.c.bf16 %v499, %v499
        %v512 = vunpack.c.l.b16 %v500
        %v513 = vunpack.c.h.b16 %v500
        %v514 = vunpack.c.l.b16 %v501
        %v515 = vunpack.c.h.b16 %v501
        %v516 = vunpack.c.l.b16 %v502
        %v517 = vunpack.c.h.b16 %v502
        %v518 = vunpack.c.l.b16 %v503
        %v519 = vunpack.c.h.b16 %v503
        %v520 = vunpack.c.l.b16 %v504
        %v521 = vunpack.c.h.b16 %v504
        %v522 = vunpack.c.l.b16 %v505
        %v523 = vpack.c.b16 %v512, %v512
        %v524 = vpack.c.b16 %v513, %v513
        %v525 = vpack.c.b16 %v514, %v514
        %v526 = vpack.c.b16 %v515, %v515
        %v527 = vpack.c.b16 %v516, %v516
        %v528 = vpack.c.b16 %v517, %v517
        %v529 = vpack.c.b16 %v518, %v518
        %v530 = vpack.c.b16 %v519, %v519
        %v531 = vpack.c.b16 %v520, %v520
        %v532 = vpack.c.b16 %v521, %v521
        %v533 = vpack.c.b16 %v522, %v522
        %545 = vst [vmem:[%s203] sm:$0xf] %v523
        %546 = vst [vmem:[%s203 + $0x4] sm:$0xf] %v524
        %547 = vst [vmem:[%s203 + $0x8] sm:$0xf] %v525
        %548 = vst [vmem:[%s203 + $0xc] sm:$0xf] %v526
        %549 = vst [vmem:[%s203 + $0x10] sm:$0xf] %v527
        %550 = vst [vmem:[%s203 + $0x14] sm:$0xf] %v528
        %551 = vst [vmem:[%s203 + $0x18] sm:$0xf] %v529
        %552 = vst [vmem:[%s203 + $0x1c] sm:$0xf] %v530
        %553 = vst [vmem:[%s203 + $0x20] sm:$0xf] %v531
        %554 = vst [vmem:[%s203 + $0x24] sm:$0xf] %v532
        %555 = vst [vmem:[%s203 + $0x28] sm:$0xf] %v533
        %s556 = smul.u32 11, %s16
        %p557 = scmp.lt.s32.totalorder %s556, 21
        %s558 = scalar_select %p557, %s556, 21
        %s559 = smul.addr %s558, 4
        %s560 = scalar_lea.vmem %s3, %s559
        // Predicated region
        $region41: #{image_decoder_forward.7} parent=31 // pred_check
          %p561 = pneg %p102
        $region42: #{image_decoder_forward.7} parent=31 // pred_check_branch
          %563 = sbr.rel (%p561) target = $region44
        $region43: #{image_decoder_forward.7} parent=31 // pred_region
          %s564 = smul.u32 11, %s16
        $region44: #{image_decoder_forward.7} parent=31 // pred_fallthru
          _
      $region32: #{image_decoder_forward.7} parent=5 // pred_fallthru
        _
      %p565 = scmp.le.s32.totalorder 2, %s11
      // Predicated region
      $region45: #{image_decoder_forward.7} parent=5 // pred_check
        %p566 = pneg %p565
      $region46: #{image_decoder_forward.7} parent=5 // pred_check_branch
        %568 = sbr.rel (%p566) target = $region48
      $region47: #{image_decoder_forward.7} parent=5 // pred_region
        %s569 = ssub.s32 %s11, 2
        // Predicated region
        $region49: #{image_decoder_forward.7} parent=47 // pred_check
          %p570 = pneg %p108
        $region50: #{image_decoder_forward.7} parent=47 // pred_check_branch
          %572 = sbr.rel (%p570) target = $region52
        $region51: #{image_decoder_forward.7} parent=47 // pred_region
          %s573 = smul.u32 11, %s17
          %p574 = scmp.lt.s32.totalorder %s573, 21
          %s575 = scalar_select %p574, %s573, 21
          %s576 = smul.addr %s575, 4
          %s577 = scalar_lea.vmem %s3, %s576
        $region52: #{image_decoder_forward.7} parent=47 // pred_fallthru
          _
      $region48: #{image_decoder_forward.7} parent=5 // pred_fallthru
        _
    $region6: #{image_decoder_forward.7} parent=1 // loop_footer
      %s15 = sadd.s32 1, %s11
    $region7: #{image_decoder_forward.7} parent=1 // loop_footer_branch
      %10 = sbr.rel target = $region3
    $region8: #{image_decoder_forward.7} parent=1 // loop_exit
      _
    %578 = vsyncpa [#allocation3], 1
    %s579 = scalar_lea.sflag [#allocation3], 1
    %580 = vsyncpa %s579, 1
    %581 = vsyncpa [#allocation5], 1

// kernel: image_decoder_forward.8
$region0: #{image_decoder_forward.8}
  #allocation0 [shape = 'u32[]', space=smem, size = 0x4, offset = 0x4, fixed_abs, tag = 'smem constant byte address 0x4 - core index']
  #allocation1 [shape = 'u32[144,128]{1,0:T(1,128)}', space=vmem, size = 0x12000, scoped, tag = 'internal scratch']
  %s0 = inlined_call_operand.vmem [shape: bf16[768,128], index: 0, kind: input, shape index: {}]
  %s1 = inlined_call_operand.vmem [shape: bf16[128,128], index: 1, kind: input, shape index: {}]
  %s2 = inlined_call_operand.vmem [shape: f32[1,128], index: 2, kind: input, shape index: {}]
  %s3 = inlined_call_operand.vmem [shape: bf16[768,128], index: 3, kind: output, shape index: {}]
  %s4 = sld [smem:[#allocation0]]
  $region45: #{image_decoder_forward.8} parent=0
    _
  %s6 = ssub.s32 1, %s4
  %s7 = scalar_select 0, %s6, %s4
  loop: start=0, step=1, limit=5
  $region2: #{image_decoder_forward.8} parent=0 // loop_pre_header
    _
  $region3: #{image_decoder_forward.8} parent=0 // loop_header
    %s9 = sphi 0, %s13
    %p10 = scmp.ge.s32.totalorder %s9, 5
    %s19 = sphi 0, %s21
    %s22 = sphi 0, %s19
    %s23 = sphi 0, %s22
    %s39 = sphi 0, %s23
    %s43 = sphi 0, %s43
    %s45 = sphi 0, %s43
    %s46 = sphi 0, %s45
    %s60 = sphi 0, %s46
    %s64 = sphi 0, %s64
    %s66 = sphi 0, %s64
    %s67 = sphi 0, %s66
    %s81 = sphi 0, %s67
    %s87 = sphi 0, %s89
    %s90 = sphi 0, %s87
    %s91 = sphi 0, %s90
    %s107 = sphi 0, %s91
  $region4: #{image_decoder_forward.8} parent=0 // loop_header_branch
    %12 = sbr.rel (%p10) target = $region8
  $region5: #{image_decoder_forward.8} parent=0 // loop_body
    %s14 = ssub.s32 %s9, 1
    %s15 = ssub.s32 %s9, 2
    %s16 = sadd.s32 %s9, 1
    %s17 = ssub.s32 %s9, %s16
    %p18 = scmp.eq.s32.totalorder %s17, 0
    %s20 = sadd.s32 %s19, 1
    %s21 = scalar_select %p18, %s19, %s20
    %p24 = pneg %p18
    %p25 = scmp.eq.s32.totalorder %s9, 2
    %p26 = por %p24, %p25
    %p27 = scmp.ne.s32.totalorder %s19, %s22
    %p28 = scmp.eq.s32.totalorder %s9, 0
    %p29 = por %p27, %p28
    %p30 = scmp.ne.s32.totalorder %s19, %s22
    %p31 = scmp.eq.s32.totalorder %s14, 2
    %p32 = por %p30, %p31
    %p33 = scmp.ne.s32.totalorder %s22, %s23
    %p34 = scmp.eq.s32.totalorder %s14, 0
    %p35 = por %p33, %p34
    %p36 = scmp.ne.s32.totalorder %s22, %s23
    %p37 = scmp.eq.s32.totalorder %s15, 2
    %p38 = por %p36, %p37
    %p40 = scmp.ne.s32.totalorder %s23, %s39
    %p41 = scmp.eq.s32.totalorder %s15, 0
    %p42 = por %p40, %p41
    %s44 = sadd.s32 %s43, 1
    %p47 = scmp.eq.s32.totalorder %s9, 2
    %p48 = scmp.ne.s32.totalorder %s43, %s45
    %p49 = scmp.eq.s32.totalorder %s9, 0
    %p50 = por %p48, %p49
    %p51 = scmp.ne.s32.totalorder %s43, %s45
    %p52 = scmp.eq.s32.totalorder %s14, 2
    %p53 = por %p51, %p52
    %p54 = scmp.ne.s32.totalorder %s45, %s46
    %p55 = scmp.eq.s32.totalorder %s14, 0
    %p56 = por %p54, %p55
    %p57 = scmp.ne.s32.totalorder %s45, %s46
    %p58 = scmp.eq.s32.totalorder %s15, 2
    %p59 = por %p57, %p58
    %p61 = scmp.ne.s32.totalorder %s46, %s60
    %p62 = scmp.eq.s32.totalorder %s15, 0
    %p63 = por %p61, %p62
    %s65 = sadd.s32 %s64, 1
    %p68 = scmp.eq.s32.totalorder %s9, 2
    %p69 = scmp.ne.s32.totalorder %s64, %s66
    %p70 = scmp.eq.s32.totalorder %s9, 0
    %p71 = por %p69, %p70
    %p72 = scmp.ne.s32.totalorder %s64, %s66
    %p73 = scmp.eq.s32.totalorder %s14, 2
    %p74 = por %p72, %p73
    %p75 = scmp.ne.s32.totalorder %s66, %s67
    %p76 = scmp.eq.s32.totalorder %s14, 0
    %p77 = por %p75, %p76
    %p78 = scmp.ne.s32.totalorder %s66, %s67
    %p79 = scmp.eq.s32.totalorder %s15, 2
    %p80 = por %p78, %p79
    %p82 = scmp.ne.s32.totalorder %s67, %s81
    %p83 = scmp.eq.s32.totalorder %s15, 0
    %p84 = por %p82, %p83
    %s85 = ssub.s32 %s9, %s16
    %p86 = scmp.eq.s32.totalorder %s85, 0
    %s88 = sadd.s32 %s87, 1
    %s89 = scalar_select %p86, %s87, %s88
    %p92 = pneg %p86
    %p93 = scmp.eq.s32.totalorder %s9, 2
    %p94 = por %p92, %p93
    %p95 = scmp.ne.s32.totalorder %s87, %s90
    %p96 = scmp.eq.s32.totalorder %s9, 0
    %p97 = por %p95, %p96
    %p98 = scmp.ne.s32.totalorder %s87, %s90
    %p99 = scmp.eq.s32.totalorder %s14, 2
    %p100 = por %p98, %p99
    %p101 = scmp.ne.s32.totalorder %s90, %s91
    %p102 = scmp.eq.s32.totalorder %s14, 0
    %p103 = por %p101, %p102
    %p104 = scmp.ne.s32.totalorder %s90, %s91
    %p105 = scmp.eq.s32.totalorder %s15, 2
    %p106 = por %p104, %p105
    %p108 = scmp.ne.s32.totalorder %s91, %s107
    %p109 = scmp.eq.s32.totalorder %s15, 0
    %p110 = por %p108, %p109
    %p111 = scmp.le.s32.totalorder 1, %s9
    %p112 = scmp.lt.s32.totalorder %s9, 4
    %p113 = pnand %p111, %p112
    %p114 = pneg %p113
    // Predicated region
    $region9: #{image_decoder_forward.8} parent=5 // pred_check
      _
    $region10: #{image_decoder_forward.8} parent=5 // pred_check_branch
      %116 = sbr.rel (%p113) target = $region12
    $region11: #{image_decoder_forward.8} parent=5 // pred_region
      %s117 = ssub.s32 %s9, 1
      // Predicated region
      $region13: #{image_decoder_forward.8} parent=11 // pred_check
        %p118 = pneg %p56
      $region14: #{image_decoder_forward.8} parent=11 // pred_check_branch
        %120 = sbr.rel (%p118) target = $region16
      $region15: #{image_decoder_forward.8} parent=11 // pred_region
        _
      $region16: #{image_decoder_forward.8} parent=11 // pred_fallthru
        _
      // Predicated region
      $region17: #{image_decoder_forward.8} parent=11 // pred_check
        %p121 = pneg %p77
      $region18: #{image_decoder_forward.8} parent=11 // pred_check_branch
        %123 = sbr.rel (%p121) target = $region20
      $region19: #{image_decoder_forward.8} parent=11 // pred_region
        _
      $region20: #{image_decoder_forward.8} parent=11 // pred_fallthru
        _
    $region12: #{image_decoder_forward.8} parent=5 // pred_fallthru
      _
    %p124 = scmp.lt.s32.totalorder %s9, 3
    // Predicated region
    $region21: #{image_decoder_forward.8} parent=5 // pred_check
      %p125 = pneg %p124
    $region22: #{image_decoder_forward.8} parent=5 // pred_check_branch
      %127 = sbr.rel (%p125) target = $region24
    $region23: #{image_decoder_forward.8} parent=5 // pred_region
      // Predicated region
      $region25: #{image_decoder_forward.8} parent=23 // pred_check
        %p128 = pneg %p29
      $region26: #{image_decoder_forward.8} parent=23 // pred_check_branch
        %130 = sbr.rel (%p128) target = $region28
      $region27: #{image_decoder_forward.8} parent=23 // pred_region
        %s131 = smul.u32 32, %s9
        %p132 = scmp.lt.s32.totalorder %s131, 95
        %s133 = scalar_select %p132, %s131, 95
        %s134 = smul.addr %s133, 4
        %s135 = scalar_lea.vmem %s0, %s134
        %s136 = smul.u32 32, %s9
      $region28: #{image_decoder_forward.8} parent=23 // pred_fallthru
        _
    $region24: #{image_decoder_forward.8} parent=5 // pred_fallthru
      _
    %p137 = scmp.le.s32.totalorder 1, %s9
    %p138 = scmp.lt.s32.totalorder %s9, 4
    %p139 = pnand %p137, %p138
    %p140 = pneg %p139
    // Predicated region
    $region29: #{image_decoder_forward.8} parent=5 // pred_check
      _
    $region30: #{image_decoder_forward.8} parent=5 // pred_check_branch
      %142 = sbr.rel (%p139) target = $region32
    $region31: #{image_decoder_forward.8} parent=5 // pred_region
      %s143 = ssub.s32 %s9, 1
      %s144 = smul.u32 32, %s14
      %p145 = scmp.lt.s32.totalorder %s144, 95
      %s146 = scalar_select %p145, %s144, 95
      %s147 = smul.addr %s146, 4
      %s148 = scalar_lea.vmem %s0, %s147
      %p149 = pneg %p35
      %p150 = pneg %p32
      %p151 = pneg %p56
      %p152 = pneg %p53
      %p153 = pneg %p77
      %p154 = pneg %p74
      %p155 = pneg %p103
      %p156 = pneg %p100
      %s157 = smul.u32 32, %s14
      %p158 = scmp.lt.s32.totalorder %s157, 95
      %s159 = scalar_select %p158, %s157, 95
      %s160 = smul.addr %s159, 4
      %s161 = scalar_lea.vmem %s3, %s160
      %s162 = smul.u32 32, %s14
      %p163 = scmp.lt.s32.totalorder %s162, 95
      %s164 = scalar_select %p163, %s162, 95
      %s165 = smul.addr %s164, 4
      %s166 = scalar_lea.vmem %s0, %s165
      %s167 = smul.u32 32, %s14
      %s168 = smul.u32 32, %s14
      %p169 = scmp.lt.s32.totalorder %s168, 95
      %s170 = scalar_select %p169, %s168, 95
      %s171 = smul.addr %s170, 4
      %s172 = scalar_lea.vmem %s3, %s171
      %s173 = smul.u32 32, %s14
      %v175 = vld [vmem:[%s166] sm:$0xf]
      %v176 = vld [vmem:[%s166 + $0x4] sm:$0xf]
      %v177 = vld [vmem:[%s166 + $0x8] sm:$0xf]
      %v178 = vld [vmem:[%s166 + $0xc] sm:$0xf]
      %v179 = vld [vmem:[%s166 + $0x10] sm:$0xf]
      %v180 = vld [vmem:[%s166 + $0x14] sm:$0xf]
      %v181 = vld [vmem:[%s166 + $0x18] sm:$0xf]
      %v182 = vld [vmem:[%s166 + $0x1c] sm:$0xf]
      %v183 = vld [vmem:[%s166 + $0x20] sm:$0xf]
      %v184 = vld [vmem:[%s166 + $0x24] sm:$0xf]
      %v185 = vld [vmem:[%s166 + $0x28] sm:$0xf]
      %v186 = vld [vmem:[%s166 + $0x2c] sm:$0xf]
      %v187 = vld [vmem:[%s166 + $0x30] sm:$0xf]
      %v188 = vld [vmem:[%s166 + $0x34] sm:$0xf]
      %v189 = vld [vmem:[%s166 + $0x38] sm:$0xf]
      %v190 = vld [vmem:[%s166 + $0x3c] sm:$0xf]
      %v191 = vld [vmem:[%s166 + $0x40] sm:$0xf]
      %v192 = vld [vmem:[%s166 + $0x44] sm:$0xf]
      %v193 = vld [vmem:[%s166 + $0x48] sm:$0xf]
      %v194 = vld [vmem:[%s166 + $0x4c] sm:$0xf]
      %v195 = vld [vmem:[%s166 + $0x50] sm:$0xf]
      %v196 = vld [vmem:[%s166 + $0x54] sm:$0xf]
      %v197 = vld [vmem:[%s166 + $0x58] sm:$0xf]
      %v198 = vld [vmem:[%s166 + $0x5c] sm:$0xf]
      %v199 = vld [vmem:[%s166 + $0x60] sm:$0xf]
      %v200 = vld [vmem:[%s166 + $0x64] sm:$0xf]
      %v201 = vld [vmem:[%s166 + $0x68] sm:$0xf]
      %v202 = vld [vmem:[%s166 + $0x6c] sm:$0xf]
      %v203 = vld [vmem:[%s166 + $0x70] sm:$0xf]
      %v204 = vld [vmem:[%s166 + $0x74] sm:$0xf]
      %v205 = vld [vmem:[%s166 + $0x78] sm:$0xf]
      %v206 = vld [vmem:[%s166 + $0x7c] sm:$0xf]
      %v207 = vld [vmem:[%s1] sm:$0xf]
      %v208 = vld [vmem:[%s1 + $0x4] sm:$0xf]
      %v209 = vld [vmem:[%s1 + $0x8] sm:$0xf]
      %v210 = vld [vmem:[%s1 + $0xc] sm:$0xf]
      %v211 = vld [vmem:[%s1 + $0x10] sm:$0xf]
      %v212 = vld [vmem:[%s1 + $0x14] sm:$0xf]
      %v213 = vld [vmem:[%s1 + $0x18] sm:$0xf]
      %v214 = vld [vmem:[%s1 + $0x1c] sm:$0xf]
      %v215 = vld [vmem:[%s1 + $0x20] sm:$0xf]
      %v216 = vld [vmem:[%s1 + $0x24] sm:$0xf]
      %v217 = vld [vmem:[%s1 + $0x28] sm:$0xf]
      %v218 = vld [vmem:[%s1 + $0x2c] sm:$0xf]
      %v219 = vld [vmem:[%s1 + $0x30] sm:$0xf]
      %v220 = vld [vmem:[%s1 + $0x34] sm:$0xf]
      %v221 = vld [vmem:[%s1 + $0x38] sm:$0xf]
      %v222 = vld [vmem:[%s1 + $0x3c] sm:$0xf]
      %v223 = vld [vmem:[%s2] sm:$0x1]
      %v225 = vlaneseq
      %v226 = vshrl.u32 %v225, 7
      %v227 = vsub.s32 0, %v226
      %v228 = vrot.slane %v223, %v227
      %v262 = vunpack.c.l.b16 %v175
      %v263 = vunpack.c.l.b16 %v176
      %v264 = vunpack.c.l.b16 %v177
      %v265 = vunpack.c.l.b16 %v178
      %v266 = vunpack.c.l.b16 %v179
      %v267 = vunpack.c.l.b16 %v180
      %v268 = vunpack.c.l.b16 %v181
      %v269 = vunpack.c.l.b16 %v182
      %v270 = vunpack.c.l.b16 %v183
      %v271 = vunpack.c.l.b16 %v184
      %v272 = vunpack.c.l.b16 %v185
      %v273 = vunpack.c.l.b16 %v186
      %v274 = vunpack.c.l.b16 %v187
      %v275 = vunpack.c.l.b16 %v188
      %v276 = vunpack.c.l.b16 %v189
      %v277 = vunpack.c.l.b16 %v190
      %v278 = vunpack.c.l.b16 %v191
      %v279 = vunpack.c.l.b16 %v192
      %v280 = vunpack.c.l.b16 %v193
      %v281 = vunpack.c.l.b16 %v194
      %v282 = vunpack.c.l.b16 %v195
      %v283 = vunpack.c.l.b16 %v196
      %v284 = vunpack.c.l.b16 %v197
      %v285 = vunpack.c.l.b16 %v198
      %v286 = vunpack.c.l.b16 %v199
      %v287 = vunpack.c.l.b16 %v200
      %v288 = vunpack.c.l.b16 %v201
      %v289 = vunpack.c.l.b16 %v202
      %v290 = vunpack.c.l.b16 %v203
      %v291 = vunpack.c.l.b16 %v204
      %v292 = vunpack.c.l.b16 %v205
      %v293 = vunpack.c.l.b16 %v206
      %v294 = vpack.c.b16 %v263, %v262
      %v295 = vpack.c.b16 %v265, %v264
      %v296 = vpack.c.b16 %v267, %v266
      %v297 = vpack.c.b16 %v269, %v268
      %v298 = vpack.c.b16 %v271, %v270
      %v299 = vpack.c.b16 %v273, %v272
      %v300 = vpack.c.b16 %v275, %v274
      %v301 = vpack.c.b16 %v277, %v276
      %v302 = vpack.c.b16 %v279, %v278
      %v303 = vpack.c.b16 %v281, %v280
      %v304 = vpack.c.b16 %v283, %v282
      %v305 = vpack.c.b16 %v285, %v284
      %v306 = vpack.c.b16 %v287, %v286
      %v307 = vpack.c.b16 %v289, %v288
      %v308 = vpack.c.b16 %v291, %v290
      %v309 = vpack.c.b16 %v293, %v292
      %v342 = vunpack.c.l.b16 %v207
      %v343 = vunpack.c.l.b16 %v208
      %v344 = vunpack.c.l.b16 %v209
      %v345 = vunpack.c.l.b16 %v210
      %v346 = vunpack.c.l.b16 %v211
      %v347 = vunpack.c.l.b16 %v212
      %v348 = vunpack.c.l.b16 %v213
      %v349 = vunpack.c.l.b16 %v214
      %v350 = vunpack.c.l.b16 %v215
      %v351 = vunpack.c.l.b16 %v216
      %v352 = vunpack.c.l.b16 %v217
      %v353 = vunpack.c.l.b16 %v218
      %v354 = vunpack.c.l.b16 %v219
      %v355 = vunpack.c.l.b16 %v220
      %v356 = vunpack.c.l.b16 %v221
      %v357 = vunpack.c.l.b16 %v222
      %v358 = vpack.c.b16 %v343, %v342
      %v359 = vpack.c.b16 %v345, %v344
      %v360 = vpack.c.b16 %v347, %v346
      %v361 = vpack.c.b16 %v349, %v348
      %v362 = vpack.c.b16 %v351, %v350
      %v363 = vpack.c.b16 %v353, %v352
      %v364 = vpack.c.b16 %v355, %v354
      %v365 = vpack.c.b16 %v357, %v356
      %374 = vmatprep.subr.bf16.mxu0 0
      %375 = vmatpush1.bf16.msra.mxu0 %v365
      %376 = vmatprep.subr.bf16.mxu0 0
      %377 = vmatpush1.bf16.msra.mxu0 %v364
      %378 = vmatprep.subr.bf16.mxu0 0
      %379 = vmatpush1.bf16.msra.mxu0 %v363
      %380 = vmatprep.subr.bf16.mxu0 0
      %381 = vmatpush1.bf16.msra.mxu0 %v362
      %382 = vmatprep.subr.bf16.mxu0 0
      %383 = vmatpush1.bf16.msra.mxu0 %v361
      %384 = vmatprep.subr.bf16.mxu0 0
      %385 = vmatpush1.bf16.msra.mxu0 %v360
      %386 = vmatprep.subr.bf16.mxu0 0
      %387 = vmatpush1.bf16.msra.mxu0 %v359
      %388 = vmatprep.subr.bf16.mxu0 0
      %389 = vmatpush1.bf16.msra.mxu0 %v358
      %390 = vmatprep.subr.bf16.mxu0 0
      %391 = vmatpush2.bf16.msra.mxu0 0
      %392 = vmatprep.subr.bf16.mxu0 0
      %393 = vmatpush2.bf16.msra.mxu0 0
      %394 = vmatprep.subr.bf16.mxu0 0
      %395 = vmatpush2.bf16.msra.mxu0 0
      %396 = vmatprep.subr.bf16.mxu0 0
      %397 = vmatpush2.bf16.msra.mxu0 0
      %398 = vmatprep.subr.bf16.mxu0 0
      %399 = vmatpush2.bf16.msra.mxu0 0
      %400 = vmatprep.subr.bf16.mxu0 0
      %401 = vmatpush2.bf16.msra.mxu0 0
      %402 = vmatprep.subr.bf16.mxu0 0
      %403 = vmatpush2.bf16.msra.mxu0 0
      %404 = vmatprep.subr.bf16.mxu0 0
      %405 = vmatpush2.bf16.msra.mxu0 0
      %406 = vmatprep.mubr.bf16.mxu0 0
      %407 = vmatmul.mubr.bf16.gmra.mxu0 %v294
      %v408 = vpop.f32.mrf.mxu0
      %v409 = vadd.f32 %v228, %v408
      %v410 = vpop.f32.mrf.mxu0
      %v411 = vpop.f32.mrf.mxu0
      %v412 = vadd.f32 %v228, %v411
      %v413 = vpop.f32.mrf.mxu0
      %414 = vmatprep.mubr.bf16.mxu0 0
      %415 = vmatmul.mubr.bf16.gmra.mxu0 %v295
      %v416 = vpop.f32.mrf.mxu0
      %v417 = vadd.f32 %v228, %v416
      %v418 = vpop.f32.mrf.mxu0
      %v419 = vpop.f32.mrf.mxu0
      %v420 = vadd.f32 %v228, %v419
      %v421 = vpop.f32.mrf.mxu0
      %422 = vmatprep.mubr.bf16.mxu0 0
      %423 = vmatmul.mubr.bf16.gmra.mxu0 %v296
      %v424 = vpop.f32.mrf.mxu0
      %v425 = vadd.f32 %v228, %v424
      %v426 = vpop.f32.mrf.mxu0
      %v427 = vpop.f32.mrf.mxu0
      %v428 = vadd.f32 %v228, %v427
      %v429 = vpop.f32.mrf.mxu0
      %430 = vmatprep.mubr.bf16.mxu0 0
      %431 = vmatmul.mubr.bf16.gmra.mxu0 %v297
      %v432 = vpop.f32.mrf.mxu0
      %v433 = vadd.f32 %v228, %v432
      %v434 = vpop.f32.mrf.mxu0
      %v435 = vpop.f32.mrf.mxu0
      %v436 = vadd.f32 %v228, %v435
      %v437 = vpop.f32.mrf.mxu0
      %438 = vmatprep.mubr.bf16.mxu0 0
      %439 = vmatmul.mubr.bf16.gmra.mxu0 %v298
      %v440 = vpop.f32.mrf.mxu0
      %v441 = vadd.f32 %v228, %v440
      %v442 = vpop.f32.mrf.mxu0
      %v443 = vpop.f32.mrf.mxu0
      %v444 = vadd.f32 %v228, %v443
      %v445 = vpop.f32.mrf.mxu0
      %446 = vmatprep.mubr.bf16.mxu0 0
      %447 = vmatmul.mubr.bf16.gmra.mxu0 %v299
      %v448 = vpop.f32.mrf.mxu0
      %v449 = vadd.f32 %v228, %v448
      %v450 = vpop.f32.mrf.mxu0
      %v451 = vpop.f32.mrf.mxu0
      %v452 = vadd.f32 %v228, %v451
      %v453 = vpop.f32.mrf.mxu0
      %454 = vmatprep.mubr.bf16.mxu0 0
      %455 = vmatmul.mubr.bf16.gmra.mxu0 %v300
      %v456 = vpop.f32.mrf.mxu0
      %v457 = vadd.f32 %v228, %v456
      %v458 = vpop.f32.mrf.mxu0
      %v459 = vpop.f32.mrf.mxu0
      %v460 = vadd.f32 %v228, %v459
      %v461 = vpop.f32.mrf.mxu0
      %462 = vmatprep.mubr.bf16.mxu0 0
      %463 = vmatmul.mubr.bf16.gmra.mxu0 %v301
      %v464 = vpop.f32.mrf.mxu0
      %v465 = vadd.f32 %v228, %v464
      %v466 = vpop.f32.mrf.mxu0
      %v467 = vpop.f32.mrf.mxu0
      %v468 = vadd.f32 %v228, %v467
      %v469 = vpop.f32.mrf.mxu0
      %470 = vmatprep.mubr.bf16.mxu0 0
      %471 = vmatmul.mubr.bf16.gmra.mxu0 %v302
      %v472 = vpop.f32.mrf.mxu0
      %v473 = vadd.f32 %v228, %v472
      %v474 = vpop.f32.mrf.mxu0
      %v475 = vpop.f32.mrf.mxu0
      %v476 = vadd.f32 %v228, %v475
      %v477 = vpop.f32.mrf.mxu0
      %478 = vmatprep.mubr.bf16.mxu0 0
      %479 = vmatmul.mubr.bf16.gmra.mxu0 %v303
      %v480 = vpop.f32.mrf.mxu0
      %v481 = vadd.f32 %v228, %v480
      %v482 = vpop.f32.mrf.mxu0
      %v483 = vpop.f32.mrf.mxu0
      %v484 = vadd.f32 %v228, %v483
      %v485 = vpop.f32.mrf.mxu0
      %486 = vmatprep.mubr.bf16.mxu0 0
      %487 = vmatmul.mubr.bf16.gmra.mxu0 %v304
      %v488 = vpop.f32.mrf.mxu0
      %v489 = vadd.f32 %v228, %v488
      %v490 = vpop.f32.mrf.mxu0
      %v491 = vpop.f32.mrf.mxu0
      %v492 = vadd.f32 %v228, %v491
      %v493 = vpop.f32.mrf.mxu0
      %494 = vmatprep.mubr.bf16.mxu0 0
      %495 = vmatmul.mubr.bf16.gmra.mxu0 %v305
      %v496 = vpop.f32.mrf.mxu0
      %v497 = vadd.f32 %v228, %v496
      %v498 = vpop.f32.mrf.mxu0
      %v499 = vpop.f32.mrf.mxu0
      %v500 = vadd.f32 %v228, %v499
      %v501 = vpop.f32.mrf.mxu0
      %502 = vmatprep.mubr.bf16.mxu0 0
      %503 = vmatmul.mubr.bf16.gmra.mxu0 %v306
      %v504 = vpop.f32.mrf.mxu0
      %v505 = vadd.f32 %v228, %v504
      %v506 = vpop.f32.mrf.mxu0
      %v507 = vpop.f32.mrf.mxu0
      %v508 = vadd.f32 %v228, %v507
      %v509 = vpop.f32.mrf.mxu0
      %510 = vmatprep.mubr.bf16.mxu0 0
      %511 = vmatmul.mubr.bf16.gmra.mxu0 %v307
      %v512 = vpop.f32.mrf.mxu0
      %v513 = vadd.f32 %v228, %v512
      %v514 = vpop.f32.mrf.mxu0
      %v515 = vpop.f32.mrf.mxu0
      %v516 = vadd.f32 %v228, %v515
      %v517 = vpop.f32.mrf.mxu0
      %518 = vmatprep.mubr.bf16.mxu0 0
      %519 = vmatmul.mubr.bf16.gmra.mxu0 %v308
      %v520 = vpop.f32.mrf.mxu0
      %v521 = vadd.f32 %v228, %v520
      %v522 = vpop.f32.mrf.mxu0
      %v523 = vpop.f32.mrf.mxu0
      %v524 = vadd.f32 %v228, %v523
      %v525 = vpop.f32.mrf.mxu0
      %526 = vmatprep.mubr.bf16.mxu0 0
      %527 = vmatmul.mubr.bf16.gmra.mxu0 %v309
      %v528 = vpop.f32.mrf.mxu0
      %v529 = vadd.f32 %v228, %v528
      %v530 = vpop.f32.mrf.mxu0
      %v531 = vpop.f32.mrf.mxu0
      %v532 = vadd.f32 %v228, %v531
      %v533 = vpop.f32.mrf.mxu0
      %534 = vdwg.mxu0
      %v535 = vmax.f32 %v409, 0.0
      %v536 = vmax.f32 %v412, 0.0
      %v537 = vmax.f32 %v417, 0.0
      %v538 = vmax.f32 %v420, 0.0
      %v539 = vmax.f32 %v425, 0.0
      %v540 = vmax.f32 %v428, 0.0
      %v541 = vmax.f32 %v433, 0.0
      %v542 = vmax.f32 %v436, 0.0
      %v543 = vmax.f32 %v441, 0.0
      %v544 = vmax.f32 %v444, 0.0
      %v545 = vmax.f32 %v449, 0.0
      %v546 = vmax.f32 %v452, 0.0
      %v547 = vmax.f32 %v457, 0.0
      %v548 = vmax.f32 %v460, 0.0
      %v549 = vmax.f32 %v465, 0.0
      %v550 = vmax.f32 %v468, 0.0
      %v551 = vmax.f32 %v473, 0.0
      %v552 = vmax.f32 %v476, 0.0
      %v553 = vmax.f32 %v481, 0.0
      %v554 = vmax.f32 %v484, 0.0
      %v555 = vmax.f32 %v489, 0.0
      %v556 = vmax.f32 %v492, 0.0
      %v557 = vmax.f32 %v497, 0.0
      %v558 = vmax.f32 %v500, 0.0
      %v559 = vmax.f32 %v505, 0.0
      %v560 = vmax.f32 %v508, 0.0
      %v561 = vmax.f32 %v513, 0.0
      %v562 = vmax.f32 %v516, 0.0
      %v563 = vmax.f32 %v521, 0.0
      %v564 = vmax.f32 %v524, 0.0
      %v565 = vmax.f32 %v529, 0.0
      %v566 = vmax.f32 %v532, 0.0
      %v567 = vpack.c.bf16 %v536, %v535
      %v568 = vpack.c.bf16 %v538, %v537
      %v569 = vpack.c.bf16 %v540, %v539
      %v570 = vpack.c.bf16 %v542, %v541
      %v571 = vpack.c.bf16 %v544, %v543
      %v572 = vpack.c.bf16 %v546, %v545
      %v573 = vpack.c.bf16 %v548, %v547
      %v574 = vpack.c.bf16 %v550, %v549
      %v575 = vpack.c.bf16 %v552, %v551
      %v576 = vpack.c.bf16 %v554, %v553
      %v577 = vpack.c.bf16 %v556, %v555
      %v578 = vpack.c.bf16 %v558, %v557
      %v579 = vpack.c.bf16 %v560, %v559
      %v580 = vpack.c.bf16 %v562, %v561
      %v581 = vpack.c.bf16 %v564, %v563
      %v582 = vpack.c.bf16 %v566, %v565
      %v599 = vunpack.c.l.b16 %v567
      %v600 = vunpack.c.h.b16 %v567
      %v601 = vunpack.c.l.b16 %v568
      %v602 = vunpack.c.h.b16 %v568
      %v603 = vunpack.c.l.b16 %v569
      %v604 = vunpack.c.h.b16 %v569
      %v605 = vunpack.c.l.b16 %v570
      %v606 = vunpack.c.h.b16 %v570
      %v607 = vunpack.c.l.b16 %v571
      %v608 = vunpack.c.h.b16 %v571
      %v609 = vunpack.c.l.b16 %v572
      %v610 = vunpack.c.h.b16 %v572
      %v611 = vunpack.c.l.b16 %v573
      %v612 = vunpack.c.h.b16 %v573
      %v613 = vunpack.c.l.b16 %v574
      %v614 = vunpack.c.h.b16 %v574
      %v615 = vunpack.c.l.b16 %v575
      %v616 = vunpack.c.h.b16 %v575
      %v617 = vunpack.c.l.b16 %v576
      %v618 = vunpack.c.h.b16 %v576
      %v619 = vunpack.c.l.b16 %v577
      %v620 = vunpack.c.h.b16 %v577
      %v621 = vunpack.c.l.b16 %v578
      %v622 = vunpack.c.h.b16 %v578
      %v623 = vunpack.c.l.b16 %v579
      %v624 = vunpack.c.h.b16 %v579
      %v625 = vunpack.c.l.b16 %v580
      %v626 = vunpack.c.h.b16 %v580
      %v627 = vunpack.c.l.b16 %v581
      %v628 = vunpack.c.h.b16 %v581
      %v629 = vunpack.c.l.b16 %v582
      %v630 = vunpack.c.h.b16 %v582
      %v631 = vpack.c.b16 %v599, %v599
      %v632 = vpack.c.b16 %v600, %v600
      %v633 = vpack.c.b16 %v601, %v601
      %v634 = vpack.c.b16 %v602, %v602
      %v635 = vpack.c.b16 %v603, %v603
      %v636 = vpack.c.b16 %v604, %v604
      %v637 = vpack.c.b16 %v605, %v605
      %v638 = vpack.c.b16 %v606, %v606
      %v639 = vpack.c.b16 %v607, %v607
      %v640 = vpack.c.b16 %v608, %v608
      %v641 = vpack.c.b16 %v609, %v609
      %v642 = vpack.c.b16 %v610, %v610
      %v643 = vpack.c.b16 %v611, %v611
      %v644 = vpack.c.b16 %v612, %v612
      %v645 = vpack.c.b16 %v613, %v613
      %v646 = vpack.c.b16 %v614, %v614
      %v647 = vpack.c.b16 %v615, %v615
      %v648 = vpack.c.b16 %v616, %v616
      %v649 = vpack.c.b16 %v617, %v617
      %v650 = vpack.c.b16 %v618, %v618
      %v651 = vpack.c.b16 %v619, %v619
      %v652 = vpack.c.b16 %v620, %v620
      %v653 = vpack.c.b16 %v621, %v621
      %v654 = vpack.c.b16 %v622, %v622
      %v655 = vpack.c.b16 %v623, %v623
      %v656 = vpack.c.b16 %v624, %v624
      %v657 = vpack.c.b16 %v625, %v625
      %v658 = vpack.c.b16 %v626, %v626
      %v659 = vpack.c.b16 %v627, %v627
      %v660 = vpack.c.b16 %v628, %v628
      %v661 = vpack.c.b16 %v629, %v629
      %v662 = vpack.c.b16 %v630, %v630
      %695 = vst [vmem:[%s172] sm:$0xf] %v631
      %696 = vst [vmem:[%s172 + $0x4] sm:$0xf] %v632
      %697 = vst [vmem:[%s172 + $0x8] sm:$0xf] %v633
      %698 = vst [vmem:[%s172 + $0xc] sm:$0xf] %v634
      %699 = vst [vmem:[%s172 + $0x10] sm:$0xf] %v635
      %700 = vst [vmem:[%s172 + $0x14] sm:$0xf] %v636
      %701 = vst [vmem:[%s172 + $0x18] sm:$0xf] %v637
      %702 = vst [vmem:[%s172 + $0x1c] sm:$0xf] %v638
      %703 = vst [vmem:[%s172 + $0x20] sm:$0xf] %v639
      %704 = vst [vmem:[%s172 + $0x24] sm:$0xf] %v640
      %705 = vst [vmem:[%s172 + $0x28] sm:$0xf] %v641
      %706 = vst [vmem:[%s172 + $0x2c] sm:$0xf] %v642
      %707 = vst [vmem:[%s172 + $0x30] sm:$0xf] %v643
      %708 = vst [vmem:[%s172 + $0x34] sm:$0xf] %v644
      %709 = vst [vmem:[%s172 + $0x38] sm:$0xf] %v645
      %710 = vst [vmem:[%s172 + $0x3c] sm:$0xf] %v646
      %711 = vst [vmem:[%s172 + $0x40] sm:$0xf] %v647
      %712 = vst [vmem:[%s172 + $0x44] sm:$0xf] %v648
      %713 = vst [vmem:[%s172 + $0x48] sm:$0xf] %v649
      %714 = vst [vmem:[%s172 + $0x4c] sm:$0xf] %v650
      %715 = vst [vmem:[%s172 + $0x50] sm:$0xf] %v651
      %716 = vst [vmem:[%s172 + $0x54] sm:$0xf] %v652
      %717 = vst [vmem:[%s172 + $0x58] sm:$0xf] %v653
      %718 = vst [vmem:[%s172 + $0x5c] sm:$0xf] %v654
      %719 = vst [vmem:[%s172 + $0x60] sm:$0xf] %v655
      %720 = vst [vmem:[%s172 + $0x64] sm:$0xf] %v656
      %721 = vst [vmem:[%s172 + $0x68] sm:$0xf] %v657
      %722 = vst [vmem:[%s172 + $0x6c] sm:$0xf] %v658
      %723 = vst [vmem:[%s172 + $0x70] sm:$0xf] %v659
      %724 = vst [vmem:[%s172 + $0x74] sm:$0xf] %v660
      %725 = vst [vmem:[%s172 + $0x78] sm:$0xf] %v661
      %726 = vst [vmem:[%s172 + $0x7c] sm:$0xf] %v662
      %s727 = smul.u32 32, %s14
      %p728 = scmp.lt.s32.totalorder %s727, 95
      %s729 = scalar_select %p728, %s727, 95
      %s730 = smul.addr %s729, 4
      %s731 = scalar_lea.vmem %s3, %s730
      // Predicated region
      $region33: #{image_decoder_forward.8} parent=31 // pred_check
        %p732 = pneg %p100
      $region34: #{image_decoder_forward.8} parent=31 // pred_check_branch
        %734 = sbr.rel (%p732) target = $region36
      $region35: #{image_decoder_forward.8} parent=31 // pred_region
        %s735 = smul.u32 32, %s14
      $region36: #{image_decoder_forward.8} parent=31 // pred_fallthru
        _
    $region32: #{image_decoder_forward.8} parent=5 // pred_fallthru
      _
    %p736 = scmp.le.s32.totalorder 2, %s9
    // Predicated region
    $region37: #{image_decoder_forward.8} parent=5 // pred_check
      %p737 = pneg %p736
    $region38: #{image_decoder_forward.8} parent=5 // pred_check_branch
      %739 = sbr.rel (%p737) target = $region40
    $region39: #{image_decoder_forward.8} parent=5 // pred_region
      %s740 = ssub.s32 %s9, 2
      // Predicated region
      $region41: #{image_decoder_forward.8} parent=39 // pred_check
        %p741 = pneg %p106
      $region42: #{image_decoder_forward.8} parent=39 // pred_check_branch
        %743 = sbr.rel (%p741) target = $region44
      $region43: #{image_decoder_forward.8} parent=39 // pred_region
        %s744 = smul.u32 32, %s15
        %p745 = scmp.lt.s32.totalorder %s744, 95
        %s746 = scalar_select %p745, %s744, 95
        %s747 = smul.addr %s746, 4
        %s748 = scalar_lea.vmem %s3, %s747
      $region44: #{image_decoder_forward.8} parent=39 // pred_fallthru
        _
    $region40: #{image_decoder_forward.8} parent=5 // pred_fallthru
      _
  $region6: #{image_decoder_forward.8} parent=0 // loop_footer
    %s13 = sadd.s32 1, %s9
  $region7: #{image_decoder_forward.8} parent=0 // loop_footer_branch
    %8 = sbr.rel target = $region3
  $region8: #{image_decoder_forward.8} parent=0 // loop_exit
    _

// kernel: image_decoder_forward.9
$region0: #{image_decoder_forward.9}
  #allocation0 [shape = 'u32[]', space=smem, size = 0x4, offset = 0x4, fixed_abs, tag = 'smem constant byte address 0x4 - core index']
  #allocation1 [shape = 'u32[144,128]{1,0:T(1,128)}', space=vmem, size = 0x12000, scoped, tag = 'internal scratch']
  %s0 = inlined_call_operand.vmem [shape: bf16[2304,128], index: 0, kind: input, shape index: {}]
  %s1 = inlined_call_operand.vmem [shape: bf16[128,128], index: 1, kind: input, shape index: {}]
  %s2 = inlined_call_operand.vmem [shape: f32[1,128], index: 2, kind: input, shape index: {}]
  %s3 = inlined_call_operand.vmem [shape: bf16[2304,128], index: 3, kind: output, shape index: {}]
  %s4 = sld [smem:[#allocation0]]
  $region45: #{image_decoder_forward.9} parent=0
    _
  %s6 = ssub.s32 1, %s4
  %s7 = scalar_select 0, %s6, %s4
  loop: start=0, step=1, limit=11
  $region2: #{image_decoder_forward.9} parent=0 // loop_pre_header
    _
  $region3: #{image_decoder_forward.9} parent=0 // loop_header
    %s9 = sphi 0, %s13
    %p10 = scmp.ge.s32.totalorder %s9, 11
    %s19 = sphi 0, %s21
    %s22 = sphi 0, %s19
    %s23 = sphi 0, %s22
    %s39 = sphi 0, %s23
    %s43 = sphi 0, %s43
    %s45 = sphi 0, %s43
    %s46 = sphi 0, %s45
    %s60 = sphi 0, %s46
    %s64 = sphi 0, %s64
    %s66 = sphi 0, %s64
    %s67 = sphi 0, %s66
    %s81 = sphi 0, %s67
    %s87 = sphi 0, %s89
    %s90 = sphi 0, %s87
    %s91 = sphi 0, %s90
    %s107 = sphi 0, %s91
  $region4: #{image_decoder_forward.9} parent=0 // loop_header_branch
    %12 = sbr.rel (%p10) target = $region8
  $region5: #{image_decoder_forward.9} parent=0 // loop_body
    %s14 = ssub.s32 %s9, 1
    %s15 = ssub.s32 %s9, 2
    %s16 = sadd.s32 %s9, 1
    %s17 = ssub.s32 %s9, %s16
    %p18 = scmp.eq.s32.totalorder %s17, 0
    %s20 = sadd.s32 %s19, 1
    %s21 = scalar_select %p18, %s19, %s20
    %p24 = pneg %p18
    %p25 = scmp.eq.s32.totalorder %s9, 8
    %p26 = por %p24, %p25
    %p27 = scmp.ne.s32.totalorder %s19, %s22
    %p28 = scmp.eq.s32.totalorder %s9, 0
    %p29 = por %p27, %p28
    %p30 = scmp.ne.s32.totalorder %s19, %s22
    %p31 = scmp.eq.s32.totalorder %s14, 8
    %p32 = por %p30, %p31
    %p33 = scmp.ne.s32.totalorder %s22, %s23
    %p34 = scmp.eq.s32.totalorder %s14, 0
    %p35 = por %p33, %p34
    %p36 = scmp.ne.s32.totalorder %s22, %s23
    %p37 = scmp.eq.s32.totalorder %s15, 8
    %p38 = por %p36, %p37
    %p40 = scmp.ne.s32.totalorder %s23, %s39
    %p41 = scmp.eq.s32.totalorder %s15, 0
    %p42 = por %p40, %p41
    %s44 = sadd.s32 %s43, 1
    %p47 = scmp.eq.s32.totalorder %s9, 8
    %p48 = scmp.ne.s32.totalorder %s43, %s45
    %p49 = scmp.eq.s32.totalorder %s9, 0
    %p50 = por %p48, %p49
    %p51 = scmp.ne.s32.totalorder %s43, %s45
    %p52 = scmp.eq.s32.totalorder %s14, 8
    %p53 = por %p51, %p52
    %p54 = scmp.ne.s32.totalorder %s45, %s46
    %p55 = scmp.eq.s32.totalorder %s14, 0
    %p56 = por %p54, %p55
    %p57 = scmp.ne.s32.totalorder %s45, %s46
    %p58 = scmp.eq.s32.totalorder %s15, 8
    %p59 = por %p57, %p58
    %p61 = scmp.ne.s32.totalorder %s46, %s60
    %p62 = scmp.eq.s32.totalorder %s15, 0
    %p63 = por %p61, %p62
    %s65 = sadd.s32 %s64, 1
    %p68 = scmp.eq.s32.totalorder %s9, 8
    %p69 = scmp.ne.s32.totalorder %s64, %s66
    %p70 = scmp.eq.s32.totalorder %s9, 0
    %p71 = por %p69, %p70
    %p72 = scmp.ne.s32.totalorder %s64, %s66
    %p73 = scmp.eq.s32.totalorder %s14, 8
    %p74 = por %p72, %p73
    %p75 = scmp.ne.s32.totalorder %s66, %s67
    %p76 = scmp.eq.s32.totalorder %s14, 0
    %p77 = por %p75, %p76
    %p78 = scmp.ne.s32.totalorder %s66, %s67
    %p79 = scmp.eq.s32.totalorder %s15, 8
    %p80 = por %p78, %p79
    %p82 = scmp.ne.s32.totalorder %s67, %s81
    %p83 = scmp.eq.s32.totalorder %s15, 0
    %p84 = por %p82, %p83
    %s85 = ssub.s32 %s9, %s16
    %p86 = scmp.eq.s32.totalorder %s85, 0
    %s88 = sadd.s32 %s87, 1
    %s89 = scalar_select %p86, %s87, %s88
    %p92 = pneg %p86
    %p93 = scmp.eq.s32.totalorder %s9, 8
    %p94 = por %p92, %p93
    %p95 = scmp.ne.s32.totalorder %s87, %s90
    %p96 = scmp.eq.s32.totalorder %s9, 0
    %p97 = por %p95, %p96
    %p98 = scmp.ne.s32.totalorder %s87, %s90
    %p99 = scmp.eq.s32.totalorder %s14, 8
    %p100 = por %p98, %p99
    %p101 = scmp.ne.s32.totalorder %s90, %s91
    %p102 = scmp.eq.s32.totalorder %s14, 0
    %p103 = por %p101, %p102
    %p104 = scmp.ne.s32.totalorder %s90, %s91
    %p105 = scmp.eq.s32.totalorder %s15, 8
    %p106 = por %p104, %p105
    %p108 = scmp.ne.s32.totalorder %s91, %s107
    %p109 = scmp.eq.s32.totalorder %s15, 0
    %p110 = por %p108, %p109
    %p111 = scmp.le.s32.totalorder 1, %s9
    %p112 = scmp.lt.s32.totalorder %s9, 10
    %p113 = pnand %p111, %p112
    %p114 = pneg %p113
    // Predicated region
    $region9: #{image_decoder_forward.9} parent=5 // pred_check
      _
    $region10: #{image_decoder_forward.9} parent=5 // pred_check_branch
      %116 = sbr.rel (%p113) target = $region12
    $region11: #{image_decoder_forward.9} parent=5 // pred_region
      %s117 = ssub.s32 %s9, 1
      // Predicated region
      $region13: #{image_decoder_forward.9} parent=11 // pred_check
        %p118 = pneg %p56
      $region14: #{image_decoder_forward.9} parent=11 // pred_check_branch
        %120 = sbr.rel (%p118) target = $region16
      $region15: #{image_decoder_forward.9} parent=11 // pred_region
        _
      $region16: #{image_decoder_forward.9} parent=11 // pred_fallthru
        _
      // Predicated region
      $region17: #{image_decoder_forward.9} parent=11 // pred_check
        %p121 = pneg %p77
      $region18: #{image_decoder_forward.9} parent=11 // pred_check_branch
        %123 = sbr.rel (%p121) target = $region20
      $region19: #{image_decoder_forward.9} parent=11 // pred_region
        _
      $region20: #{image_decoder_forward.9} parent=11 // pred_fallthru
        _
    $region12: #{image_decoder_forward.9} parent=5 // pred_fallthru
      _
    %p124 = scmp.lt.s32.totalorder %s9, 9
    // Predicated region
    $region21: #{image_decoder_forward.9} parent=5 // pred_check
      %p125 = pneg %p124
    $region22: #{image_decoder_forward.9} parent=5 // pred_check_branch
      %127 = sbr.rel (%p125) target = $region24
    $region23: #{image_decoder_forward.9} parent=5 // pred_region
      // Predicated region
      $region25: #{image_decoder_forward.9} parent=23 // pred_check
        %p128 = pneg %p29
      $region26: #{image_decoder_forward.9} parent=23 // pred_check_branch
        %130 = sbr.rel (%p128) target = $region28
      $region27: #{image_decoder_forward.9} parent=23 // pred_region
        %s131 = smul.u32 32, %s9
        %p132 = scmp.lt.s32.totalorder %s131, 287
        %s133 = scalar_select %p132, %s131, 287
        %s134 = smul.addr %s133, 4
        %s135 = scalar_lea.vmem %s0, %s134
        %s136 = smul.u32 32, %s9
      $region28: #{image_decoder_forward.9} parent=23 // pred_fallthru
        _
    $region24: #{image_decoder_forward.9} parent=5 // pred_fallthru
      _
    %p137 = scmp.le.s32.totalorder 1, %s9
    %p138 = scmp.lt.s32.totalorder %s9, 10
    %p139 = pnand %p137, %p138
    %p140 = pneg %p139
    // Predicated region
    $region29: #{image_decoder_forward.9} parent=5 // pred_check
      _
    $region30: #{image_decoder_forward.9} parent=5 // pred_check_branch
      %142 = sbr.rel (%p139) target = $region32
    $region31: #{image_decoder_forward.9} parent=5 // pred_region
      %s143 = ssub.s32 %s9, 1
      %s144 = smul.u32 32, %s14
      %p145 = scmp.lt.s32.totalorder %s144, 287
      %s146 = scalar_select %p145, %s144, 287
      %s147 = smul.addr %s146, 4
      %s148 = scalar_lea.vmem %s0, %s147
      %p149 = pneg %p35
      %p150 = pneg %p32
      %p151 = pneg %p56
      %p152 = pneg %p53
      %p153 = pneg %p77
      %p154 = pneg %p74
      %p155 = pneg %p103
      %p156 = pneg %p100
      %s157 = smul.u32 32, %s14
      %p158 = scmp.lt.s32.totalorder %s157, 287
      %s159 = scalar_select %p158, %s157, 287
      %s160 = smul.addr %s159, 4
      %s161 = scalar_lea.vmem %s3, %s160
      %s162 = smul.u32 32, %s14
      %p163 = scmp.lt.s32.totalorder %s162, 287
      %s164 = scalar_select %p163, %s162, 287
      %s165 = smul.addr %s164, 4
      %s166 = scalar_lea.vmem %s0, %s165
      %s167 = smul.u32 32, %s14
      %s168 = smul.u32 32, %s14
      %p169 = scmp.lt.s32.totalorder %s168, 287
      %s170 = scalar_select %p169, %s168, 287
      %s171 = smul.addr %s170, 4
      %s172 = scalar_lea.vmem %s3, %s171
      %s173 = smul.u32 32, %s14
      %v175 = vld [vmem:[%s166] sm:$0xf]
      %v176 = vld [vmem:[%s166 + $0x4] sm:$0xf]
      %v177 = vld [vmem:[%s166 + $0x8] sm:$0xf]
      %v178 = vld [vmem:[%s166 + $0xc] sm:$0xf]
      %v179 = vld [vmem:[%s166 + $0x10] sm:$0xf]
      %v180 = vld [vmem:[%s166 + $0x14] sm:$0xf]
      %v181 = vld [vmem:[%s166 + $0x18] sm:$0xf]
      %v182 = vld [vmem:[%s166 + $0x1c] sm:$0xf]
      %v183 = vld [vmem:[%s166 + $0x20] sm:$0xf]
      %v184 = vld [vmem:[%s166 + $0x24] sm:$0xf]
      %v185 = vld [vmem:[%s166 + $0x28] sm:$0xf]
      %v186 = vld [vmem:[%s166 + $0x2c] sm:$0xf]
      %v187 = vld [vmem:[%s166 + $0x30] sm:$0xf]
      %v188 = vld [vmem:[%s166 + $0x34] sm:$0xf]
      %v189 = vld [vmem:[%s166 + $0x38] sm:$0xf]
      %v190 = vld [vmem:[%s166 + $0x3c] sm:$0xf]
      %v191 = vld [vmem:[%s166 + $0x40] sm:$0xf]
      %v192 = vld [vmem:[%s166 + $0x44] sm:$0xf]
      %v193 = vld [vmem:[%s166 + $0x48] sm:$0xf]
      %v194 = vld [vmem:[%s166 + $0x4c] sm:$0xf]
      %v195 = vld [vmem:[%s166 + $0x50] sm:$0xf]
      %v196 = vld [vmem:[%s166 + $0x54] sm:$0xf]
      %v197 = vld [vmem:[%s166 + $0x58] sm:$0xf]
      %v198 = vld [vmem:[%s166 + $0x5c] sm:$0xf]
      %v199 = vld [vmem:[%s166 + $0x60] sm:$0xf]
      %v200 = vld [vmem:[%s166 + $0x64] sm:$0xf]
      %v201 = vld [vmem:[%s166 + $0x68] sm:$0xf]
      %v202 = vld [vmem:[%s166 + $0x6c] sm:$0xf]
      %v203 = vld [vmem:[%s166 + $0x70] sm:$0xf]
      %v204 = vld [vmem:[%s166 + $0x74] sm:$0xf]
      %v205 = vld [vmem:[%s166 + $0x78] sm:$0xf]
      %v206 = vld [vmem:[%s166 + $0x7c] sm:$0xf]
      %v207 = vld [vmem:[%s1] sm:$0xf]
      %v208 = vld [vmem:[%s1 + $0x4] sm:$0xf]
      %v209 = vld [vmem:[%s1 + $0x8] sm:$0xf]
      %v210 = vld [vmem:[%s1 + $0xc] sm:$0xf]
      %v211 = vld [vmem:[%s1 + $0x10] sm:$0xf]
      %v212 = vld [vmem:[%s1 + $0x14] sm:$0xf]
      %v213 = vld [vmem:[%s1 + $0x18] sm:$0xf]
      %v214 = vld [vmem:[%s1 + $0x1c] sm:$0xf]
      %v215 = vld [vmem:[%s1 + $0x20] sm:$0xf]
      %v216 = vld [vmem:[%s1 + $0x24] sm:$0xf]
      %v217 = vld [vmem:[%s1 + $0x28] sm:$0xf]
      %v218 = vld [vmem:[%s1 + $0x2c] sm:$0xf]
      %v219 = vld [vmem:[%s1 + $0x30] sm:$0xf]
      %v220 = vld [vmem:[%s1 + $0x34] sm:$0xf]
      %v221 = vld [vmem:[%s1 + $0x38] sm:$0xf]
      %v222 = vld [vmem:[%s1 + $0x3c] sm:$0xf]
      %v223 = vld [vmem:[%s2] sm:$0x1]
      %v225 = vlaneseq
      %v226 = vshrl.u32 %v225, 7
      %v227 = vsub.s32 0, %v226
      %v228 = vrot.slane %v223, %v227
      %v262 = vunpack.c.l.b16 %v175
      %v263 = vunpack.c.l.b16 %v176
      %v264 = vunpack.c.l.b16 %v177
      %v265 = vunpack.c.l.b16 %v178
      %v266 = vunpack.c.l.b16 %v179
      %v267 = vunpack.c.l.b16 %v180
      %v268 = vunpack.c.l.b16 %v181
      %v269 = vunpack.c.l.b16 %v182
      %v270 = vunpack.c.l.b16 %v183
      %v271 = vunpack.c.l.b16 %v184
      %v272 = vunpack.c.l.b16 %v185
      %v273 = vunpack.c.l.b16 %v186
      %v274 = vunpack.c.l.b16 %v187
      %v275 = vunpack.c.l.b16 %v188
      %v276 = vunpack.c.l.b16 %v189
      %v277 = vunpack.c.l.b16 %v190
      %v278 = vunpack.c.l.b16 %v191
      %v279 = vunpack.c.l.b16 %v192
      %v280 = vunpack.c.l.b16 %v193
      %v281 = vunpack.c.l.b16 %v194
      %v282 = vunpack.c.l.b16 %v195
      %v283 = vunpack.c.l.b16 %v196
      %v284 = vunpack.c.l.b16 %v197
      %v285 = vunpack.c.l.b16 %v198
      %v286 = vunpack.c.l.b16 %v199
      %v287 = vunpack.c.l.b16 %v200
      %v288 = vunpack.c.l.b16 %v201
      %v289 = vunpack.c.l.b16 %v202
      %v290 = vunpack.c.l.b16 %v203
      %v291 = vunpack.c.l.b16 %v204
      %v292 = vunpack.c.l.b16 %v205
      %v293 = vunpack.c.l.b16 %v206
      %v294 = vpack.c.b16 %v263, %v262
      %v295 = vpack.c.b16 %v265, %v264
      %v296 = vpack.c.b16 %v267, %v266
      %v297 = vpack.c.b16 %v269, %v268
      %v298 = vpack.c.b16 %v271, %v270
      %v299 = vpack.c.b16 %v273, %v272
      %v300 = vpack.c.b16 %v275, %v274
      %v301 = vpack.c.b16 %v277, %v276
      %v302 = vpack.c.b16 %v279, %v278
      %v303 = vpack.c.b16 %v281, %v280
      %v304 = vpack.c.b16 %v283, %v282
      %v305 = vpack.c.b16 %v285, %v284
      %v306 = vpack.c.b16 %v287, %v286
      %v307 = vpack.c.b16 %v289, %v288
      %v308 = vpack.c.b16 %v291, %v290
      %v309 = vpack.c.b16 %v293, %v292
      %v342 = vunpack.c.l.b16 %v207
      %v343 = vunpack.c.l.b16 %v208
      %v344 = vunpack.c.l.b16 %v209
      %v345 = vunpack.c.l.b16 %v210
      %v346 = vunpack.c.l.b16 %v211
      %v347 = vunpack.c.l.b16 %v212
      %v348 = vunpack.c.l.b16 %v213
      %v349 = vunpack.c.l.b16 %v214
      %v350 = vunpack.c.l.b16 %v215
      %v351 = vunpack.c.l.b16 %v216
      %v352 = vunpack.c.l.b16 %v217
      %v353 = vunpack.c.l.b16 %v218
      %v354 = vunpack.c.l.b16 %v219
      %v355 = vunpack.c.l.b16 %v220
      %v356 = vunpack.c.l.b16 %v221
      %v357 = vunpack.c.l.b16 %v222
      %v358 = vpack.c.b16 %v343, %v342
      %v359 = vpack.c.b16 %v345, %v344
      %v360 = vpack.c.b16 %v347, %v346
      %v361 = vpack.c.b16 %v349, %v348
      %v362 = vpack.c.b16 %v351, %v350
      %v363 = vpack.c.b16 %v353, %v352
      %v364 = vpack.c.b16 %v355, %v354
      %v365 = vpack.c.b16 %v357, %v356
      %374 = vmatprep.subr.bf16.mxu0 0
      %375 = vmatpush1.bf16.msra.mxu0 %v365
      %376 = vmatprep.subr.bf16.mxu0 0
      %377 = vmatpush1.bf16.msra.mxu0 %v364
      %378 = vmatprep.subr.bf16.mxu0 0
      %379 = vmatpush1.bf16.msra.mxu0 %v363
      %380 = vmatprep.subr.bf16.mxu0 0
      %381 = vmatpush1.bf16.msra.mxu0 %v362
      %382 = vmatprep.subr.bf16.mxu0 0
      %383 = vmatpush1.bf16.msra.mxu0 %v361
      %384 = vmatprep.subr.bf16.mxu0 0
      %385 = vmatpush1.bf16.msra.mxu0 %v360
      %386 = vmatprep.subr.bf16.mxu0 0
      %387 = vmatpush1.bf16.msra.mxu0 %v359
      %388 = vmatprep.subr.bf16.mxu0 0
      %389 = vmatpush1.bf16.msra.mxu0 %v358
      %390 = vmatprep.subr.bf16.mxu0 0
      %391 = vmatpush2.bf16.msra.mxu0 0
      %392 = vmatprep.subr.bf16.mxu0 0
      %393 = vmatpush2.bf16.msra.mxu0 0
      %394 = vmatprep.subr.bf16.mxu0 0
      %395 = vmatpush2.bf16.msra.mxu0 0
      %396 = vmatprep.subr.bf16.mxu0 0
      %397 = vmatpush2.bf16.msra.mxu0 0
      %398 = vmatprep.subr.bf16.mxu0 0
      %399 = vmatpush2.bf16.msra.mxu0 0
      %400 = vmatprep.subr.bf16.mxu0 0
      %401 = vmatpush2.bf16.msra.mxu0 0
      %402 = vmatprep.subr.bf16.mxu0 0
      %403 = vmatpush2.bf16.msra.mxu0 0
      %404 = vmatprep.subr.bf16.mxu0 0
      %405 = vmatpush2.bf16.msra.mxu0 0
      %406 = vmatprep.mubr.bf16.mxu0 0
      %407 = vmatmul.mubr.bf16.gmra.mxu0 %v294
      %v408 = vpop.f32.mrf.mxu0
      %v409 = vadd.f32 %v228, %v408
      %v410 = vpop.f32.mrf.mxu0
      %v411 = vpop.f32.mrf.mxu0
      %v412 = vadd.f32 %v228, %v411
      %v413 = vpop.f32.mrf.mxu0
      %414 = vmatprep.mubr.bf16.mxu0 0
      %415 = vmatmul.mubr.bf16.gmra.mxu0 %v295
      %v416 = vpop.f32.mrf.mxu0
      %v417 = vadd.f32 %v228, %v416
      %v418 = vpop.f32.mrf.mxu0
      %v419 = vpop.f32.mrf.mxu0
      %v420 = vadd.f32 %v228, %v419
      %v421 = vpop.f32.mrf.mxu0
      %422 = vmatprep.mubr.bf16.mxu0 0
      %423 = vmatmul.mubr.bf16.gmra.mxu0 %v296
      %v424 = vpop.f32.mrf.mxu0
      %v425 = vadd.f32 %v228, %v424
      %v426 = vpop.f32.mrf.mxu0
      %v427 = vpop.f32.mrf.mxu0
      %v428 = vadd.f32 %v228, %v427
      %v429 = vpop.f32.mrf.mxu0
      %430 = vmatprep.mubr.bf16.mxu0 0
      %431 = vmatmul.mubr.bf16.gmra.mxu0 %v297
      %v432 = vpop.f32.mrf.mxu0
      %v433 = vadd.f32 %v228, %v432
      %v434 = vpop.f32.mrf.mxu0
      %v435 = vpop.f32.mrf.mxu0
      %v436 = vadd.f32 %v228, %v435
      %v437 = vpop.f32.mrf.mxu0
      %438 = vmatprep.mubr.bf16.mxu0 0
      %439 = vmatmul.mubr.bf16.gmra.mxu0 %v298
      %v440 = vpop.f32.mrf.mxu0
      %v441 = vadd.f32 %v228, %v440
      %v442 = vpop.f32.mrf.mxu0
      %v443 = vpop.f32.mrf.mxu0
      %v444 = vadd.f32 %v228, %v443
      %v445 = vpop.f32.mrf.mxu0
      %446 = vmatprep.mubr.bf16.mxu0 0
      %447 = vmatmul.mubr.bf16.gmra.mxu0 %v299
      %v448 = vpop.f32.mrf.mxu0
      %v449 = vadd.f32 %v228, %v448
      %v450 = vpop.f32.mrf.mxu0
      %v451 = vpop.f32.mrf.mxu0
      %v452 = vadd.f32 %v228, %v451
      %v453 = vpop.f32.mrf.mxu0
      %454 = vmatprep.mubr.bf16.mxu0 0
      %455 = vmatmul.mubr.bf16.gmra.mxu0 %v300
      %v456 = vpop.f32.mrf.mxu0
      %v457 = vadd.f32 %v228, %v456
      %v458 = vpop.f32.mrf.mxu0
      %v459 = vpop.f32.mrf.mxu0
      %v460 = vadd.f32 %v228, %v459
      %v461 = vpop.f32.mrf.mxu0
      %462 = vmatprep.mubr.bf16.mxu0 0
      %463 = vmatmul.mubr.bf16.gmra.mxu0 %v301
      %v464 = vpop.f32.mrf.mxu0
      %v465 = vadd.f32 %v228, %v464
      %v466 = vpop.f32.mrf.mxu0
      %v467 = vpop.f32.mrf.mxu0
      %v468 = vadd.f32 %v228, %v467
      %v469 = vpop.f32.mrf.mxu0
      %470 = vmatprep.mubr.bf16.mxu0 0
      %471 = vmatmul.mubr.bf16.gmra.mxu0 %v302
      %v472 = vpop.f32.mrf.mxu0
      %v473 = vadd.f32 %v228, %v472
      %v474 = vpop.f32.mrf.mxu0
      %v475 = vpop.f32.mrf.mxu0
      %v476 = vadd.f32 %v228, %v475
      %v477 = vpop.f32.mrf.mxu0
      %478 = vmatprep.mubr.bf16.mxu0 0
      %479 = vmatmul.mubr.bf16.gmra.mxu0 %v303
      %v480 = vpop.f32.mrf.mxu0
      %v481 = vadd.f32 %v228, %v480
      %v482 = vpop.f32.mrf.mxu0
      %v483 = vpop.f32.mrf.mxu0
      %v484 = vadd.f32 %v228, %v483
      %v485 = vpop.f32.mrf.mxu0
      %486 = vmatprep.mubr.bf16.mxu0 0
      %487 = vmatmul.mubr.bf16.gmra.mxu0 %v304
      %v488 = vpop.f32.mrf.mxu0
      %v489 = vadd.f32 %v228, %v488
      %v490 = vpop.f32.mrf.mxu0
      %v491 = vpop.f32.mrf.mxu0
      %v492 = vadd.f32 %v228, %v491
      %v493 = vpop.f32.mrf.mxu0
      %494 = vmatprep.mubr.bf16.mxu0 0
      %495 = vmatmul.mubr.bf16.gmra.mxu0 %v305
      %v496 = vpop.f32.mrf.mxu0
      %v497 = vadd.f32 %v228, %v496
      %v498 = vpop.f32.mrf.mxu0
      %v499 = vpop.f32.mrf.mxu0
      %v500 = vadd.f32 %v228, %v499
      %v501 = vpop.f32.mrf.mxu0
      %502 = vmatprep.mubr.bf16.mxu0 0
      %503 = vmatmul.mubr.bf16.gmra.mxu0 %v306
      %v504 = vpop.f32.mrf.mxu0
      %v505 = vadd.f32 %v228, %v504
      %v506 = vpop.f32.mrf.mxu0
      %v507 = vpop.f32.mrf.mxu0
      %v508 = vadd.f32 %v228, %v507
      %v509 = vpop.f32.mrf.mxu0
      %510 = vmatprep.mubr.bf16.mxu0 0
      %511 = vmatmul.mubr.bf16.gmra.mxu0 %v307
      %v512 = vpop.f32.mrf.mxu0
      %v513 = vadd.f32 %v228, %v512
      %v514 = vpop.f32.mrf.mxu0
      %v515 = vpop.f32.mrf.mxu0
      %v516 = vadd.f32 %v228, %v515
      %v517 = vpop.f32.mrf.mxu0
      %518 = vmatprep.mubr.bf16.mxu0 0
      %519 = vmatmul.mubr.bf16.gmra.mxu0 %v308
      %v520 = vpop.f32.mrf.mxu0
      %v521 = vadd.f32 %v228, %v520
      %v522 = vpop.f32.mrf.mxu0
      %v523 = vpop.f32.mrf.mxu0
      %v524 = vadd.f32 %v228, %v523
      %v525 = vpop.f32.mrf.mxu0
      %526 = vmatprep.mubr.bf16.mxu0 0
      %527 = vmatmul.mubr.bf16.gmra.mxu0 %v309
      %v528 = vpop.f32.mrf.mxu0
      %v529 = vadd.f32 %v228, %v528
      %v530 = vpop.f32.mrf.mxu0
      %v531 = vpop.f32.mrf.mxu0
      %v532 = vadd.f32 %v228, %v531
      %v533 = vpop.f32.mrf.mxu0
      %534 = vdwg.mxu0
      %v535 = vsub.f32 0.0, %v409
      %v536 = vsub.f32 0.0, %v412
      %v537 = vsub.f32 0.0, %v417
      %v538 = vsub.f32 0.0, %v420
      %v539 = vsub.f32 0.0, %v425
      %v540 = vsub.f32 0.0, %v428
      %v541 = vsub.f32 0.0, %v433
      %v542 = vsub.f32 0.0, %v436
      %v543 = vsub.f32 0.0, %v441
      %v544 = vsub.f32 0.0, %v444
      %v545 = vsub.f32 0.0, %v449
      %v546 = vsub.f32 0.0, %v452
      %v547 = vsub.f32 0.0, %v457
      %v548 = vsub.f32 0.0, %v460
      %v549 = vsub.f32 0.0, %v465
      %v550 = vsub.f32 0.0, %v468
      %v551 = vsub.f32 0.0, %v473
      %v552 = vsub.f32 0.0, %v476
      %v553 = vsub.f32 0.0, %v481
      %v554 = vsub.f32 0.0, %v484
      %v555 = vsub.f32 0.0, %v489
      %v556 = vsub.f32 0.0, %v492
      %v557 = vsub.f32 0.0, %v497
      %v558 = vsub.f32 0.0, %v500
      %v559 = vsub.f32 0.0, %v505
      %v560 = vsub.f32 0.0, %v508
      %v561 = vsub.f32 0.0, %v513
      %v562 = vsub.f32 0.0, %v516
      %v563 = vsub.f32 0.0, %v521
      %v564 = vsub.f32 0.0, %v524
      %v565 = vsub.f32 0.0, %v529
      %v566 = vsub.f32 0.0, %v532
      %v567 = vmul.f32 %v535, 1.442695
      %v568 = vpow.pop %v567
      %v569 = vmul.f32 %v536, 1.442695
      %v570 = vpow.pop %v569
      %v571 = vmul.f32 %v537, 1.442695
      %v572 = vpow.pop %v571
      %v573 = vmul.f32 %v538, 1.442695
      %v574 = vpow.pop %v573
      %v575 = vmul.f32 %v539, 1.442695
      %v576 = vpow.pop %v575
      %v577 = vmul.f32 %v540, 1.442695
      %v578 = vpow.pop %v577
      %v579 = vmul.f32 %v541, 1.442695
      %v580 = vpow.pop %v579
      %v581 = vmul.f32 %v542, 1.442695
      %v582 = vpow.pop %v581
      %v583 = vmul.f32 %v543, 1.442695
      %v584 = vpow.pop %v583
      %v585 = vmul.f32 %v544, 1.442695
      %v586 = vpow.pop %v585
      %v587 = vmul.f32 %v545, 1.442695
      %v588 = vpow.pop %v587
      %v589 = vmul.f32 %v546, 1.442695
      %v590 = vpow.pop %v589
      %v591 = vmul.f32 %v547, 1.442695
      %v592 = vpow.pop %v591
      %v593 = vmul.f32 %v548, 1.442695
      %v594 = vpow.pop %v593
      %v595 = vmul.f32 %v549, 1.442695
      %v596 = vpow.pop %v595
      %v597 = vmul.f32 %v550, 1.442695
      %v598 = vpow.pop %v597
      %v599 = vmul.f32 %v551, 1.442695
      %v600 = vpow.pop %v599
      %v601 = vmul.f32 %v552, 1.442695
      %v602 = vpow.pop %v601
      %v603 = vmul.f32 %v553, 1.442695
      %v604 = vpow.pop %v603
      %v605 = vmul.f32 %v554, 1.442695
      %v606 = vpow.pop %v605
      %v607 = vmul.f32 %v555, 1.442695
      %v608 = vpow.pop %v607
      %v609 = vmul.f32 %v556, 1.442695
      %v610 = vpow.pop %v609
      %v611 = vmul.f32 %v557, 1.442695
      %v612 = vpow.pop %v611
      %v613 = vmul.f32 %v558, 1.442695
      %v614 = vpow.pop %v613
      %v615 = vmul.f32 %v559, 1.442695
      %v616 = vpow.pop %v615
      %v617 = vmul.f32 %v560, 1.442695
      %v618 = vpow.pop %v617
      %v619 = vmul.f32 %v561, 1.442695
      %v620 = vpow.pop %v619
      %v621 = vmul.f32 %v562, 1.442695
      %v622 = vpow.pop %v621
      %v623 = vmul.f32 %v563, 1.442695
      %v624 = vpow.pop %v623
      %v625 = vmul.f32 %v564, 1.442695
      %v626 = vpow.pop %v625
      %v627 = vmul.f32 %v565, 1.442695
      %v628 = vpow.pop %v627
      %v629 = vmul.f32 %v566, 1.442695
      %v630 = vpow.pop %v629
      %v631 = vadd.f32 %v568, 1.0
      %v632 = vadd.f32 %v570, 1.0
      %v633 = vadd.f32 %v572, 1.0
      %v634 = vadd.f32 %v574, 1.0
      %v635 = vadd.f32 %v576, 1.0
      %v636 = vadd.f32 %v578, 1.0
      %v637 = vadd.f32 %v580, 1.0
      %v638 = vadd.f32 %v582, 1.0
      %v639 = vadd.f32 %v584, 1.0
      %v640 = vadd.f32 %v586, 1.0
      %v641 = vadd.f32 %v588, 1.0
      %v642 = vadd.f32 %v590, 1.0
      %v643 = vadd.f32 %v592, 1.0
      %v644 = vadd.f32 %v594, 1.0
      %v645 = vadd.f32 %v596, 1.0
      %v646 = vadd.f32 %v598, 1.0
      %v647 = vadd.f32 %v600, 1.0
      %v648 = vadd.f32 %v602, 1.0
      %v649 = vadd.f32 %v604, 1.0
      %v650 = vadd.f32 %v606, 1.0
      %v651 = vadd.f32 %v608, 1.0
      %v652 = vadd.f32 %v610, 1.0
      %v653 = vadd.f32 %v612, 1.0
      %v654 = vadd.f32 %v614, 1.0
      %v655 = vadd.f32 %v616, 1.0
      %v656 = vadd.f32 %v618, 1.0
      %v657 = vadd.f32 %v620, 1.0
      %v658 = vadd.f32 %v622, 1.0
      %v659 = vadd.f32 %v624, 1.0
      %v660 = vadd.f32 %v626, 1.0
      %v661 = vadd.f32 %v628, 1.0
      %v662 = vadd.f32 %v630, 1.0
      %v663 = vrcp.pop %v631
      %v664 = vrcp.pop %v632
      %v665 = vrcp.pop %v633
      %v666 = vrcp.pop %v634
      %v667 = vrcp.pop %v635
      %v668 = vrcp.pop %v636
      %v669 = vrcp.pop %v637
      %v670 = vrcp.pop %v638
      %v671 = vrcp.pop %v639
      %v672 = vrcp.pop %v640
      %v673 = vrcp.pop %v641
      %v674 = vrcp.pop %v642
      %v675 = vrcp.pop %v643
      %v676 = vrcp.pop %v644
      %v677 = vrcp.pop %v645
      %v678 = vrcp.pop %v646
      %v679 = vrcp.pop %v647
      %v680 = vrcp.pop %v648
      %v681 = vrcp.pop %v649
      %v682 = vrcp.pop %v650
      %v683 = vrcp.pop %v651
      %v684 = vrcp.pop %v652
      %v685 = vrcp.pop %v653
      %v686 = vrcp.pop %v654
      %v687 = vrcp.pop %v655
      %v688 = vrcp.pop %v656
      %v689 = vrcp.pop %v657
      %v690 = vrcp.pop %v658
      %v691 = vrcp.pop %v659
      %v692 = vrcp.pop %v660
      %v693 = vrcp.pop %v661
      %v694 = vrcp.pop %v662
      %v695 = vmin.f32 %v663, 1.0
      %v696 = vmin.f32 %v664, 1.0
      %v697 = vmin.f32 %v665, 1.0
      %v698 = vmin.f32 %v666, 1.0
      %v699 = vmin.f32 %v667, 1.0
      %v700 = vmin.f32 %v668, 1.0
      %v701 = vmin.f32 %v669, 1.0
      %v702 = vmin.f32 %v670, 1.0
      %v703 = vmin.f32 %v671, 1.0
      %v704 = vmin.f32 %v672, 1.0
      %v705 = vmin.f32 %v673, 1.0
      %v706 = vmin.f32 %v674, 1.0
      %v707 = vmin.f32 %v675, 1.0
      %v708 = vmin.f32 %v676, 1.0
      %v709 = vmin.f32 %v677, 1.0
      %v710 = vmin.f32 %v678, 1.0
      %v711 = vmin.f32 %v679, 1.0
      %v712 = vmin.f32 %v680, 1.0
      %v713 = vmin.f32 %v681, 1.0
      %v714 = vmin.f32 %v682, 1.0
      %v715 = vmin.f32 %v683, 1.0
      %v716 = vmin.f32 %v684, 1.0
      %v717 = vmin.f32 %v685, 1.0
      %v718 = vmin.f32 %v686, 1.0
      %v719 = vmin.f32 %v687, 1.0
      %v720 = vmin.f32 %v688, 1.0
      %v721 = vmin.f32 %v689, 1.0
      %v722 = vmin.f32 %v690, 1.0
      %v723 = vmin.f32 %v691, 1.0
      %v724 = vmin.f32 %v692, 1.0
      %v725 = vmin.f32 %v693, 1.0
      %v726 = vmin.f32 %v694, 1.0
      %v727 = vpack.c.bf16 %v696, %v695
      %v728 = vpack.c.bf16 %v698, %v697
      %v729 = vpack.c.bf16 %v700, %v699
      %v730 = vpack.c.bf16 %v702, %v701
      %v731 = vpack.c.bf16 %v704, %v703
      %v732 = vpack.c.bf16 %v706, %v705
      %v733 = vpack.c.bf16 %v708, %v707
      %v734 = vpack.c.bf16 %v710, %v709
      %v735 = vpack.c.bf16 %v712, %v711
      %v736 = vpack.c.bf16 %v714, %v713
      %v737 = vpack.c.bf16 %v716, %v715
      %v738 = vpack.c.bf16 %v718, %v717
      %v739 = vpack.c.bf16 %v720, %v719
      %v740 = vpack.c.bf16 %v722, %v721
      %v741 = vpack.c.bf16 %v724, %v723
      %v742 = vpack.c.bf16 %v726, %v725
      %v759 = vunpack.c.l.b16 %v727
      %v760 = vunpack.c.h.b16 %v727
      %v761 = vunpack.c.l.b16 %v728
      %v762 = vunpack.c.h.b16 %v728
      %v763 = vunpack.c.l.b16 %v729
      %v764 = vunpack.c.h.b16 %v729
      %v765 = vunpack.c.l.b16 %v730
      %v766 = vunpack.c.h.b16 %v730
      %v767 = vunpack.c.l.b16 %v731
      %v768 = vunpack.c.h.b16 %v731
      %v769 = vunpack.c.l.b16 %v732
      %v770 = vunpack.c.h.b16 %v732
      %v771 = vunpack.c.l.b16 %v733
      %v772 = vunpack.c.h.b16 %v733
      %v773 = vunpack.c.l.b16 %v734
      %v774 = vunpack.c.h.b16 %v734
      %v775 = vunpack.c.l.b16 %v735
      %v776 = vunpack.c.h.b16 %v735
      %v777 = vunpack.c.l.b16 %v736
      %v778 = vunpack.c.h.b16 %v736
      %v779 = vunpack.c.l.b16 %v737
      %v780 = vunpack.c.h.b16 %v737
      %v781 = vunpack.c.l.b16 %v738
      %v782 = vunpack.c.h.b16 %v738
      %v783 = vunpack.c.l.b16 %v739
      %v784 = vunpack.c.h.b16 %v739
      %v785 = vunpack.c.l.b16 %v740
      %v786 = vunpack.c.h.b16 %v740
      %v787 = vunpack.c.l.b16 %v741
      %v788 = vunpack.c.h.b16 %v741
      %v789 = vunpack.c.l.b16 %v742
      %v790 = vunpack.c.h.b16 %v742
      %v791 = vpack.c.b16 %v759, %v759
      %v792 = vpack.c.b16 %v760, %v760
      %v793 = vpack.c.b16 %v761, %v761
      %v794 = vpack.c.b16 %v762, %v762
      %v795 = vpack.c.b16 %v763, %v763
      %v796 = vpack.c.b16 %v764, %v764
      %v797 = vpack.c.b16 %v765, %v765
      %v798 = vpack.c.b16 %v766, %v766
      %v799 = vpack.c.b16 %v767, %v767
      %v800 = vpack.c.b16 %v768, %v768
      %v801 = vpack.c.b16 %v769, %v769
      %v802 = vpack.c.b16 %v770, %v770
      %v803 = vpack.c.b16 %v771, %v771
      %v804 = vpack.c.b16 %v772, %v772
      %v805 = vpack.c.b16 %v773, %v773
      %v806 = vpack.c.b16 %v774, %v774
      %v807 = vpack.c.b16 %v775, %v775
      %v808 = vpack.c.b16 %v776, %v776
      %v809 = vpack.c.b16 %v777, %v777
      %v810 = vpack.c.b16 %v778, %v778
      %v811 = vpack.c.b16 %v779, %v779
      %v812 = vpack.c.b16 %v780, %v780
      %v813 = vpack.c.b16 %v781, %v781
      %v814 = vpack.c.b16 %v782, %v782
      %v815 = vpack.c.b16 %v783, %v783
      %v816 = vpack.c.b16 %v784, %v784
      %v817 = vpack.c.b16 %v785, %v785
      %v818 = vpack.c.b16 %v786, %v786
      %v819 = vpack.c.b16 %v787, %v787
      %v820 = vpack.c.b16 %v788, %v788
      %v821 = vpack.c.b16 %v789, %v789
      %v822 = vpack.c.b16 %v790, %v790
      %855 = vst [vmem:[%s172] sm:$0xf] %v791
      %856 = vst [vmem:[%s172 + $0x4] sm:$0xf] %v792
      %857 = vst [vmem:[%s172 + $0x8] sm:$0xf] %v793
      %858 = vst [vmem:[%s172 + $0xc] sm:$0xf] %v794
      %859 = vst [vmem:[%s172 + $0x10] sm:$0xf] %v795
      %860 = vst [vmem:[%s172 + $0x14] sm:$0xf] %v796
      %861 = vst [vmem:[%s172 + $0x18] sm:$0xf] %v797
      %862 = vst [vmem:[%s172 + $0x1c] sm:$0xf] %v798
      %863 = vst [vmem:[%s172 + $0x20] sm:$0xf] %v799
      %864 = vst [vmem:[%s172 + $0x24] sm:$0xf] %v800
      %865 = vst [vmem:[%s172 + $0x28] sm:$0xf] %v801
      %866 = vst [vmem:[%s172 + $0x2c] sm:$0xf] %v802
      %867 = vst [vmem:[%s172 + $0x30] sm:$0xf] %v803
      %868 = vst [vmem:[%s172 + $0x34] sm:$0xf] %v804
      %869 = vst [vmem:[%s172 + $0x38] sm:$0xf] %v805
      %870 = vst [vmem:[%s172 + $0x3c] sm:$0xf] %v806
      %871 = vst [vmem:[%s172 + $0x40] sm:$0xf] %v807
      %872 = vst [vmem:[%s172 + $0x44] sm:$0xf] %v808
      %873 = vst [vmem:[%s172 + $0x48] sm:$0xf] %v809
      %874 = vst [vmem:[%s172 + $0x4c] sm:$0xf] %v810
      %875 = vst [vmem:[%s172 + $0x50] sm:$0xf] %v811
      %876 = vst [vmem:[%s172 + $0x54] sm:$0xf] %v812
      %877 = vst [vmem:[%s172 + $0x58] sm:$0xf] %v813
      %878 = vst [vmem:[%s172 + $0x5c] sm:$0xf] %v814
      %879 = vst [vmem:[%s172 + $0x60] sm:$0xf] %v815
      %880 = vst [vmem:[%s172 + $0x64] sm:$0xf] %v816
      %881 = vst [vmem:[%s172 + $0x68] sm:$0xf] %v817
      %882 = vst [vmem:[%s172 + $0x6c] sm:$0xf] %v818
      %883 = vst [vmem:[%s172 + $0x70] sm:$0xf] %v819
      %884 = vst [vmem:[%s172 + $0x74] sm:$0xf] %v820
      %885 = vst [vmem:[%s172 + $0x78] sm:$0xf] %v821
      %886 = vst [vmem:[%s172 + $0x7c] sm:$0xf] %v822
      %s887 = smul.u32 32, %s14
      %p888 = scmp.lt.s32.totalorder %s887, 287
      %s889 = scalar_select %p888, %s887, 287
      %s890 = smul.addr %s889, 4
      %s891 = scalar_lea.vmem %s3, %s890
      // Predicated region
      $region33: #{image_decoder_forward.9} parent=31 // pred_check
        %p892 = pneg %p100
      $region34: #{image_decoder_forward.9} parent=31 // pred_check_branch
        %894 = sbr.rel (%p892) target = $region36
      $region35: #{image_decoder_forward.9} parent=31 // pred_region
        %s895 = smul.u32 32, %s14
      $region36: #{image_decoder_forward.9} parent=31 // pred_fallthru
        _
    $region32: #{image_decoder_forward.9} parent=5 // pred_fallthru
      _
    %p896 = scmp.le.s32.totalorder 2, %s9
    // Predicated region
    $region37: #{image_decoder_forward.9} parent=5 // pred_check
      %p897 = pneg %p896
    $region38: #{image_decoder_forward.9} parent=5 // pred_check_branch
      %899 = sbr.rel (%p897) target = $region40
    $region39: #{image_decoder_forward.9} parent=5 // pred_region
      %s900 = ssub.s32 %s9, 2
      // Predicated region
      $region41: #{image_decoder_forward.9} parent=39 // pred_check
        %p901 = pneg %p106
      $region42: #{image_decoder_forward.9} parent=39 // pred_check_branch
        %903 = sbr.rel (%p901) target = $region44
      $region43: #{image_decoder_forward.9} parent=39 // pred_region
        %s904 = smul.u32 32, %s15
        %p905 = scmp.lt.s32.totalorder %s904, 287
        %s906 = scalar_select %p905, %s904, 287
        %s907 = smul.addr %s906, 4
        %s908 = scalar_lea.vmem %s3, %s907
      $region44: #{image_decoder_forward.9} parent=39 // pred_fallthru
        _
    $region40: #{image_decoder_forward.9} parent=5 // pred_fallthru
      _
  $region6: #{image_decoder_forward.9} parent=0 // loop_footer
    %s13 = sadd.s32 1, %s9
  $region7: #{image_decoder_forward.9} parent=0 // loop_footer_branch
    %8 = sbr.rel target = $region3
  $region8: #{image_decoder_forward.9} parent=0 // loop_exit
    _

</llo_original>
